<compile_context>
chip_gen: v7x
topology: tpu7x:2x2x1
jax: 0.10.0
libtpu: 0.0.40
codegen_flags: <defaults>
</compile_context>

<pallas_src>
import functools

import jax
import jax.numpy as jnp
from jax.experimental import pallas as pl
from jax.experimental.pallas import tpu as pltpu


SELECTED_LAYERS = (1, 2, 3, 4, 5, 6, 7, 8)


def _round_up(x, m):
    return (x + m - 1) // m * m


def _pick_batch_block(B, Lp, D, budget_bytes=2 << 20):
    """Fold as much batch as possible into the matmul M dim (MXU fill); cap the
    per-grid-step residual working set.  The remainder becomes the leading
    'parallel' grid axis (megacore sharding on multi-TensorCore parts)."""
    bb = B
    while bb > 1 and bb * Lp * D * 4 > budget_bytes:
        bb -= 1
        while B % bb:
            bb -= 1
    return bb


def _mlp_chunking(D, max_chunk=1024):
    """Chunk size along the 4*D MLP hidden axis (multiple of 128, divides 4*D)."""
    hidden = 4 * D
    if hidden <= max_chunk or hidden % 128:
        return hidden, 1
    chunk = max_chunk
    while chunk >= 128 and hidden % chunk:
        chunk -= 128
    if chunk < 128:
        return hidden, 1
    return chunk, hidden // chunk


# --------------------- fused 12-layer CLIP transformer kernel ----------------

def _mapper_kernel(flags_ref,                                   # SMEM [12] int32
                   x_ref, prompt_ref, lnpg_ref, lnpb_ref,
                   ln1g_ref, ln1b_ref, wqkv_ref, bqkv_ref, wout_ref, bout_ref,
                   ln2g_ref, ln2b_ref, wfc_ref, bfc_ref, wproj_ref, bproj_ref,
                   o_ref, *, num_heads, L0, eps, n_mlp_chunks):
    f32, bf16 = jnp.float32, jnp.bfloat16
    bb, Lp, D = x_ref.shape
    M = bb * Lp
    dh = D // num_heads
    l = pl.program_id(1)                       # layer index (grid axis, "arbitrary")
    has_prompt = flags_ref[l]

    def ln(v, g, b):
        mu = jnp.mean(v, axis=-1, keepdims=True)
        vc = v - mu
        var = jnp.mean(vc * vc, axis=-1, keepdims=True)
        return vc * jax.lax.rsqrt(var + eps) * g + b

    # ---- layer 0: residual stream := ln_pre(x)  (ln_pre folded into kernel) ----
    @pl.when(l == 0)
    def _():
        x = x_ref[...].astype(f32).reshape(M, D)
        o_ref[...] = ln(x, lnpg_ref[...], lnpb_ref[...]).reshape(bb, Lp, D)

    # ---- selected layers: drop the fresh (un-normalized) prompt into row L0 ----
    @pl.when(has_prompt > 0)
    def _():
        o_ref[:, pl.ds(L0, 1), :] = prompt_ref[...]

    resid = o_ref[...].reshape(M, D)           # f32 residual stream, VMEM-resident

    # ---- ln_1 + fused QKV projection (bf16 MXU inputs, f32 accumulation) ----
    h1 = ln(resid, ln1g_ref[...], ln1b_ref[...])
    # 1/sqrt(dh) is pre-folded into the q columns of W_qkv / b_qkv (free); cast
    # the whole qkv to bf16 ONCE so only [M, 3D]*2 bytes stays live in the loop.
    qkv = (jnp.dot(h1.astype(bf16), wqkv_ref[...], preferred_element_type=f32)
           + bqkv_ref[...]).astype(bf16)                         # [M, 3D]

    # Additive key mask (kept in f32 so -1e30 cannot overflow): real tokens are
    # always valid keys, the prompt row only when this layer received a prompt,
    # padded rows never.
    kidx = jax.lax.broadcasted_iota(jnp.int32, (1, Lp), 1)
    bias = jnp.where(kidx < L0 + has_prompt, 0.0, -1e30).astype(f32)

    # ---- attention: output projection fused into the head loop (no concat) ----
    x1_parts = []
    for b in range(bb):
        r0 = b * Lp
        acc = resid[r0:r0 + Lp, :] + bout_ref[...]               # residual + out bias
        for hd in range(num_heads):
            q = qkv[r0:r0 + Lp, hd * dh:(hd + 1) * dh]
            k = qkv[r0:r0 + Lp, D + hd * dh:D + (hd + 1) * dh]
            v = qkv[r0:r0 + Lp, 2 * D + hd * dh:2 * D + (hd + 1) * dh]
            s = jax.lax.dot_general(q, k, (((1,), (1,)), ((), ())),
                                    preferred_element_type=f32) + bias
            s = s - jnp.max(s, axis=-1, keepdims=True)
            p = jnp.exp(s)
            p = p * pl.reciprocal(jnp.sum(p, axis=-1, keepdims=True), approx=True)
            pv = jnp.dot(p.astype(bf16), v, preferred_element_type=f32)   # [Lp, dh]
            acc = acc + jnp.dot(pv.astype(bf16),
                                wout_ref[hd * dh:(hd + 1) * dh, :],
                                preferred_element_type=f32)
        x1_parts.append(acc)
    x1 = x1_parts[0] if bb == 1 else jnp.concatenate(x1_parts, axis=0)    # [M, D]

    # ---- ln_2 + chunked MLP: the [M, 4D] hidden never exists in full ----
    h2 = ln(x1, ln2g_ref[...], ln2b_ref[...]).astype(bf16)

    def mlp_chunk(c, acc):
        m = jnp.dot(h2, wfc_ref[c], preferred_element_type=f32) + bfc_ref[c]
        m = m * jax.nn.sigmoid(1.702 * m)                         # QuickGELU (f32)
        return acc + jnp.dot(m.astype(bf16), wproj_ref[c],
                             preferred_element_type=f32)

    x2 = jax.lax.fori_loop(0, n_mlp_chunks, mlp_chunk, x1 + bproj_ref[...],
                           unroll=True)
    o_ref[...] = x2.reshape(bb, Lp, D)


def make_mapper_fn(B, Lp, D, L0, num_heads, batch_block, mlp_chunk, n_mlp_chunks,
                   *, n_layers=12, eps=1e-5):
    NB = B // batch_block
    M = batch_block * Lp

    def lspec(*shape):   # per-layer stacked tensors: layer dim squeezed, grid-indexed
        return pl.BlockSpec((None,) + shape,
                            lambda b, l, flags: (l,) + (0,) * len(shape))

    def cspec(*shape):   # constants (same block every step)
        return pl.BlockSpec(shape, lambda b, l, flags: (0,) * len(shape))

    xspec = pl.BlockSpec((batch_block, Lp, D), lambda b, l, flags: (b, 0, 0))
    pspec = pl.BlockSpec((None, batch_block, 1, D), lambda b, l, flags: (l, b, 0, 0))

    # Advisory cost hint (whole call): dense matmuls + attention + activations.
    flops = NB * n_layers * (24 * M * D * D + 4 * M * Lp * D)
    transc = NB * n_layers * (batch_block * num_heads * Lp * Lp + 4 * M * D)
    bytes_acc = n_layers * 24 * D * D + 2 * B * Lp * D * 4 + n_layers * B * D * 4
    cost = pl.CostEstimate(flops=int(flops), transcendentals=int(transc),
                           bytes_accessed=int(bytes_acc))

    # Explicit VMEM budget: double-buffered bf16 layer weights (layer axis is
    # grid-pipelined) + resident residual blocks + in-kernel temporaries.
    vmem_est = (2 * 24 * D * D                       # 2x bf16 weight set / layer
                + 4 * batch_block * Lp * D * 4       # x + o blocks (double-buffered)
                + M * (3 * D * 2 + 16 * D)           # bf16 qkv + f32 temporaries
                + M * mlp_chunk * 4                  # one MLP hidden chunk
                + (4 << 20))
    vmem_limit = int(min(64 << 20, max(32 << 20, vmem_est)))

    return pl.pallas_call(
        functools.partial(_mapper_kernel, num_heads=num_heads, L0=L0, eps=eps,
                          n_mlp_chunks=n_mlp_chunks),
        out_shape=jax.ShapeDtypeStruct((B, Lp, D), jnp.float32),
        grid_spec=pltpu.PrefetchScalarGridSpec(
            num_scalar_prefetch=1,                   # per-layer prompt flags (SMEM)
            grid=(NB, n_layers),                     # (batch chunks, layers)
            in_specs=[
                xspec,                               # x            [B, Lp, D]
                pspec,                               # prompt rows  [12, B, 1, D]
                cspec(1, D), cspec(1, D),            # ln_pre gamma / beta
                lspec(1, D), lspec(1, D),            # ln_1 gamma / beta   [12,1,D]
                lspec(D, 3 * D), lspec(1, 3 * D),    # qkv  W / b
                lspec(D, D), lspec(1, D),            # out-proj W / b
                lspec(1, D), lspec(1, D),            # ln_2 gamma / beta
                lspec(n_mlp_chunks, D, mlp_chunk),   # fc   W   [12,nc,D,ck]
                lspec(n_mlp_chunks, 1, mlp_chunk),   # fc   b   [12,nc,1,ck]
                lspec(n_mlp_chunks, mlp_chunk, D),   # proj W   [12,nc,ck,D]
                lspec(1, D),                         # proj b   [12,1,D]
            ],
            out_specs=pl.BlockSpec((batch_block, Lp, D),
                                   lambda b, l, flags: (b, 0, 0)),
        ),
        compiler_params=pltpu.CompilerParams(
            dimension_semantics=("parallel", "arbitrary"),
            vmem_limit_bytes=vmem_limit),
        cost_estimate=cost,
    )


# ------------------------------ CLIP_Mapper -----------------------------------

def clip_mapper_forward(img, prompts, params, *, num_heads):
    """img: [B, D, G, G] (NCHW), prompts: [B, 8, D]  ->  [B, D, G, G]."""
    in_dtype = img.dtype
    B, D, G, _ = img.shape
    L0 = G * G + 1                            # class token + patches
    Lp = _round_up(L0 + 1, 8)                 # +1 prompt slot, sublane aligned
    layers = params["layers"]
    n_layers = len(layers)
    scale = (D // num_heads) ** -0.5

    # NCHW -> [B, G*G, D]; prepend class token; positional embedding; pad to Lp.
    x = img.astype(jnp.float32).reshape(B, D, G * G).transpose(0, 2, 1)
    cls_tok = jnp.broadcast_to(
        params["class_embedding"].astype(jnp.float32)[None, None, :], (B, 1, D))
    x = jnp.concatenate([cls_tok, x], axis=1) \
        + params["positional_embedding"].astype(jnp.float32)[None]
    x = jnp.pad(x, ((0, 0), (0, Lp - L0), (0, 0)))

    # Per-layer prompt row (zeros when that layer takes no prompt) + prompt flag.
    prompts_f = prompts.astype(jnp.float32)
    rows, flags, pidx = [], [], 0
    for i in range(n_layers):
        if i in SELECTED_LAYERS:
            rows.append(prompts_f[:, pidx, :]); flags.append(1); pidx += 1
        else:
            rows.append(jnp.zeros((B, D), jnp.float32)); flags.append(0)
    prompt_slab = jnp.stack(rows, axis=0)[:, :, None, :]          # [12, B, 1, D]
    flags = jnp.asarray(flags, jnp.int32)

    # Stack per-layer weights so all 12 layers run as one grid axis (layer l+1
    # weight DMA overlaps layer l compute).  Fold the 1/sqrt(dh) attention scale
    # into the q projection (zero runtime cost).  MLP weights are pre-reshaped to
    # [12, n_chunks, ...] so the in-kernel chunk index is a leading-axis ref index.
    def stk(name):
        return jnp.stack([lyr[name] for lyr in layers], axis=0)

    mlp_chunk, n_mlp_chunks = _mlp_chunking(D)
    w_qkv = (stk("w_qkv").astype(jnp.float32)
             .at[:, :, :D].multiply(scale).astype(jnp.bfloat16))
    b_qkv = stk("b_qkv").at[:, :, :D].multiply(scale)
    w_out = stk("w_out").astype(jnp.bfloat16)
    w_fc = (stk("w_fc").astype(jnp.bfloat16)
            .reshape(n_layers, D, n_mlp_chunks, mlp_chunk).transpose(0, 2, 1, 3))
    b_fc = stk("b_fc").reshape(n_layers, n_mlp_chunks, 1, mlp_chunk)
    w_proj = stk("w_proj").astype(jnp.bfloat16).reshape(
        n_layers, n_mlp_chunks, mlp_chunk, D)

    batch_block = _pick_batch_block(B, Lp, D)
    mapper = make_mapper_fn(B, Lp, D, L0, num_heads, batch_block,
                            mlp_chunk, n_mlp_chunks, n_layers=n_layers)
    out = mapper(flags, x, prompt_slab,
                 params["ln_pre_g"], params["ln_pre_b"],
                 stk("ln1_g"), stk("ln1_b"), w_qkv, b_qkv, w_out, stk("b_out"),
                 stk("ln2_g"), stk("ln2_b"), w_fc, b_fc, w_proj, stk("b_proj"))

    # Drop class token and padding rows -> [B, G*G, D] -> [B, D, G, G].
    out = out[:, 1:L0, :].transpose(0, 2, 1).reshape(B, D, G, G)
    return out.astype(in_dtype)


# ----------------------------- Parameter init ---------------------------------

def init_params(key, D, L0, n_layers=12):
    def nrm_bf16(k, shape, scale=0.02):
        return (scale * jax.random.normal(k, shape, jnp.float32)).astype(jnp.bfloat16)

    keys = jax.random.split(key, 2 + n_layers)
    params = {
        "class_embedding": 0.02 * jax.random.normal(keys[0], (D,), jnp.float32),
        "positional_embedding": 0.02 * jax.random.normal(keys[1], (L0, D), jnp.float32),
        "ln_pre_g": jnp.ones((1, D), jnp.float32),
        "ln_pre_b": jnp.zeros((1, D), jnp.float32),
        "layers": [],
    }
    for i in range(n_layers):
        lk = jax.random.split(keys[2 + i], 4)
        params["layers"].append({
            "ln1_g": jnp.ones((1, D), jnp.float32),
            "ln1_b": jnp.zeros((1, D), jnp.float32),
            # matmul weights stored pre-transposed (x @ W) and in bf16 for the MXU
            "w_qkv": nrm_bf16(lk[0], (D, 3 * D)),
            "b_qkv": jnp.zeros((1, 3 * D), jnp.float32),
            "w_out": nrm_bf16(lk[1], (D, D)),
            "b_out": jnp.zeros((1, D), jnp.float32),
            "ln2_g": jnp.ones((1, D), jnp.float32),
            "ln2_b": jnp.zeros((1, D), jnp.float32),
            "w_fc": nrm_bf16(lk[2], (D, 4 * D)),
            "b_fc": jnp.zeros((1, 4 * D), jnp.float32),
            "w_proj": nrm_bf16(lk[3], (4 * D, D)),
            "b_proj": jnp.zeros((1, D), jnp.float32),
        })
    return params


# ---------------------------------- Main ---------------------------------------

if __name__ == "__main__":
    # Small synthetic config (original CLIP-ViT uses D=768, 12 heads, grid=7/14).
    B, D, G, H = 2, 128, 4, 4
    L0 = G * G + 1

    key = jax.random.PRNGKey(0)
    k_img, k_prompt, k_param = jax.random.split(key, 3)
    img = jax.random.normal(k_img, (B, D, G, G), jnp.float32)
    prompts = jax.random.normal(k_prompt, (B, 8, D), jnp.float32)
    params = init_params(k_param, D, L0)

    fwd = jax.jit(functools.partial(clip_mapper_forward, num_heads=H))
    out = jax.block_until_ready(fwd(img, prompts, params))

    assert out.shape == (B, D, G, G), out.shape
    assert out.dtype == img.dtype
    assert bool(jnp.all(jnp.isfinite(out)))
    print("KERNEL_OK")
</pallas_src>

<mosaic_0001>
module attributes {stable_mosaic.version = 11 : i64} {
  func.func @_mapper_kernel(%arg0: i32, %arg1: i32, %arg2: memref<12xi32, #tpu.memory_space<smem>>, %arg3: memref<2x24x128xf32, #tpu.memory_space<vmem>>, %arg4: memref<1x2x1x128xf32, #tpu.memory_space<vmem>>, %arg5: memref<1x128xf32, #tpu.memory_space<vmem>>, %arg6: memref<1x128xf32, #tpu.memory_space<vmem>>, %arg7: memref<1x1x128xf32, #tpu.memory_space<vmem>>, %arg8: memref<1x1x128xf32, #tpu.memory_space<vmem>>, %arg9: memref<1x128x384xbf16, #tpu.memory_space<vmem>>, %arg10: memref<1x1x384xf32, #tpu.memory_space<vmem>>, %arg11: memref<1x128x128xbf16, #tpu.memory_space<vmem>>, %arg12: memref<1x1x128xf32, #tpu.memory_space<vmem>>, %arg13: memref<1x1x128xf32, #tpu.memory_space<vmem>>, %arg14: memref<1x1x128xf32, #tpu.memory_space<vmem>>, %arg15: memref<1x1x128x512xbf16, #tpu.memory_space<vmem>>, %arg16: memref<1x1x1x512xf32, #tpu.memory_space<vmem>>, %arg17: memref<1x1x512x128xbf16, #tpu.memory_space<vmem>>, %arg18: memref<1x1x128xf32, #tpu.memory_space<vmem>>, %arg19: memref<2x24x128xf32, #tpu.memory_space<vmem>>) attributes {dimension_semantics = [#tpu.dimension_semantics<parallel>, #tpu.dimension_semantics<arbitrary>], iteration_bounds = array<i64: 1, 12>, scalar_prefetch = 1 : i64, scratch_operands = 0 : i64, tpu.core_type = #tpu.core_type<tc>, window_params = [{transform_indices = @transform_0, window_bounds = array<i64: 2, 24, 128>}, {transform_indices = @transform_1, window_bounds = array<i64: 1, 2, 1, 128>}, {pipeline_mode = #tpu.pipeline_mode<synchronous>, transform_indices = @transform_2, window_bounds = array<i64: 1, 128>}, {pipeline_mode = #tpu.pipeline_mode<synchronous>, transform_indices = @transform_3, window_bounds = array<i64: 1, 128>}, {transform_indices = @transform_4, window_bounds = array<i64: 1, 1, 128>}, {transform_indices = @transform_5, window_bounds = array<i64: 1, 1, 128>}, {transform_indices = @transform_6, window_bounds = array<i64: 1, 128, 384>}, {transform_indices = @transform_7, window_bounds = array<i64: 1, 1, 384>}, {transform_indices = @transform_8, window_bounds = array<i64: 1, 128, 128>}, {transform_indices = @transform_9, window_bounds = array<i64: 1, 1, 128>}, {transform_indices = @transform_10, window_bounds = array<i64: 1, 1, 128>}, {transform_indices = @transform_11, window_bounds = array<i64: 1, 1, 128>}, {transform_indices = @transform_12, window_bounds = array<i64: 1, 1, 128, 512>}, {transform_indices = @transform_13, window_bounds = array<i64: 1, 1, 1, 512>}, {transform_indices = @transform_14, window_bounds = array<i64: 1, 1, 512, 128>}, {transform_indices = @transform_15, window_bounds = array<i64: 1, 1, 128>}, {transform_indices = @transform_16, window_bounds = array<i64: 2, 24, 128>}]} {
    %0 = arith.index_cast %arg1 : i32 to index
    %1 = memref.load %arg2[%0] : memref<12xi32, #tpu.memory_space<smem>>
    %c0_i32 = arith.constant 0 : i32
    %2 = arith.cmpi eq, %arg1, %c0_i32 : i32
    %3 = arith.extui %2 : i1 to i32
    %c0_i32_0 = arith.constant 0 : i32
    %4 = arith.cmpi ne, %3, %c0_i32_0 : i32
    scf.if %4 {
      %c0_122 = arith.constant 0 : index
      %c0_123 = arith.constant 0 : index
      %c0_124 = arith.constant 0 : index
      %299 = vector.load %arg3[%c0_122, %c0_123, %c0_124] : memref<2x24x128xf32, #tpu.memory_space<vmem>>, vector<2x24x128xf32>
      %300 = vector.shape_cast %299 : vector<2x24x128xf32> to vector<48x128xf32>
      %c0_125 = arith.constant 0 : index
      %c0_126 = arith.constant 0 : index
      %301 = vector.load %arg5[%c0_125, %c0_126] : memref<1x128xf32, #tpu.memory_space<vmem>>, vector<1x128xf32>
      %c0_127 = arith.constant 0 : index
      %c0_128 = arith.constant 0 : index
      %302 = vector.load %arg6[%c0_127, %c0_128] : memref<1x128xf32, #tpu.memory_space<vmem>>, vector<1x128xf32>
      %cst_129 = arith.constant dense<0.000000e+00> : vector<48xf32>
      %303 = vector.multi_reduction <add>, %300, %cst_129 [1] : vector<48x128xf32> to vector<48xf32>
      %304 = vector.shape_cast %303 : vector<48xf32> to vector<48x1xf32>
      %cst_130 = arith.constant 1.280000e+02 : f32
      %305 = vector.broadcast %cst_130 : f32 to vector<48x1xf32>
      %306 = arith.divf %304, %305 : vector<48x1xf32>
      %307 = vector.broadcast %306 : vector<48x1xf32> to vector<48x128xf32>
      %308 = arith.subf %300, %307 : vector<48x128xf32>
      %309 = arith.mulf %308, %308 : vector<48x128xf32>
      %cst_131 = arith.constant dense<0.000000e+00> : vector<48xf32>
      %310 = vector.multi_reduction <add>, %309, %cst_131 [1] : vector<48x128xf32> to vector<48xf32>
      %311 = vector.shape_cast %310 : vector<48xf32> to vector<48x1xf32>
      %cst_132 = arith.constant 1.280000e+02 : f32
      %312 = vector.broadcast %cst_132 : f32 to vector<48x1xf32>
      %313 = arith.divf %311, %312 : vector<48x1xf32>
      %cst_133 = arith.constant 9.99999974E-6 : f32
      %314 = vector.broadcast %cst_133 : f32 to vector<48x1xf32>
      %315 = arith.addf %313, %314 : vector<48x1xf32>
      %316 = math.rsqrt %315 : vector<48x1xf32>
      %317 = vector.broadcast %316 : vector<48x1xf32> to vector<48x128xf32>
      %318 = arith.mulf %308, %317 : vector<48x128xf32>
      %319 = vector.broadcast %301 : vector<1x128xf32> to vector<48x128xf32>
      %320 = arith.mulf %318, %319 : vector<48x128xf32>
      %321 = vector.broadcast %302 : vector<1x128xf32> to vector<48x128xf32>
      %322 = arith.addf %320, %321 : vector<48x128xf32>
      %323 = vector.shape_cast %322 : vector<48x128xf32> to vector<2x24x128xf32>
      %c0_134 = arith.constant 0 : index
      %c0_135 = arith.constant 0 : index
      %c0_136 = arith.constant 0 : index
      %324 = vector.load %arg19[%c0_134, %c0_135, %c0_136] : memref<2x24x128xf32, #tpu.memory_space<vmem>>, vector<2x24x128xf32>
      tpu.vector_store %arg19[%c0_134, %c0_135, %c0_136], %323 {strides = array<i32>} : memref<2x24x128xf32, #tpu.memory_space<vmem>>, vector<2x24x128xf32>,
    } else {
    }
    %c0_i32_1 = arith.constant 0 : i32
    %5 = arith.cmpi sgt, %1, %c0_i32_1 : i32
    %6 = arith.extui %5 : i1 to i32
    %c0_i32_2 = arith.constant 0 : i32
    %7 = arith.cmpi ne, %6, %c0_i32_2 : i32
    scf.if %7 {
      %c0_122 = arith.constant 0 : index
      %c0_123 = arith.constant 0 : index
      %c0_124 = arith.constant 0 : index
      %c0_125 = arith.constant 0 : index
      %299 = vector.load %arg4[%c0_122, %c0_123, %c0_124, %c0_125] : memref<1x2x1x128xf32, #tpu.memory_space<vmem>>, vector<1x2x1x128xf32>
      %300 = vector.shape_cast %299 : vector<1x2x1x128xf32> to vector<2x1x128xf32>
      %c0_126 = arith.constant 0 : index
      %c17 = arith.constant 17 : index
      %c0_127 = arith.constant 0 : index
      %301 = vector.load %arg19[%c0_126, %c17, %c0_127] : memref<2x24x128xf32, #tpu.memory_space<vmem>>, vector<2x1x128xf32>
      tpu.vector_store %arg19[%c0_126, %c17, %c0_127], %300 {strides = array<i32>} : memref<2x24x128xf32, #tpu.memory_space<vmem>>, vector<2x1x128xf32>,
    } else {
    }
    %c0 = arith.constant 0 : index
    %c0_3 = arith.constant 0 : index
    %c0_4 = arith.constant 0 : index
    %8 = vector.load %arg19[%c0, %c0_3, %c0_4] : memref<2x24x128xf32, #tpu.memory_space<vmem>>, vector<2x24x128xf32>
    %9 = vector.shape_cast %8 : vector<2x24x128xf32> to vector<48x128xf32>
    %c0_5 = arith.constant 0 : index
    %c0_6 = arith.constant 0 : index
    %c0_7 = arith.constant 0 : index
    %10 = vector.load %arg7[%c0_5, %c0_6, %c0_7] : memref<1x1x128xf32, #tpu.memory_space<vmem>>, vector<1x1x128xf32>
    %11 = vector.shape_cast %10 : vector<1x1x128xf32> to vector<1x128xf32>
    %c0_8 = arith.constant 0 : index
    %c0_9 = arith.constant 0 : index
    %c0_10 = arith.constant 0 : index
    %12 = vector.load %arg8[%c0_8, %c0_9, %c0_10] : memref<1x1x128xf32, #tpu.memory_space<vmem>>, vector<1x1x128xf32>
    %13 = vector.shape_cast %12 : vector<1x1x128xf32> to vector<1x128xf32>
    %cst = arith.constant dense<0.000000e+00> : vector<48xf32>
    %14 = vector.multi_reduction <add>, %9, %cst [1] : vector<48x128xf32> to vector<48xf32>
    %15 = vector.shape_cast %14 : vector<48xf32> to vector<48x1xf32>
    %cst_11 = arith.constant 1.280000e+02 : f32
    %16 = vector.broadcast %cst_11 : f32 to vector<48x1xf32>
    %17 = arith.divf %15, %16 : vector<48x1xf32>
    %18 = vector.broadcast %17 : vector<48x1xf32> to vector<48x128xf32>
    %19 = arith.subf %9, %18 : vector<48x128xf32>
    %20 = arith.mulf %19, %19 : vector<48x128xf32>
    %cst_12 = arith.constant dense<0.000000e+00> : vector<48xf32>
    %21 = vector.multi_reduction <add>, %20, %cst_12 [1] : vector<48x128xf32> to vector<48xf32>
    %22 = vector.shape_cast %21 : vector<48xf32> to vector<48x1xf32>
    %cst_13 = arith.constant 1.280000e+02 : f32
    %23 = vector.broadcast %cst_13 : f32 to vector<48x1xf32>
    %24 = arith.divf %22, %23 : vector<48x1xf32>
    %cst_14 = arith.constant 9.99999974E-6 : f32
    %25 = vector.broadcast %cst_14 : f32 to vector<48x1xf32>
    %26 = arith.addf %24, %25 : vector<48x1xf32>
    %27 = math.rsqrt %26 : vector<48x1xf32>
    %28 = vector.broadcast %27 : vector<48x1xf32> to vector<48x128xf32>
    %29 = arith.mulf %19, %28 : vector<48x128xf32>
    %30 = vector.broadcast %11 : vector<1x128xf32> to vector<48x128xf32>
    %31 = arith.mulf %29, %30 : vector<48x128xf32>
    %32 = vector.broadcast %13 : vector<1x128xf32> to vector<48x128xf32>
    %33 = arith.addf %31, %32 : vector<48x128xf32>
    %34 = arith.truncf %33 : vector<48x128xf32> to vector<48x128xbf16>
    %c0_15 = arith.constant 0 : index
    %c0_16 = arith.constant 0 : index
    %c0_17 = arith.constant 0 : index
    %35 = vector.load %arg9[%c0_15, %c0_16, %c0_17] : memref<1x128x384xbf16, #tpu.memory_space<vmem>>, vector<1x128x384xbf16>
    %36 = vector.shape_cast %35 : vector<1x128x384xbf16> to vector<128x384xbf16>
    %cst_18 = arith.constant dense<0.000000e+00> : vector<48x384xf32>
    %37 = tpu.matmul %34, %36, %cst_18 {dimension_numbers = #tpu.dot_dimension_numbers<[1], [0], [0], [1], [0, 0, 1, 1], [], []>} : vector<48x128xbf16>, vector<128x384xbf16>, vector<48x384xf32> -> vector<48x384xf32>
    %c0_19 = arith.constant 0 : index
    %c0_20 = arith.constant 0 : index
    %c0_21 = arith.constant 0 : index
    %38 = vector.load %arg10[%c0_19, %c0_20, %c0_21] : memref<1x1x384xf32, #tpu.memory_space<vmem>>, vector<1x1x384xf32>
    %39 = vector.shape_cast %38 : vector<1x1x384xf32> to vector<1x384xf32>
    %40 = vector.broadcast %39 : vector<1x384xf32> to vector<48x384xf32>
    %41 = arith.addf %37, %40 : vector<48x384xf32>
    %42 = arith.truncf %41 : vector<48x384xf32> to vector<48x384xbf16>
    %43 = tpu.iota {dimensions = array<i32: 1>} : vector<1x24xi32>
    %c17_i32 = arith.constant 17 : i32
    %44 = arith.addi %c17_i32, %1 : i32
    %45 = vector.broadcast %44 : i32 to vector<1x24xi32>
    %46 = arith.cmpi slt, %43, %45 : vector<1x24xi32>
    %cst_22 = arith.constant 0.000000e+00 : f32
    %cst_23 = arith.constant -1.000000e+30 : f32
    %47 = vector.broadcast %cst_22 : f32 to vector<1x24xf32>
    %48 = vector.broadcast %cst_23 : f32 to vector<1x24xf32>
    %49 = arith.select %46, %47, %48 : vector<1x24xi1>, vector<1x24xf32>
    %50 = vector.extract_strided_slice %9 {offsets = [0, 0], sizes = [24, 128], strides = [1, 1]} : vector<48x128xf32> to vector<24x128xf32>
    %c0_24 = arith.constant 0 : index
    %c0_25 = arith.constant 0 : index
    %c0_26 = arith.constant 0 : index
    %51 = vector.load %arg12[%c0_24, %c0_25, %c0_26] : memref<1x1x128xf32, #tpu.memory_space<vmem>>, vector<1x1x128xf32>
    %52 = vector.shape_cast %51 : vector<1x1x128xf32> to vector<1x128xf32>
    %53 = vector.broadcast %52 : vector<1x128xf32> to vector<24x128xf32>
    %54 = arith.addf %50, %53 : vector<24x128xf32>
    %55 = vector.extract_strided_slice %42 {offsets = [0, 0], sizes = [24, 32], strides = [1, 1]} : vector<48x384xbf16> to vector<24x32xbf16>
    %56 = vector.extract_strided_slice %42 {offsets = [0, 128], sizes = [24, 32], strides = [1, 1]} : vector<48x384xbf16> to vector<24x32xbf16>
    %57 = vector.extract_strided_slice %42 {offsets = [0, 256], sizes = [24, 32], strides = [1, 1]} : vector<48x384xbf16> to vector<24x32xbf16>
    %cst_27 = arith.constant dense<0.000000e+00> : vector<24x24xf32>
    %58 = tpu.matmul %55, %56, %cst_27 {dimension_numbers = #tpu.dot_dimension_numbers<[1], [1], [0], [0], [0, 0, 1, 0], [], []>} : vector<24x32xbf16>, vector<24x32xbf16>, vector<24x24xf32> -> vector<24x24xf32>
    %59 = vector.broadcast %49 : vector<1x24xf32> to vector<24x24xf32>
    %60 = arith.addf %58, %59 : vector<24x24xf32>
    %cst_28 = arith.constant dense<0xFF800000> : vector<24xf32>
    %61 = vector.multi_reduction <maximumf>, %60, %cst_28 [1] : vector<24x24xf32> to vector<24xf32>
    %62 = vector.shape_cast %61 : vector<24xf32> to vector<24x1xf32>
    %63 = vector.broadcast %62 : vector<24x1xf32> to vector<24x24xf32>
    %64 = arith.subf %60, %63 : vector<24x24xf32>
    %65 = math.exp %64 : vector<24x24xf32>
    %cst_29 = arith.constant dense<0.000000e+00> : vector<24xf32>
    %66 = vector.multi_reduction <add>, %65, %cst_29 [1] : vector<24x24xf32> to vector<24xf32>
    %67 = vector.shape_cast %66 : vector<24xf32> to vector<24x1xf32>
    %68 = tpu.reciprocal %67 {approx = true} : vector<24x1xf32> -> vector<24x1xf32>
    %69 = vector.broadcast %68 : vector<24x1xf32> to vector<24x24xf32>
    %70 = arith.mulf %65, %69 : vector<24x24xf32>
    %71 = arith.truncf %70 : vector<24x24xf32> to vector<24x24xbf16>
    %cst_30 = arith.constant dense<0.000000e+00> : vector<24x32xf32>
    %72 = tpu.matmul %71, %57, %cst_30 {dimension_numbers = #tpu.dot_dimension_numbers<[1], [0], [0], [1], [0, 0, 1, 1], [], []>} : vector<24x24xbf16>, vector<24x32xbf16>, vector<24x32xf32> -> vector<24x32xf32>
    %73 = arith.truncf %72 : vector<24x32xf32> to vector<24x32xbf16>
    %c0_31 = arith.constant 0 : index
    %c0_32 = arith.constant 0 : index
    %c0_33 = arith.constant 0 : index
    %74 = vector.load %arg11[%c0_31, %c0_32, %c0_33] : memref<1x128x128xbf16, #tpu.memory_space<vmem>>, vector<1x32x128xbf16>
    %75 = vector.shape_cast %74 : vector<1x32x128xbf16> to vector<32x128xbf16>
    %cst_34 = arith.constant dense<0.000000e+00> : vector<24x128xf32>
    %76 = tpu.matmul %73, %75, %cst_34 {dimension_numbers = #tpu.dot_dimension_numbers<[1], [0], [0], [1], [0, 0, 1, 1], [], []>} : vector<24x32xbf16>, vector<32x128xbf16>, vector<24x128xf32> -> vector<24x128xf32>
    %77 = arith.addf %54, %76 : vector<24x128xf32>
    %78 = vector.extract_strided_slice %42 {offsets = [0, 32], sizes = [24, 32], strides = [1, 1]} : vector<48x384xbf16> to vector<24x32xbf16>
    %79 = vector.extract_strided_slice %42 {offsets = [0, 160], sizes = [24, 32], strides = [1, 1]} : vector<48x384xbf16> to vector<24x32xbf16>
    %80 = vector.extract_strided_slice %42 {offsets = [0, 288], sizes = [24, 32], strides = [1, 1]} : vector<48x384xbf16> to vector<24x32xbf16>
    %cst_35 = arith.constant dense<0.000000e+00> : vector<24x24xf32>
    %81 = tpu.matmul %78, %79, %cst_35 {dimension_numbers = #tpu.dot_dimension_numbers<[1], [1], [0], [0], [0, 0, 1, 0], [], []>} : vector<24x32xbf16>, vector<24x32xbf16>, vector<24x24xf32> -> vector<24x24xf32>
    %82 = vector.broadcast %49 : vector<1x24xf32> to vector<24x24xf32>
    %83 = arith.addf %81, %82 : vector<24x24xf32>
    %cst_36 = arith.constant dense<0xFF800000> : vector<24xf32>
    %84 = vector.multi_reduction <maximumf>, %83, %cst_36 [1] : vector<24x24xf32> to vector<24xf32>
    %85 = vector.shape_cast %84 : vector<24xf32> to vector<24x1xf32>
    %86 = vector.broadcast %85 : vector<24x1xf32> to vector<24x24xf32>
    %87 = arith.subf %83, %86 : vector<24x24xf32>
    %88 = math.exp %87 : vector<24x24xf32>
    %cst_37 = arith.constant dense<0.000000e+00> : vector<24xf32>
    %89 = vector.multi_reduction <add>, %88, %cst_37 [1] : vector<24x24xf32> to vector<24xf32>
    %90 = vector.shape_cast %89 : vector<24xf32> to vector<24x1xf32>
    %91 = tpu.reciprocal %90 {approx = true} : vector<24x1xf32> -> vector<24x1xf32>
    %92 = vector.broadcast %91 : vector<24x1xf32> to vector<24x24xf32>
    %93 = arith.mulf %88, %92 : vector<24x24xf32>
    %94 = arith.truncf %93 : vector<24x24xf32> to vector<24x24xbf16>
    %cst_38 = arith.constant dense<0.000000e+00> : vector<24x32xf32>
    %95 = tpu.matmul %94, %80, %cst_38 {dimension_numbers = #tpu.dot_dimension_numbers<[1], [0], [0], [1], [0, 0, 1, 1], [], []>} : vector<24x24xbf16>, vector<24x32xbf16>, vector<24x32xf32> -> vector<24x32xf32>
    %96 = arith.truncf %95 : vector<24x32xf32> to vector<24x32xbf16>
    %c0_39 = arith.constant 0 : index
    %c32 = arith.constant 32 : index
    %c0_40 = arith.constant 0 : index
    %97 = vector.load %arg11[%c0_39, %c32, %c0_40] : memref<1x128x128xbf16, #tpu.memory_space<vmem>>, vector<1x32x128xbf16>
    %98 = vector.shape_cast %97 : vector<1x32x128xbf16> to vector<32x128xbf16>
    %cst_41 = arith.constant dense<0.000000e+00> : vector<24x128xf32>
    %99 = tpu.matmul %96, %98, %cst_41 {dimension_numbers = #tpu.dot_dimension_numbers<[1], [0], [0], [1], [0, 0, 1, 1], [], []>} : vector<24x32xbf16>, vector<32x128xbf16>, vector<24x128xf32> -> vector<24x128xf32>
    %100 = arith.addf %77, %99 : vector<24x128xf32>
    %101 = vector.extract_strided_slice %42 {offsets = [0, 64], sizes = [24, 32], strides = [1, 1]} : vector<48x384xbf16> to vector<24x32xbf16>
    %102 = vector.extract_strided_slice %42 {offsets = [0, 192], sizes = [24, 32], strides = [1, 1]} : vector<48x384xbf16> to vector<24x32xbf16>
    %103 = vector.extract_strided_slice %42 {offsets = [0, 320], sizes = [24, 32], strides = [1, 1]} : vector<48x384xbf16> to vector<24x32xbf16>
    %cst_42 = arith.constant dense<0.000000e+00> : vector<24x24xf32>
    %104 = tpu.matmul %101, %102, %cst_42 {dimension_numbers = #tpu.dot_dimension_numbers<[1], [1], [0], [0], [0, 0, 1, 0], [], []>} : vector<24x32xbf16>, vector<24x32xbf16>, vector<24x24xf32> -> vector<24x24xf32>
    %105 = vector.broadcast %49 : vector<1x24xf32> to vector<24x24xf32>
    %106 = arith.addf %104, %105 : vector<24x24xf32>
    %cst_43 = arith.constant dense<0xFF800000> : vector<24xf32>
    %107 = vector.multi_reduction <maximumf>, %106, %cst_43 [1] : vector<24x24xf32> to vector<24xf32>
    %108 = vector.shape_cast %107 : vector<24xf32> to vector<24x1xf32>
    %109 = vector.broadcast %108 : vector<24x1xf32> to vector<24x24xf32>
    %110 = arith.subf %106, %109 : vector<24x24xf32>
    %111 = math.exp %110 : vector<24x24xf32>
    %cst_44 = arith.constant dense<0.000000e+00> : vector<24xf32>
    %112 = vector.multi_reduction <add>, %111, %cst_44 [1] : vector<24x24xf32> to vector<24xf32>
    %113 = vector.shape_cast %112 : vector<24xf32> to vector<24x1xf32>
    %114 = tpu.reciprocal %113 {approx = true} : vector<24x1xf32> -> vector<24x1xf32>
    %115 = vector.broadcast %114 : vector<24x1xf32> to vector<24x24xf32>
    %116 = arith.mulf %111, %115 : vector<24x24xf32>
    %117 = arith.truncf %116 : vector<24x24xf32> to vector<24x24xbf16>
    %cst_45 = arith.constant dense<0.000000e+00> : vector<24x32xf32>
    %118 = tpu.matmul %117, %103, %cst_45 {dimension_numbers = #tpu.dot_dimension_numbers<[1], [0], [0], [1], [0, 0, 1, 1], [], []>} : vector<24x24xbf16>, vector<24x32xbf16>, vector<24x32xf32> -> vector<24x32xf32>
    %119 = arith.truncf %118 : vector<24x32xf32> to vector<24x32xbf16>
    %c0_46 = arith.constant 0 : index
    %c64 = arith.constant 64 : index
    %c0_47 = arith.constant 0 : index
    %120 = vector.load %arg11[%c0_46, %c64, %c0_47] : memref<1x128x128xbf16, #tpu.memory_space<vmem>>, vector<1x32x128xbf16>
    %121 = vector.shape_cast %120 : vector<1x32x128xbf16> to vector<32x128xbf16>
    %cst_48 = arith.constant dense<0.000000e+00> : vector<24x128xf32>
    %122 = tpu.matmul %119, %121, %cst_48 {dimension_numbers = #tpu.dot_dimension_numbers<[1], [0], [0], [1], [0, 0, 1, 1], [], []>} : vector<24x32xbf16>, vector<32x128xbf16>, vector<24x128xf32> -> vector<24x128xf32>
    %123 = arith.addf %100, %122 : vector<24x128xf32>
    %124 = vector.extract_strided_slice %42 {offsets = [0, 96], sizes = [24, 32], strides = [1, 1]} : vector<48x384xbf16> to vector<24x32xbf16>
    %125 = vector.extract_strided_slice %42 {offsets = [0, 224], sizes = [24, 32], strides = [1, 1]} : vector<48x384xbf16> to vector<24x32xbf16>
    %126 = vector.extract_strided_slice %42 {offsets = [0, 352], sizes = [24, 32], strides = [1, 1]} : vector<48x384xbf16> to vector<24x32xbf16>
    %cst_49 = arith.constant dense<0.000000e+00> : vector<24x24xf32>
    %127 = tpu.matmul %124, %125, %cst_49 {dimension_numbers = #tpu.dot_dimension_numbers<[1], [1], [0], [0], [0, 0, 1, 0], [], []>} : vector<24x32xbf16>, vector<24x32xbf16>, vector<24x24xf32> -> vector<24x24xf32>
    %128 = vector.broadcast %49 : vector<1x24xf32> to vector<24x24xf32>
    %129 = arith.addf %127, %128 : vector<24x24xf32>
    %cst_50 = arith.constant dense<0xFF800000> : vector<24xf32>
    %130 = vector.multi_reduction <maximumf>, %129, %cst_50 [1] : vector<24x24xf32> to vector<24xf32>
    %131 = vector.shape_cast %130 : vector<24xf32> to vector<24x1xf32>
    %132 = vector.broadcast %131 : vector<24x1xf32> to vector<24x24xf32>
    %133 = arith.subf %129, %132 : vector<24x24xf32>
    %134 = math.exp %133 : vector<24x24xf32>
    %cst_51 = arith.constant dense<0.000000e+00> : vector<24xf32>
    %135 = vector.multi_reduction <add>, %134, %cst_51 [1] : vector<24x24xf32> to vector<24xf32>
    %136 = vector.shape_cast %135 : vector<24xf32> to vector<24x1xf32>
    %137 = tpu.reciprocal %136 {approx = true} : vector<24x1xf32> -> vector<24x1xf32>
    %138 = vector.broadcast %137 : vector<24x1xf32> to vector<24x24xf32>
    %139 = arith.mulf %134, %138 : vector<24x24xf32>
    %140 = arith.truncf %139 : vector<24x24xf32> to vector<24x24xbf16>
    %cst_52 = arith.constant dense<0.000000e+00> : vector<24x32xf32>
    %141 = tpu.matmul %140, %126, %cst_52 {dimension_numbers = #tpu.dot_dimension_numbers<[1], [0], [0], [1], [0, 0, 1, 1], [], []>} : vector<24x24xbf16>, vector<24x32xbf16>, vector<24x32xf32> -> vector<24x32xf32>
    %142 = arith.truncf %141 : vector<24x32xf32> to vector<24x32xbf16>
    %c0_53 = arith.constant 0 : index
    %c96 = arith.constant 96 : index
    %c0_54 = arith.constant 0 : index
    %143 = vector.load %arg11[%c0_53, %c96, %c0_54] : memref<1x128x128xbf16, #tpu.memory_space<vmem>>, vector<1x32x128xbf16>
    %144 = vector.shape_cast %143 : vector<1x32x128xbf16> to vector<32x128xbf16>
    %cst_55 = arith.constant dense<0.000000e+00> : vector<24x128xf32>
    %145 = tpu.matmul %142, %144, %cst_55 {dimension_numbers = #tpu.dot_dimension_numbers<[1], [0], [0], [1], [0, 0, 1, 1], [], []>} : vector<24x32xbf16>, vector<32x128xbf16>, vector<24x128xf32> -> vector<24x128xf32>
    %146 = arith.addf %123, %145 : vector<24x128xf32>
    %147 = vector.extract_strided_slice %9 {offsets = [24, 0], sizes = [24, 128], strides = [1, 1]} : vector<48x128xf32> to vector<24x128xf32>
    %c0_56 = arith.constant 0 : index
    %c0_57 = arith.constant 0 : index
    %c0_58 = arith.constant 0 : index
    %148 = vector.load %arg12[%c0_56, %c0_57, %c0_58] : memref<1x1x128xf32, #tpu.memory_space<vmem>>, vector<1x1x128xf32>
    %149 = vector.shape_cast %148 : vector<1x1x128xf32> to vector<1x128xf32>
    %150 = vector.broadcast %149 : vector<1x128xf32> to vector<24x128xf32>
    %151 = arith.addf %147, %150 : vector<24x128xf32>
    %152 = vector.extract_strided_slice %42 {offsets = [24, 0], sizes = [24, 32], strides = [1, 1]} : vector<48x384xbf16> to vector<24x32xbf16>
    %153 = vector.extract_strided_slice %42 {offsets = [24, 128], sizes = [24, 32], strides = [1, 1]} : vector<48x384xbf16> to vector<24x32xbf16>
    %154 = vector.extract_strided_slice %42 {offsets = [24, 256], sizes = [24, 32], strides = [1, 1]} : vector<48x384xbf16> to vector<24x32xbf16>
    %cst_59 = arith.constant dense<0.000000e+00> : vector<24x24xf32>
    %155 = tpu.matmul %152, %153, %cst_59 {dimension_numbers = #tpu.dot_dimension_numbers<[1], [1], [0], [0], [0, 0, 1, 0], [], []>} : vector<24x32xbf16>, vector<24x32xbf16>, vector<24x24xf32> -> vector<24x24xf32>
    %156 = vector.broadcast %49 : vector<1x24xf32> to vector<24x24xf32>
    %157 = arith.addf %155, %156 : vector<24x24xf32>
    %cst_60 = arith.constant dense<0xFF800000> : vector<24xf32>
    %158 = vector.multi_reduction <maximumf>, %157, %cst_60 [1] : vector<24x24xf32> to vector<24xf32>
    %159 = vector.shape_cast %158 : vector<24xf32> to vector<24x1xf32>
    %160 = vector.broadcast %159 : vector<24x1xf32> to vector<24x24xf32>
    %161 = arith.subf %157, %160 : vector<24x24xf32>
    %162 = math.exp %161 : vector<24x24xf32>
    %cst_61 = arith.constant dense<0.000000e+00> : vector<24xf32>
    %163 = vector.multi_reduction <add>, %162, %cst_61 [1] : vector<24x24xf32> to vector<24xf32>
    %164 = vector.shape_cast %163 : vector<24xf32> to vector<24x1xf32>
    %165 = tpu.reciprocal %164 {approx = true} : vector<24x1xf32> -> vector<24x1xf32>
    %166 = vector.broadcast %165 : vector<24x1xf32> to vector<24x24xf32>
    %167 = arith.mulf %162, %166 : vector<24x24xf32>
    %168 = arith.truncf %167 : vector<24x24xf32> to vector<24x24xbf16>
    %cst_62 = arith.constant dense<0.000000e+00> : vector<24x32xf32>
    %169 = tpu.matmul %168, %154, %cst_62 {dimension_numbers = #tpu.dot_dimension_numbers<[1], [0], [0], [1], [0, 0, 1, 1], [], []>} : vector<24x24xbf16>, vector<24x32xbf16>, vector<24x32xf32> -> vector<24x32xf32>
    %170 = arith.truncf %169 : vector<24x32xf32> to vector<24x32xbf16>
    %c0_63 = arith.constant 0 : index
    %c0_64 = arith.constant 0 : index
    %c0_65 = arith.constant 0 : index
    %171 = vector.load %arg11[%c0_63, %c0_64, %c0_65] : memref<1x128x128xbf16, #tpu.memory_space<vmem>>, vector<1x32x128xbf16>
    %172 = vector.shape_cast %171 : vector<1x32x128xbf16> to vector<32x128xbf16>
    %cst_66 = arith.constant dense<0.000000e+00> : vector<24x128xf32>
    %173 = tpu.matmul %170, %172, %cst_66 {dimension_numbers = #tpu.dot_dimension_numbers<[1], [0], [0], [1], [0, 0, 1, 1], [], []>} : vector<24x32xbf16>, vector<32x128xbf16>, vector<24x128xf32> -> vector<24x128xf32>
    %174 = arith.addf %151, %173 : vector<24x128xf32>
    %175 = vector.extract_strided_slice %42 {offsets = [24, 32], sizes = [24, 32], strides = [1, 1]} : vector<48x384xbf16> to vector<24x32xbf16>
    %176 = vector.extract_strided_slice %42 {offsets = [24, 160], sizes = [24, 32], strides = [1, 1]} : vector<48x384xbf16> to vector<24x32xbf16>
    %177 = vector.extract_strided_slice %42 {offsets = [24, 288], sizes = [24, 32], strides = [1, 1]} : vector<48x384xbf16> to vector<24x32xbf16>
    %cst_67 = arith.constant dense<0.000000e+00> : vector<24x24xf32>
    %178 = tpu.matmul %175, %176, %cst_67 {dimension_numbers = #tpu.dot_dimension_numbers<[1], [1], [0], [0], [0, 0, 1, 0], [], []>} : vector<24x32xbf16>, vector<24x32xbf16>, vector<24x24xf32> -> vector<24x24xf32>
    %179 = vector.broadcast %49 : vector<1x24xf32> to vector<24x24xf32>
    %180 = arith.addf %178, %179 : vector<24x24xf32>
    %cst_68 = arith.constant dense<0xFF800000> : vector<24xf32>
    %181 = vector.multi_reduction <maximumf>, %180, %cst_68 [1] : vector<24x24xf32> to vector<24xf32>
    %182 = vector.shape_cast %181 : vector<24xf32> to vector<24x1xf32>
    %183 = vector.broadcast %182 : vector<24x1xf32> to vector<24x24xf32>
    %184 = arith.subf %180, %183 : vector<24x24xf32>
    %185 = math.exp %184 : vector<24x24xf32>
    %cst_69 = arith.constant dense<0.000000e+00> : vector<24xf32>
    %186 = vector.multi_reduction <add>, %185, %cst_69 [1] : vector<24x24xf32> to vector<24xf32>
    %187 = vector.shape_cast %186 : vector<24xf32> to vector<24x1xf32>
    %188 = tpu.reciprocal %187 {approx = true} : vector<24x1xf32> -> vector<24x1xf32>
    %189 = vector.broadcast %188 : vector<24x1xf32> to vector<24x24xf32>
    %190 = arith.mulf %185, %189 : vector<24x24xf32>
    %191 = arith.truncf %190 : vector<24x24xf32> to vector<24x24xbf16>
    %cst_70 = arith.constant dense<0.000000e+00> : vector<24x32xf32>
    %192 = tpu.matmul %191, %177, %cst_70 {dimension_numbers = #tpu.dot_dimension_numbers<[1], [0], [0], [1], [0, 0, 1, 1], [], []>} : vector<24x24xbf16>, vector<24x32xbf16>, vector<24x32xf32> -> vector<24x32xf32>
    %193 = arith.truncf %192 : vector<24x32xf32> to vector<24x32xbf16>
    %c0_71 = arith.constant 0 : index
    %c32_72 = arith.constant 32 : index
    %c0_73 = arith.constant 0 : index
    %194 = vector.load %arg11[%c0_71, %c32_72, %c0_73] : memref<1x128x128xbf16, #tpu.memory_space<vmem>>, vector<1x32x128xbf16>
    %195 = vector.shape_cast %194 : vector<1x32x128xbf16> to vector<32x128xbf16>
    %cst_74 = arith.constant dense<0.000000e+00> : vector<24x128xf32>
    %196 = tpu.matmul %193, %195, %cst_74 {dimension_numbers = #tpu.dot_dimension_numbers<[1], [0], [0], [1], [0, 0, 1, 1], [], []>} : vector<24x32xbf16>, vector<32x128xbf16>, vector<24x128xf32> -> vector<24x128xf32>
    %197 = arith.addf %174, %196 : vector<24x128xf32>
    %198 = vector.extract_strided_slice %42 {offsets = [24, 64], sizes = [24, 32], strides = [1, 1]} : vector<48x384xbf16> to vector<24x32xbf16>
    %199 = vector.extract_strided_slice %42 {offsets = [24, 192], sizes = [24, 32], strides = [1, 1]} : vector<48x384xbf16> to vector<24x32xbf16>
    %200 = vector.extract_strided_slice %42 {offsets = [24, 320], sizes = [24, 32], strides = [1, 1]} : vector<48x384xbf16> to vector<24x32xbf16>
    %cst_75 = arith.constant dense<0.000000e+00> : vector<24x24xf32>
    %201 = tpu.matmul %198, %199, %cst_75 {dimension_numbers = #tpu.dot_dimension_numbers<[1], [1], [0], [0], [0, 0, 1, 0], [], []>} : vector<24x32xbf16>, vector<24x32xbf16>, vector<24x24xf32> -> vector<24x24xf32>
    %202 = vector.broadcast %49 : vector<1x24xf32> to vector<24x24xf32>
    %203 = arith.addf %201, %202 : vector<24x24xf32>
    %cst_76 = arith.constant dense<0xFF800000> : vector<24xf32>
    %204 = vector.multi_reduction <maximumf>, %203, %cst_76 [1] : vector<24x24xf32> to vector<24xf32>
    %205 = vector.shape_cast %204 : vector<24xf32> to vector<24x1xf32>
    %206 = vector.broadcast %205 : vector<24x1xf32> to vector<24x24xf32>
    %207 = arith.subf %203, %206 : vector<24x24xf32>
    %208 = math.exp %207 : vector<24x24xf32>
    %cst_77 = arith.constant dense<0.000000e+00> : vector<24xf32>
    %209 = vector.multi_reduction <add>, %208, %cst_77 [1] : vector<24x24xf32> to vector<24xf32>
    %210 = vector.shape_cast %209 : vector<24xf32> to vector<24x1xf32>
    %211 = tpu.reciprocal %210 {approx = true} : vector<24x1xf32> -> vector<24x1xf32>
    %212 = vector.broadcast %211 : vector<24x1xf32> to vector<24x24xf32>
    %213 = arith.mulf %208, %212 : vector<24x24xf32>
    %214 = arith.truncf %213 : vector<24x24xf32> to vector<24x24xbf16>
    %cst_78 = arith.constant dense<0.000000e+00> : vector<24x32xf32>
    %215 = tpu.matmul %214, %200, %cst_78 {dimension_numbers = #tpu.dot_dimension_numbers<[1], [0], [0], [1], [0, 0, 1, 1], [], []>} : vector<24x24xbf16>, vector<24x32xbf16>, vector<24x32xf32> -> vector<24x32xf32>
    %216 = arith.truncf %215 : vector<24x32xf32> to vector<24x32xbf16>
    %c0_79 = arith.constant 0 : index
    %c64_80 = arith.constant 64 : index
    %c0_81 = arith.constant 0 : index
    %217 = vector.load %arg11[%c0_79, %c64_80, %c0_81] : memref<1x128x128xbf16, #tpu.memory_space<vmem>>, vector<1x32x128xbf16>
    %218 = vector.shape_cast %217 : vector<1x32x128xbf16> to vector<32x128xbf16>
    %cst_82 = arith.constant dense<0.000000e+00> : vector<24x128xf32>
    %219 = tpu.matmul %216, %218, %cst_82 {dimension_numbers = #tpu.dot_dimension_numbers<[1], [0], [0], [1], [0, 0, 1, 1], [], []>} : vector<24x32xbf16>, vector<32x128xbf16>, vector<24x128xf32> -> vector<24x128xf32>
    %220 = arith.addf %197, %219 : vector<24x128xf32>
    %221 = vector.extract_strided_slice %42 {offsets = [24, 96], sizes = [24, 32], strides = [1, 1]} : vector<48x384xbf16> to vector<24x32xbf16>
    %222 = vector.extract_strided_slice %42 {offsets = [24, 224], sizes = [24, 32], strides = [1, 1]} : vector<48x384xbf16> to vector<24x32xbf16>
    %223 = vector.extract_strided_slice %42 {offsets = [24, 352], sizes = [24, 32], strides = [1, 1]} : vector<48x384xbf16> to vector<24x32xbf16>
    %cst_83 = arith.constant dense<0.000000e+00> : vector<24x24xf32>
    %224 = tpu.matmul %221, %222, %cst_83 {dimension_numbers = #tpu.dot_dimension_numbers<[1], [1], [0], [0], [0, 0, 1, 0], [], []>} : vector<24x32xbf16>, vector<24x32xbf16>, vector<24x24xf32> -> vector<24x24xf32>
    %225 = vector.broadcast %49 : vector<1x24xf32> to vector<24x24xf32>
    %226 = arith.addf %224, %225 : vector<24x24xf32>
    %cst_84 = arith.constant dense<0xFF800000> : vector<24xf32>
    %227 = vector.multi_reduction <maximumf>, %226, %cst_84 [1] : vector<24x24xf32> to vector<24xf32>
    %228 = vector.shape_cast %227 : vector<24xf32> to vector<24x1xf32>
    %229 = vector.broadcast %228 : vector<24x1xf32> to vector<24x24xf32>
    %230 = arith.subf %226, %229 : vector<24x24xf32>
    %231 = math.exp %230 : vector<24x24xf32>
    %cst_85 = arith.constant dense<0.000000e+00> : vector<24xf32>
    %232 = vector.multi_reduction <add>, %231, %cst_85 [1] : vector<24x24xf32> to vector<24xf32>
    %233 = vector.shape_cast %232 : vector<24xf32> to vector<24x1xf32>
    %234 = tpu.reciprocal %233 {approx = true} : vector<24x1xf32> -> vector<24x1xf32>
    %235 = vector.broadcast %234 : vector<24x1xf32> to vector<24x24xf32>
    %236 = arith.mulf %231, %235 : vector<24x24xf32>
    %237 = arith.truncf %236 : vector<24x24xf32> to vector<24x24xbf16>
    %cst_86 = arith.constant dense<0.000000e+00> : vector<24x32xf32>
    %238 = tpu.matmul %237, %223, %cst_86 {dimension_numbers = #tpu.dot_dimension_numbers<[1], [0], [0], [1], [0, 0, 1, 1], [], []>} : vector<24x24xbf16>, vector<24x32xbf16>, vector<24x32xf32> -> vector<24x32xf32>
    %239 = arith.truncf %238 : vector<24x32xf32> to vector<24x32xbf16>
    %c0_87 = arith.constant 0 : index
    %c96_88 = arith.constant 96 : index
    %c0_89 = arith.constant 0 : index
    %240 = vector.load %arg11[%c0_87, %c96_88, %c0_89] : memref<1x128x128xbf16, #tpu.memory_space<vmem>>, vector<1x32x128xbf16>
    %241 = vector.shape_cast %240 : vector<1x32x128xbf16> to vector<32x128xbf16>
    %cst_90 = arith.constant dense<0.000000e+00> : vector<24x128xf32>
    %242 = tpu.matmul %239, %241, %cst_90 {dimension_numbers = #tpu.dot_dimension_numbers<[1], [0], [0], [1], [0, 0, 1, 1], [], []>} : vector<24x32xbf16>, vector<32x128xbf16>, vector<24x128xf32> -> vector<24x128xf32>
    %243 = arith.addf %220, %242 : vector<24x128xf32>
    %244 = tpu.concatenate %146, %243 in 0 : vector<24x128xf32>, vector<24x128xf32> -> vector<48x128xf32>
    %c0_91 = arith.constant 0 : index
    %c0_92 = arith.constant 0 : index
    %c0_93 = arith.constant 0 : index
    %245 = vector.load %arg13[%c0_91, %c0_92, %c0_93] : memref<1x1x128xf32, #tpu.memory_space<vmem>>, vector<1x1x128xf32>
    %246 = vector.shape_cast %245 : vector<1x1x128xf32> to vector<1x128xf32>
    %c0_94 = arith.constant 0 : index
    %c0_95 = arith.constant 0 : index
    %c0_96 = arith.constant 0 : index
    %247 = vector.load %arg14[%c0_94, %c0_95, %c0_96] : memref<1x1x128xf32, #tpu.memory_space<vmem>>, vector<1x1x128xf32>
    %248 = vector.shape_cast %247 : vector<1x1x128xf32> to vector<1x128xf32>
    %cst_97 = arith.constant dense<0.000000e+00> : vector<48xf32>
    %249 = vector.multi_reduction <add>, %244, %cst_97 [1] : vector<48x128xf32> to vector<48xf32>
    %250 = vector.shape_cast %249 : vector<48xf32> to vector<48x1xf32>
    %cst_98 = arith.constant 1.280000e+02 : f32
    %251 = vector.broadcast %cst_98 : f32 to vector<48x1xf32>
    %252 = arith.divf %250, %251 : vector<48x1xf32>
    %253 = vector.broadcast %252 : vector<48x1xf32> to vector<48x128xf32>
    %254 = arith.subf %244, %253 : vector<48x128xf32>
    %255 = arith.mulf %254, %254 : vector<48x128xf32>
    %cst_99 = arith.constant dense<0.000000e+00> : vector<48xf32>
    %256 = vector.multi_reduction <add>, %255, %cst_99 [1] : vector<48x128xf32> to vector<48xf32>
    %257 = vector.shape_cast %256 : vector<48xf32> to vector<48x1xf32>
    %cst_100 = arith.constant 1.280000e+02 : f32
    %258 = vector.broadcast %cst_100 : f32 to vector<48x1xf32>
    %259 = arith.divf %257, %258 : vector<48x1xf32>
    %cst_101 = arith.constant 9.99999974E-6 : f32
    %260 = vector.broadcast %cst_101 : f32 to vector<48x1xf32>
    %261 = arith.addf %259, %260 : vector<48x1xf32>
    %262 = math.rsqrt %261 : vector<48x1xf32>
    %263 = vector.broadcast %262 : vector<48x1xf32> to vector<48x128xf32>
    %264 = arith.mulf %254, %263 : vector<48x128xf32>
    %265 = vector.broadcast %246 : vector<1x128xf32> to vector<48x128xf32>
    %266 = arith.mulf %264, %265 : vector<48x128xf32>
    %267 = vector.broadcast %248 : vector<1x128xf32> to vector<48x128xf32>
    %268 = arith.addf %266, %267 : vector<48x128xf32>
    %269 = arith.truncf %268 : vector<48x128xf32> to vector<48x128xbf16>
    %c0_102 = arith.constant 0 : index
    %c0_103 = arith.constant 0 : index
    %c0_104 = arith.constant 0 : index
    %270 = vector.load %arg18[%c0_102, %c0_103, %c0_104] : memref<1x1x128xf32, #tpu.memory_space<vmem>>, vector<1x1x128xf32>
    %271 = vector.shape_cast %270 : vector<1x1x128xf32> to vector<1x128xf32>
    %272 = vector.broadcast %271 : vector<1x128xf32> to vector<48x128xf32>
    %273 = arith.addf %244, %272 : vector<48x128xf32>
    %c0_i32_105 = arith.constant 0 : i32
    %c0_106 = arith.constant 0 : index
    %274 = arith.index_cast %c0_i32_105 : i32 to index
    %c0_107 = arith.constant 0 : index
    %c0_108 = arith.constant 0 : index
    %275 = vector.load %arg15[%c0_106, %274, %c0_107, %c0_108] : memref<1x1x128x512xbf16, #tpu.memory_space<vmem>>, vector<1x1x128x512xbf16>
    %276 = vector.shape_cast %275 : vector<1x1x128x512xbf16> to vector<128x512xbf16>
    %cst_109 = arith.constant dense<0.000000e+00> : vector<48x512xf32>
    %277 = tpu.matmul %269, %276, %cst_109 {dimension_numbers = #tpu.dot_dimension_numbers<[1], [0], [0], [1], [0, 0, 1, 1], [], []>} : vector<48x128xbf16>, vector<128x512xbf16>, vector<48x512xf32> -> vector<48x512xf32>
    %c0_110 = arith.constant 0 : index
    %278 = arith.index_cast %c0_i32_105 : i32 to index
    %c0_111 = arith.constant 0 : index
    %c0_112 = arith.constant 0 : index
    %279 = vector.load %arg16[%c0_110, %278, %c0_111, %c0_112] : memref<1x1x1x512xf32, #tpu.memory_space<vmem>>, vector<1x1x1x512xf32>
    %280 = vector.shape_cast %279 : vector<1x1x1x512xf32> to vector<1x512xf32>
    %281 = vector.broadcast %280 : vector<1x512xf32> to vector<48x512xf32>
    %282 = arith.addf %277, %281 : vector<48x512xf32>
    %cst_113 = arith.constant 1.702000e+00 : f32
    %283 = vector.broadcast %cst_113 : f32 to vector<48x512xf32>
    %284 = arith.mulf %283, %282 : vector<48x512xf32>
    %285 = arith.negf %284 : vector<48x512xf32>
    %286 = math.exp %285 : vector<48x512xf32>
    %cst_114 = arith.constant 1.000000e+00 : f32
    %287 = vector.broadcast %cst_114 : f32 to vector<48x512xf32>
    %288 = arith.addf %287, %286 : vector<48x512xf32>
    %289 = arith.divf %287, %288 : vector<48x512xf32>
    %290 = arith.mulf %282, %289 : vector<48x512xf32>
    %291 = arith.truncf %290 : vector<48x512xf32> to vector<48x512xbf16>
    %c0_115 = arith.constant 0 : index
    %292 = arith.index_cast %c0_i32_105 : i32 to index
    %c0_116 = arith.constant 0 : index
    %c0_117 = arith.constant 0 : index
    %293 = vector.load %arg17[%c0_115, %292, %c0_116, %c0_117] : memref<1x1x512x128xbf16, #tpu.memory_space<vmem>>, vector<1x1x512x128xbf16>
    %294 = vector.shape_cast %293 : vector<1x1x512x128xbf16> to vector<512x128xbf16>
    %cst_118 = arith.constant dense<0.000000e+00> : vector<48x128xf32>
    %295 = tpu.matmul %291, %294, %cst_118 {dimension_numbers = #tpu.dot_dimension_numbers<[1], [0], [0], [1], [0, 0, 1, 1], [], []>} : vector<48x512xbf16>, vector<512x128xbf16>, vector<48x128xf32> -> vector<48x128xf32>
    %296 = arith.addf %273, %295 : vector<48x128xf32>
    %c1_i32 = arith.constant 1 : i32
    %297 = vector.shape_cast %296 : vector<48x128xf32> to vector<2x24x128xf32>
    %c0_119 = arith.constant 0 : index
    %c0_120 = arith.constant 0 : index
    %c0_121 = arith.constant 0 : index
    %298 = vector.load %arg19[%c0_119, %c0_120, %c0_121] : memref<2x24x128xf32, #tpu.memory_space<vmem>>, vector<2x24x128xf32>
    tpu.vector_store %arg19[%c0_119, %c0_120, %c0_121], %297 {strides = array<i32>} : memref<2x24x128xf32, #tpu.memory_space<vmem>>, vector<2x24x128xf32>,
    return
  }
  func.func @transform_0(%arg0: i32, %arg1: i32, %arg2: memref<12xi32, #tpu.memory_space<smem>>) -> (i32, i32, i32) {
    %c0_i32 = arith.constant 0 : i32
    %c0_i32_0 = arith.constant 0 : i32
    %c0_i32_1 = arith.constant 0 : i32
    return %arg0, %c0_i32, %c0_i32_0 : i32, i32, i32
  }
  func.func @transform_1(%arg0: i32, %arg1: i32, %arg2: memref<12xi32, #tpu.memory_space<smem>>) -> (i32, i32, i32, i32) {
    %c0_i32 = arith.constant 0 : i32
    %c0_i32_0 = arith.constant 0 : i32
    %c0_i32_1 = arith.constant 0 : i32
    return %arg1, %arg0, %c0_i32, %c0_i32_0 : i32, i32, i32, i32
  }
  func.func @transform_2(%arg0: i32, %arg1: i32, %arg2: memref<12xi32, #tpu.memory_space<smem>>) -> (i32, i32) {
    %c0_i32 = arith.constant 0 : i32
    %c0_i32_0 = arith.constant 0 : i32
    %c0_i32_1 = arith.constant 0 : i32
    return %c0_i32, %c0_i32_0 : i32, i32
  }
  func.func @transform_3(%arg0: i32, %arg1: i32, %arg2: memref<12xi32, #tpu.memory_space<smem>>) -> (i32, i32) {
    %c0_i32 = arith.constant 0 : i32
    %c0_i32_0 = arith.constant 0 : i32
    %c0_i32_1 = arith.constant 0 : i32
    return %c0_i32, %c0_i32_0 : i32, i32
  }
  func.func @transform_4(%arg0: i32, %arg1: i32, %arg2: memref<12xi32, #tpu.memory_space<smem>>) -> (i32, i32, i32) {
    %c0_i32 = arith.constant 0 : i32
    %c0_i32_0 = arith.constant 0 : i32
    %c0_i32_1 = arith.constant 0 : i32
    return %arg1, %c0_i32, %c0_i32_0 : i32, i32, i32
  }
  func.func @transform_5(%arg0: i32, %arg1: i32, %arg2: memref<12xi32, #tpu.memory_space<smem>>) -> (i32, i32, i32) {
    %c0_i32 = arith.constant 0 : i32
    %c0_i32_0 = arith.constant 0 : i32
    %c0_i32_1 = arith.constant 0 : i32
    return %arg1, %c0_i32, %c0_i32_0 : i32, i32, i32
  }
  func.func @transform_6(%arg0: i32, %arg1: i32, %arg2: memref<12xi32, #tpu.memory_space<smem>>) -> (i32, i32, i32) {
    %c0_i32 = arith.constant 0 : i32
    %c0_i32_0 = arith.constant 0 : i32
    %c0_i32_1 = arith.constant 0 : i32
    return %arg1, %c0_i32, %c0_i32_0 : i32, i32, i32
  }
  func.func @transform_7(%arg0: i32, %arg1: i32, %arg2: memref<12xi32, #tpu.memory_space<smem>>) -> (i32, i32, i32) {
    %c0_i32 = arith.constant 0 : i32
    %c0_i32_0 = arith.constant 0 : i32
    %c0_i32_1 = arith.constant 0 : i32
    return %arg1, %c0_i32, %c0_i32_0 : i32, i32, i32
  }
  func.func @transform_8(%arg0: i32, %arg1: i32, %arg2: memref<12xi32, #tpu.memory_space<smem>>) -> (i32, i32, i32) {
    %c0_i32 = arith.constant 0 : i32
    %c0_i32_0 = arith.constant 0 : i32
    %c0_i32_1 = arith.constant 0 : i32
    return %arg1, %c0_i32, %c0_i32_0 : i32, i32, i32
  }
  func.func @transform_9(%arg0: i32, %arg1: i32, %arg2: memref<12xi32, #tpu.memory_space<smem>>) -> (i32, i32, i32) {
    %c0_i32 = arith.constant 0 : i32
    %c0_i32_0 = arith.constant 0 : i32
    %c0_i32_1 = arith.constant 0 : i32
    return %arg1, %c0_i32, %c0_i32_0 : i32, i32, i32
  }
  func.func @transform_10(%arg0: i32, %arg1: i32, %arg2: memref<12xi32, #tpu.memory_space<smem>>) -> (i32, i32, i32) {
    %c0_i32 = arith.constant 0 : i32
    %c0_i32_0 = arith.constant 0 : i32
    %c0_i32_1 = arith.constant 0 : i32
    return %arg1, %c0_i32, %c0_i32_0 : i32, i32, i32
  }
  func.func @transform_11(%arg0: i32, %arg1: i32, %arg2: memref<12xi32, #tpu.memory_space<smem>>) -> (i32, i32, i32) {
    %c0_i32 = arith.constant 0 : i32
    %c0_i32_0 = arith.constant 0 : i32
    %c0_i32_1 = arith.constant 0 : i32
    return %arg1, %c0_i32, %c0_i32_0 : i32, i32, i32
  }
  func.func @transform_12(%arg0: i32, %arg1: i32, %arg2: memref<12xi32, #tpu.memory_space<smem>>) -> (i32, i32, i32, i32) {
    %c0_i32 = arith.constant 0 : i32
    %c0_i32_0 = arith.constant 0 : i32
    %c0_i32_1 = arith.constant 0 : i32
    %c0_i32_2 = arith.constant 0 : i32
    return %arg1, %c0_i32, %c0_i32_0, %c0_i32_1 : i32, i32, i32, i32
  }
  func.func @transform_13(%arg0: i32, %arg1: i32, %arg2: memref<12xi32, #tpu.memory_space<smem>>) -> (i32, i32, i32, i32) {
    %c0_i32 = arith.constant 0 : i32
    %c0_i32_0 = arith.constant 0 : i32
    %c0_i32_1 = arith.constant 0 : i32
    %c0_i32_2 = arith.constant 0 : i32
    return %arg1, %c0_i32, %c0_i32_0, %c0_i32_1 : i32, i32, i32, i32
  }
  func.func @transform_14(%arg0: i32, %arg1: i32, %arg2: memref<12xi32, #tpu.memory_space<smem>>) -> (i32, i32, i32, i32) {
    %c0_i32 = arith.constant 0 : i32
    %c0_i32_0 = arith.constant 0 : i32
    %c0_i32_1 = arith.constant 0 : i32
    %c0_i32_2 = arith.constant 0 : i32
    return %arg1, %c0_i32, %c0_i32_0, %c0_i32_1 : i32, i32, i32, i32
  }
  func.func @transform_15(%arg0: i32, %arg1: i32, %arg2: memref<12xi32, #tpu.memory_space<smem>>) -> (i32, i32, i32) {
    %c0_i32 = arith.constant 0 : i32
    %c0_i32_0 = arith.constant 0 : i32
    %c0_i32_1 = arith.constant 0 : i32
    return %arg1, %c0_i32, %c0_i32_0 : i32, i32, i32
  }
  func.func @transform_16(%arg0: i32, %arg1: i32, %arg2: memref<12xi32, #tpu.memory_space<smem>>) -> (i32, i32, i32) {
    %c0_i32 = arith.constant 0 : i32
    %c0_i32_0 = arith.constant 0 : i32
    %c0_i32_1 = arith.constant 0 : i32
    return %arg0, %c0_i32, %c0_i32_0 : i32, i32, i32
  }
}

</mosaic_0001>

<llo_original>
// kernel: clip_mapper_forward.1
$region0: #{clip_mapper_forward.1}
  #allocation0 [shape = 'u32[]', space=smem, size = 0x4, offset = 0x4, fixed_abs, tag = 'smem constant byte address 0x4 - core index']
  #allocation1 [shape = 'u32[144,128]{1,0:T(1,128)}', space=vmem, size = 0x12000, scoped, tag = 'internal scratch']
  #allocation2 [shape = 's32[1]{0}', space=sflag, size = 0x4, scoped, tag = 'scoped memory for clip_mapper_forward.1']
  #allocation3 [shape = 'u8[512]{0}', space=smem, size = 0x200, scoped, tag = 'prefetched SMEM operand 0']
  %s0 = inlined_call_operand.hbm [shape: s32[12], index: 0, kind: input, shape index: {}]
  %s1 = inlined_call_operand.vmem [shape: f32[2,24,128], index: 1, kind: input, shape index: {}]
  %s2 = inlined_call_operand.vmem [shape: f32[12,2,1,128], index: 2, kind: input, shape index: {}]
  %s3 = inlined_call_operand.hbm [shape: f32[1,128], index: 3, kind: input, shape index: {}]
  %s4 = inlined_call_operand.hbm [shape: f32[1,128], index: 4, kind: input, shape index: {}]
  %s5 = inlined_call_operand.vmem [shape: f32[12,1,128], index: 5, kind: input, shape index: {}]
  %s6 = inlined_call_operand.vmem [shape: f32[12,1,128], index: 6, kind: input, shape index: {}]
  %s7 = inlined_call_operand.vmem [shape: bf16[12,128,384], index: 7, kind: input, shape index: {}]
  %s8 = inlined_call_operand.vmem [shape: f32[12,1,384], index: 8, kind: input, shape index: {}]
  %s9 = inlined_call_operand.vmem [shape: bf16[12,128,128], index: 9, kind: input, shape index: {}]
  %s10 = inlined_call_operand.vmem [shape: f32[12,1,128], index: 10, kind: input, shape index: {}]
  %s11 = inlined_call_operand.vmem [shape: f32[12,1,128], index: 11, kind: input, shape index: {}]
  %s12 = inlined_call_operand.vmem [shape: f32[12,1,128], index: 12, kind: input, shape index: {}]
  %s13 = inlined_call_operand.vmem [shape: bf16[12,1,128,512], index: 13, kind: input, shape index: {}]
  %s14 = inlined_call_operand.vmem [shape: f32[12,1,1,512], index: 14, kind: input, shape index: {}]
  %s15 = inlined_call_operand.vmem [shape: bf16[12,1,512,128], index: 15, kind: input, shape index: {}]
  %s16 = inlined_call_operand.vmem [shape: f32[12,1,128], index: 16, kind: input, shape index: {}]
  %s17 = inlined_call_operand.vmem [shape: f32[2,24,128], index: 17, kind: output, shape index: {}]
  %s18 = sld [smem:[#allocation0]]
  $region113: #{clip_mapper_forward.1} parent=0
    _
  %s20 = ssub.s32 1, %s18
  %s21 = scalar_select 0, %s20, %s18
  %23 = dma.hbm_to_smem %s0, 16, [#allocation3], [#allocation2]
  %24 = dma.done [#allocation2], 16
  %25 = sfence
  $region1: #{clip_mapper_forward.1} parent=0
    #allocation4 [shape = 'u8[512]{0}', space=vmem, size = 0x400, scoped, tag = 'input window, operand 3, single buffered']
    #allocation5 [shape = 's32[2]{0}', space=sflag, size = 0x8, scoped, tag = 'scoped memory for clip_mapper_forward.1']
    #allocation6 [shape = 'u8[512]{0}', space=vmem, size = 0x400, scoped, tag = 'input window, operand 4, single buffered']
    #allocation7 [shape = 's32[1]{0}', space=sflag, size = 0x4, scoped, tag = 'scoped memory for clip_mapper_forward.1']
    %26 = vsyncpa [#allocation5], 0
    %27 = vsyncpa [#allocation7], 0
    loop: start=0, step=1, limit=14
    $region2: #{clip_mapper_forward.1} parent=1 // loop_pre_header
      _
    $region3: #{clip_mapper_forward.1} parent=1 // loop_header
      %s29 = sphi 0, %s33
      %p30 = scmp.ge.s32.totalorder %s29, 14
      %s36 = sphi 0, %s48
      %s37 = sphi 0, %s44
      %s38 = sphi 0, %s36
      %s39 = sphi 0, %s37
      %s40 = sphi 0, %s38
      %s41 = sphi 0, %s39
      %s51 = sphi 0, %s53
      %s54 = sphi 0, %s51
      %s55 = sphi 0, %s54
      %s71 = sphi 0, %s55
      %s79 = sphi 0, %s81
      %s82 = sphi 0, %s79
      %s83 = sphi 0, %s82
      %s99 = sphi 0, %s83
      %s103 = sphi 0, %s103
      %s105 = sphi 0, %s103
      %s106 = sphi 0, %s105
      %s120 = sphi 0, %s106
      %s124 = sphi 0, %s124
      %s126 = sphi 0, %s124
      %s127 = sphi 0, %s126
      %s141 = sphi 0, %s127
      %s147 = sphi 0, %s149
      %s150 = sphi 0, %s147
      %s151 = sphi 0, %s150
      %s167 = sphi 0, %s151
      %s173 = sphi 0, %s175
      %s176 = sphi 0, %s173
      %s177 = sphi 0, %s176
      %s193 = sphi 0, %s177
      %s199 = sphi 0, %s201
      %s202 = sphi 0, %s199
      %s203 = sphi 0, %s202
      %s219 = sphi 0, %s203
      %s225 = sphi 0, %s227
      %s228 = sphi 0, %s225
      %s229 = sphi 0, %s228
      %s245 = sphi 0, %s229
      %s251 = sphi 0, %s253
      %s254 = sphi 0, %s251
      %s255 = sphi 0, %s254
      %s271 = sphi 0, %s255
      %s277 = sphi 0, %s279
      %s280 = sphi 0, %s277
      %s281 = sphi 0, %s280
      %s297 = sphi 0, %s281
      %s303 = sphi 0, %s305
      %s306 = sphi 0, %s303
      %s307 = sphi 0, %s306
      %s323 = sphi 0, %s307
      %s329 = sphi 0, %s331
      %s332 = sphi 0, %s329
      %s333 = sphi 0, %s332
      %s349 = sphi 0, %s333
      %s355 = sphi 0, %s357
      %s358 = sphi 0, %s355
      %s359 = sphi 0, %s358
      %s375 = sphi 0, %s359
      %s381 = sphi 0, %s383
      %s384 = sphi 0, %s381
      %s385 = sphi 0, %s384
      %s401 = sphi 0, %s385
      %s407 = sphi 0, %s409
      %s410 = sphi 0, %s407
      %s411 = sphi 0, %s410
      %s427 = sphi 0, %s411
      %s433 = sphi 0, %s435
      %s436 = sphi 0, %s433
      %s437 = sphi 0, %s436
      %s453 = sphi 0, %s437
      %s459 = sphi 0, %s461
      %s462 = sphi 0, %s459
      %s463 = sphi 0, %s462
      %s479 = sphi 0, %s463
    $region4: #{clip_mapper_forward.1} parent=1 // loop_header_branch
      %32 = sbr.rel (%p30) target = $region8
    $region5: #{clip_mapper_forward.1} parent=1 // loop_body
      %s34 = ssub.s32 %s29, 1
      %s35 = ssub.s32 %s29, 2
      %s42 = sadd.s32 1, %s37
      %p43 = scmp.ge.s32.totalorder %s42, 12
      %s44 = scalar_select %p43, 0, %s42
      %s45 = sadd.s32 1, %s36
      %s46 = scalar_select %p43, %s45, %s36
      %p47 = scmp.ge.s32.totalorder %s46, 1
      %s48 = scalar_select %p47, 0, %s46
      %s49 = ssub.s32 %s36, %s48
      %p50 = scmp.eq.s32.totalorder %s49, 0
      %s52 = sadd.s32 %s51, 1
      %s53 = scalar_select %p50, %s51, %s52
      %p56 = pneg %p50
      %p57 = scmp.eq.s32.totalorder %s29, 11
      %p58 = por %p56, %p57
      %p59 = scmp.ne.s32.totalorder %s51, %s54
      %p60 = scmp.eq.s32.totalorder %s29, 0
      %p61 = por %p59, %p60
      %p62 = scmp.ne.s32.totalorder %s51, %s54
      %p63 = scmp.eq.s32.totalorder %s34, 11
      %p64 = por %p62, %p63
      %p65 = scmp.ne.s32.totalorder %s54, %s55
      %p66 = scmp.eq.s32.totalorder %s34, 0
      %p67 = por %p65, %p66
      %p68 = scmp.ne.s32.totalorder %s54, %s55
      %p69 = scmp.eq.s32.totalorder %s35, 11
      %p70 = por %p68, %p69
      %p72 = scmp.ne.s32.totalorder %s55, %s71
      %p73 = scmp.eq.s32.totalorder %s35, 0
      %p74 = por %p72, %p73
      %s75 = ssub.s32 %s37, %s44
      %s76 = ssub.s32 %s36, %s48
      %s77 = sor.u32 %s75, %s76
      %p78 = scmp.eq.s32.totalorder %s77, 0
      %s80 = sadd.s32 %s79, 1
      %s81 = scalar_select %p78, %s79, %s80
      %p84 = pneg %p78
      %p85 = scmp.eq.s32.totalorder %s29, 11
      %p86 = por %p84, %p85
      %p87 = scmp.ne.s32.totalorder %s79, %s82
      %p88 = scmp.eq.s32.totalorder %s29, 0
      %p89 = por %p87, %p88
      %p90 = scmp.ne.s32.totalorder %s79, %s82
      %p91 = scmp.eq.s32.totalorder %s34, 11
      %p92 = por %p90, %p91
      %p93 = scmp.ne.s32.totalorder %s82, %s83
      %p94 = scmp.eq.s32.totalorder %s34, 0
      %p95 = por %p93, %p94
      %p96 = scmp.ne.s32.totalorder %s82, %s83
      %p97 = scmp.eq.s32.totalorder %s35, 11
      %p98 = por %p96, %p97
      %p100 = scmp.ne.s32.totalorder %s83, %s99
      %p101 = scmp.eq.s32.totalorder %s35, 0
      %p102 = por %p100, %p101
      %s104 = sadd.s32 %s103, 1
      %p107 = scmp.eq.s32.totalorder %s29, 11
      %p108 = scmp.ne.s32.totalorder %s103, %s105
      %p109 = scmp.eq.s32.totalorder %s29, 0
      %p110 = por %p108, %p109
      %p111 = scmp.ne.s32.totalorder %s103, %s105
      %p112 = scmp.eq.s32.totalorder %s34, 11
      %p113 = por %p111, %p112
      %p114 = scmp.ne.s32.totalorder %s105, %s106
      %p115 = scmp.eq.s32.totalorder %s34, 0
      %p116 = por %p114, %p115
      %p117 = scmp.ne.s32.totalorder %s105, %s106
      %p118 = scmp.eq.s32.totalorder %s35, 11
      %p119 = por %p117, %p118
      %p121 = scmp.ne.s32.totalorder %s106, %s120
      %p122 = scmp.eq.s32.totalorder %s35, 0
      %p123 = por %p121, %p122
      %s125 = sadd.s32 %s124, 1
      %p128 = scmp.eq.s32.totalorder %s29, 11
      %p129 = scmp.ne.s32.totalorder %s124, %s126
      %p130 = scmp.eq.s32.totalorder %s29, 0
      %p131 = por %p129, %p130
      %p132 = scmp.ne.s32.totalorder %s124, %s126
      %p133 = scmp.eq.s32.totalorder %s34, 11
      %p134 = por %p132, %p133
      %p135 = scmp.ne.s32.totalorder %s126, %s127
      %p136 = scmp.eq.s32.totalorder %s34, 0
      %p137 = por %p135, %p136
      %p138 = scmp.ne.s32.totalorder %s126, %s127
      %p139 = scmp.eq.s32.totalorder %s35, 11
      %p140 = por %p138, %p139
      %p142 = scmp.ne.s32.totalorder %s127, %s141
      %p143 = scmp.eq.s32.totalorder %s35, 0
      %p144 = por %p142, %p143
      %s145 = ssub.s32 %s37, %s44
      %p146 = scmp.eq.s32.totalorder %s145, 0
      %s148 = sadd.s32 %s147, 1
      %s149 = scalar_select %p146, %s147, %s148
      %p152 = pneg %p146
      %p153 = scmp.eq.s32.totalorder %s29, 11
      %p154 = por %p152, %p153
      %p155 = scmp.ne.s32.totalorder %s147, %s150
      %p156 = scmp.eq.s32.totalorder %s29, 0
      %p157 = por %p155, %p156
      %p158 = scmp.ne.s32.totalorder %s147, %s150
      %p159 = scmp.eq.s32.totalorder %s34, 11
      %p160 = por %p158, %p159
      %p161 = scmp.ne.s32.totalorder %s150, %s151
      %p162 = scmp.eq.s32.totalorder %s34, 0
      %p163 = por %p161, %p162
      %p164 = scmp.ne.s32.totalorder %s150, %s151
      %p165 = scmp.eq.s32.totalorder %s35, 11
      %p166 = por %p164, %p165
      %p168 = scmp.ne.s32.totalorder %s151, %s167
      %p169 = scmp.eq.s32.totalorder %s35, 0
      %p170 = por %p168, %p169
      %s171 = ssub.s32 %s37, %s44
      %p172 = scmp.eq.s32.totalorder %s171, 0
      %s174 = sadd.s32 %s173, 1
      %s175 = scalar_select %p172, %s173, %s174
      %p178 = pneg %p172
      %p179 = scmp.eq.s32.totalorder %s29, 11
      %p180 = por %p178, %p179
      %p181 = scmp.ne.s32.totalorder %s173, %s176
      %p182 = scmp.eq.s32.totalorder %s29, 0
      %p183 = por %p181, %p182
      %p184 = scmp.ne.s32.totalorder %s173, %s176
      %p185 = scmp.eq.s32.totalorder %s34, 11
      %p186 = por %p184, %p185
      %p187 = scmp.ne.s32.totalorder %s176, %s177
      %p188 = scmp.eq.s32.totalorder %s34, 0
      %p189 = por %p187, %p188
      %p190 = scmp.ne.s32.totalorder %s176, %s177
      %p191 = scmp.eq.s32.totalorder %s35, 11
      %p192 = por %p190, %p191
      %p194 = scmp.ne.s32.totalorder %s177, %s193
      %p195 = scmp.eq.s32.totalorder %s35, 0
      %p196 = por %p194, %p195
      %s197 = ssub.s32 %s37, %s44
      %p198 = scmp.eq.s32.totalorder %s197, 0
      %s200 = sadd.s32 %s199, 1
      %s201 = scalar_select %p198, %s199, %s200
      %p204 = pneg %p198
      %p205 = scmp.eq.s32.totalorder %s29, 11
      %p206 = por %p204, %p205
      %p207 = scmp.ne.s32.totalorder %s199, %s202
      %p208 = scmp.eq.s32.totalorder %s29, 0
      %p209 = por %p207, %p208
      %p210 = scmp.ne.s32.totalorder %s199, %s202
      %p211 = scmp.eq.s32.totalorder %s34, 11
      %p212 = por %p210, %p211
      %p213 = scmp.ne.s32.totalorder %s202, %s203
      %p214 = scmp.eq.s32.totalorder %s34, 0
      %p215 = por %p213, %p214
      %p216 = scmp.ne.s32.totalorder %s202, %s203
      %p217 = scmp.eq.s32.totalorder %s35, 11
      %p218 = por %p216, %p217
      %p220 = scmp.ne.s32.totalorder %s203, %s219
      %p221 = scmp.eq.s32.totalorder %s35, 0
      %p222 = por %p220, %p221
      %s223 = ssub.s32 %s37, %s44
      %p224 = scmp.eq.s32.totalorder %s223, 0
      %s226 = sadd.s32 %s225, 1
      %s227 = scalar_select %p224, %s225, %s226
      %p230 = pneg %p224
      %p231 = scmp.eq.s32.totalorder %s29, 11
      %p232 = por %p230, %p231
      %p233 = scmp.ne.s32.totalorder %s225, %s228
      %p234 = scmp.eq.s32.totalorder %s29, 0
      %p235 = por %p233, %p234
      %p236 = scmp.ne.s32.totalorder %s225, %s228
      %p237 = scmp.eq.s32.totalorder %s34, 11
      %p238 = por %p236, %p237
      %p239 = scmp.ne.s32.totalorder %s228, %s229
      %p240 = scmp.eq.s32.totalorder %s34, 0
      %p241 = por %p239, %p240
      %p242 = scmp.ne.s32.totalorder %s228, %s229
      %p243 = scmp.eq.s32.totalorder %s35, 11
      %p244 = por %p242, %p243
      %p246 = scmp.ne.s32.totalorder %s229, %s245
      %p247 = scmp.eq.s32.totalorder %s35, 0
      %p248 = por %p246, %p247
      %s249 = ssub.s32 %s37, %s44
      %p250 = scmp.eq.s32.totalorder %s249, 0
      %s252 = sadd.s32 %s251, 1
      %s253 = scalar_select %p250, %s251, %s252
      %p256 = pneg %p250
      %p257 = scmp.eq.s32.totalorder %s29, 11
      %p258 = por %p256, %p257
      %p259 = scmp.ne.s32.totalorder %s251, %s254
      %p260 = scmp.eq.s32.totalorder %s29, 0
      %p261 = por %p259, %p260
      %p262 = scmp.ne.s32.totalorder %s251, %s254
      %p263 = scmp.eq.s32.totalorder %s34, 11
      %p264 = por %p262, %p263
      %p265 = scmp.ne.s32.totalorder %s254, %s255
      %p266 = scmp.eq.s32.totalorder %s34, 0
      %p267 = por %p265, %p266
      %p268 = scmp.ne.s32.totalorder %s254, %s255
      %p269 = scmp.eq.s32.totalorder %s35, 11
      %p270 = por %p268, %p269
      %p272 = scmp.ne.s32.totalorder %s255, %s271
      %p273 = scmp.eq.s32.totalorder %s35, 0
      %p274 = por %p272, %p273
      %s275 = ssub.s32 %s37, %s44
      %p276 = scmp.eq.s32.totalorder %s275, 0
      %s278 = sadd.s32 %s277, 1
      %s279 = scalar_select %p276, %s277, %s278
      %p282 = pneg %p276
      %p283 = scmp.eq.s32.totalorder %s29, 11
      %p284 = por %p282, %p283
      %p285 = scmp.ne.s32.totalorder %s277, %s280
      %p286 = scmp.eq.s32.totalorder %s29, 0
      %p287 = por %p285, %p286
      %p288 = scmp.ne.s32.totalorder %s277, %s280
      %p289 = scmp.eq.s32.totalorder %s34, 11
      %p290 = por %p288, %p289
      %p291 = scmp.ne.s32.totalorder %s280, %s281
      %p292 = scmp.eq.s32.totalorder %s34, 0
      %p293 = por %p291, %p292
      %p294 = scmp.ne.s32.totalorder %s280, %s281
      %p295 = scmp.eq.s32.totalorder %s35, 11
      %p296 = por %p294, %p295
      %p298 = scmp.ne.s32.totalorder %s281, %s297
      %p299 = scmp.eq.s32.totalorder %s35, 0
      %p300 = por %p298, %p299
      %s301 = ssub.s32 %s37, %s44
      %p302 = scmp.eq.s32.totalorder %s301, 0
      %s304 = sadd.s32 %s303, 1
      %s305 = scalar_select %p302, %s303, %s304
      %p308 = pneg %p302
      %p309 = scmp.eq.s32.totalorder %s29, 11
      %p310 = por %p308, %p309
      %p311 = scmp.ne.s32.totalorder %s303, %s306
      %p312 = scmp.eq.s32.totalorder %s29, 0
      %p313 = por %p311, %p312
      %p314 = scmp.ne.s32.totalorder %s303, %s306
      %p315 = scmp.eq.s32.totalorder %s34, 11
      %p316 = por %p314, %p315
      %p317 = scmp.ne.s32.totalorder %s306, %s307
      %p318 = scmp.eq.s32.totalorder %s34, 0
      %p319 = por %p317, %p318
      %p320 = scmp.ne.s32.totalorder %s306, %s307
      %p321 = scmp.eq.s32.totalorder %s35, 11
      %p322 = por %p320, %p321
      %p324 = scmp.ne.s32.totalorder %s307, %s323
      %p325 = scmp.eq.s32.totalorder %s35, 0
      %p326 = por %p324, %p325
      %s327 = ssub.s32 %s37, %s44
      %p328 = scmp.eq.s32.totalorder %s327, 0
      %s330 = sadd.s32 %s329, 1
      %s331 = scalar_select %p328, %s329, %s330
      %p334 = pneg %p328
      %p335 = scmp.eq.s32.totalorder %s29, 11
      %p336 = por %p334, %p335
      %p337 = scmp.ne.s32.totalorder %s329, %s332
      %p338 = scmp.eq.s32.totalorder %s29, 0
      %p339 = por %p337, %p338
      %p340 = scmp.ne.s32.totalorder %s329, %s332
      %p341 = scmp.eq.s32.totalorder %s34, 11
      %p342 = por %p340, %p341
      %p343 = scmp.ne.s32.totalorder %s332, %s333
      %p344 = scmp.eq.s32.totalorder %s34, 0
      %p345 = por %p343, %p344
      %p346 = scmp.ne.s32.totalorder %s332, %s333
      %p347 = scmp.eq.s32.totalorder %s35, 11
      %p348 = por %p346, %p347
      %p350 = scmp.ne.s32.totalorder %s333, %s349
      %p351 = scmp.eq.s32.totalorder %s35, 0
      %p352 = por %p350, %p351
      %s353 = ssub.s32 %s37, %s44
      %p354 = scmp.eq.s32.totalorder %s353, 0
      %s356 = sadd.s32 %s355, 1
      %s357 = scalar_select %p354, %s355, %s356
      %p360 = pneg %p354
      %p361 = scmp.eq.s32.totalorder %s29, 11
      %p362 = por %p360, %p361
      %p363 = scmp.ne.s32.totalorder %s355, %s358
      %p364 = scmp.eq.s32.totalorder %s29, 0
      %p365 = por %p363, %p364
      %p366 = scmp.ne.s32.totalorder %s355, %s358
      %p367 = scmp.eq.s32.totalorder %s34, 11
      %p368 = por %p366, %p367
      %p369 = scmp.ne.s32.totalorder %s358, %s359
      %p370 = scmp.eq.s32.totalorder %s34, 0
      %p371 = por %p369, %p370
      %p372 = scmp.ne.s32.totalorder %s358, %s359
      %p373 = scmp.eq.s32.totalorder %s35, 11
      %p374 = por %p372, %p373
      %p376 = scmp.ne.s32.totalorder %s359, %s375
      %p377 = scmp.eq.s32.totalorder %s35, 0
      %p378 = por %p376, %p377
      %s379 = ssub.s32 %s37, %s44
      %p380 = scmp.eq.s32.totalorder %s379, 0
      %s382 = sadd.s32 %s381, 1
      %s383 = scalar_select %p380, %s381, %s382
      %p386 = pneg %p380
      %p387 = scmp.eq.s32.totalorder %s29, 11
      %p388 = por %p386, %p387
      %p389 = scmp.ne.s32.totalorder %s381, %s384
      %p390 = scmp.eq.s32.totalorder %s29, 0
      %p391 = por %p389, %p390
      %p392 = scmp.ne.s32.totalorder %s381, %s384
      %p393 = scmp.eq.s32.totalorder %s34, 11
      %p394 = por %p392, %p393
      %p395 = scmp.ne.s32.totalorder %s384, %s385
      %p396 = scmp.eq.s32.totalorder %s34, 0
      %p397 = por %p395, %p396
      %p398 = scmp.ne.s32.totalorder %s384, %s385
      %p399 = scmp.eq.s32.totalorder %s35, 11
      %p400 = por %p398, %p399
      %p402 = scmp.ne.s32.totalorder %s385, %s401
      %p403 = scmp.eq.s32.totalorder %s35, 0
      %p404 = por %p402, %p403
      %s405 = ssub.s32 %s37, %s44
      %p406 = scmp.eq.s32.totalorder %s405, 0
      %s408 = sadd.s32 %s407, 1
      %s409 = scalar_select %p406, %s407, %s408
      %p412 = pneg %p406
      %p413 = scmp.eq.s32.totalorder %s29, 11
      %p414 = por %p412, %p413
      %p415 = scmp.ne.s32.totalorder %s407, %s410
      %p416 = scmp.eq.s32.totalorder %s29, 0
      %p417 = por %p415, %p416
      %p418 = scmp.ne.s32.totalorder %s407, %s410
      %p419 = scmp.eq.s32.totalorder %s34, 11
      %p420 = por %p418, %p419
      %p421 = scmp.ne.s32.totalorder %s410, %s411
      %p422 = scmp.eq.s32.totalorder %s34, 0
      %p423 = por %p421, %p422
      %p424 = scmp.ne.s32.totalorder %s410, %s411
      %p425 = scmp.eq.s32.totalorder %s35, 11
      %p426 = por %p424, %p425
      %p428 = scmp.ne.s32.totalorder %s411, %s427
      %p429 = scmp.eq.s32.totalorder %s35, 0
      %p430 = por %p428, %p429
      %s431 = ssub.s32 %s37, %s44
      %p432 = scmp.eq.s32.totalorder %s431, 0
      %s434 = sadd.s32 %s433, 1
      %s435 = scalar_select %p432, %s433, %s434
      %p438 = pneg %p432
      %p439 = scmp.eq.s32.totalorder %s29, 11
      %p440 = por %p438, %p439
      %p441 = scmp.ne.s32.totalorder %s433, %s436
      %p442 = scmp.eq.s32.totalorder %s29, 0
      %p443 = por %p441, %p442
      %p444 = scmp.ne.s32.totalorder %s433, %s436
      %p445 = scmp.eq.s32.totalorder %s34, 11
      %p446 = por %p444, %p445
      %p447 = scmp.ne.s32.totalorder %s436, %s437
      %p448 = scmp.eq.s32.totalorder %s34, 0
      %p449 = por %p447, %p448
      %p450 = scmp.ne.s32.totalorder %s436, %s437
      %p451 = scmp.eq.s32.totalorder %s35, 11
      %p452 = por %p450, %p451
      %p454 = scmp.ne.s32.totalorder %s437, %s453
      %p455 = scmp.eq.s32.totalorder %s35, 0
      %p456 = por %p454, %p455
      %s457 = ssub.s32 %s36, %s48
      %p458 = scmp.eq.s32.totalorder %s457, 0
      %s460 = sadd.s32 %s459, 1
      %s461 = scalar_select %p458, %s459, %s460
      %p464 = pneg %p458
      %p465 = scmp.eq.s32.totalorder %s29, 11
      %p466 = por %p464, %p465
      %p467 = scmp.ne.s32.totalorder %s459, %s462
      %p468 = scmp.eq.s32.totalorder %s29, 0
      %p469 = por %p467, %p468
      %p470 = scmp.ne.s32.totalorder %s459, %s462
      %p471 = scmp.eq.s32.totalorder %s34, 11
      %p472 = por %p470, %p471
      %p473 = scmp.ne.s32.totalorder %s462, %s463
      %p474 = scmp.eq.s32.totalorder %s34, 0
      %p475 = por %p473, %p474
      %p476 = scmp.ne.s32.totalorder %s462, %s463
      %p477 = scmp.eq.s32.totalorder %s35, 11
      %p478 = por %p476, %p477
      %p480 = scmp.ne.s32.totalorder %s463, %s479
      %p481 = scmp.eq.s32.totalorder %s35, 0
      %p482 = por %p480, %p481
      %p483 = scmp.le.s32.totalorder 1, %s29
      %p484 = scmp.lt.s32.totalorder %s29, 13
      %p485 = pnand %p483, %p484
      %p486 = pneg %p485
      // Predicated region
      $region9: #{clip_mapper_forward.1} parent=5 // pred_check
        _
      $region10: #{clip_mapper_forward.1} parent=5 // pred_check_branch
        %488 = sbr.rel (%p485) target = $region12
      $region11: #{clip_mapper_forward.1} parent=5 // pred_region
        %s489 = ssub.s32 %s29, 1
        // Predicated region
        $region13: #{clip_mapper_forward.1} parent=11 // pred_check
          %p490 = pneg %p67
        $region14: #{clip_mapper_forward.1} parent=11 // pred_check_branch
          %492 = sbr.rel (%p490) target = $region16
        $region15: #{clip_mapper_forward.1} parent=11 // pred_region
          %s493 = smul.u32 2, %s38
          %p494 = scmp.lt.s32.totalorder %s493, 1
          %s495 = scalar_select %p494, %s493, 1
          %s496 = smul.addr %s495, 3
          %s497 = smul.addr %s496, 8
          %s498 = scalar_lea.vmem %s1, %s497
          %s499 = smul.u32 2, %s38
        $region16: #{clip_mapper_forward.1} parent=11 // pred_fallthru
          _
        // Predicated region
        $region17: #{clip_mapper_forward.1} parent=11 // pred_check
          %p500 = pneg %p116
        $region18: #{clip_mapper_forward.1} parent=11 // pred_check_branch
          %502 = sbr.rel (%p500) target = $region20
        $region19: #{clip_mapper_forward.1} parent=11 // pred_region
          %s504 = ssub.s32 16, 16
          %505 = vsyncadd [#allocation5], %s504
          %s507 = sshll.u32 [#allocation4], 4
          %s508 = int_to_ptr.vmem [resolvable:$true] %s507
          %510 = dma.hbm_to_vmem [thread:$0]  %s3, 16, %s508, [#allocation5]
        $region20: #{clip_mapper_forward.1} parent=11 // pred_fallthru
          _
        // Predicated region
        $region21: #{clip_mapper_forward.1} parent=11 // pred_check
          %p511 = pneg %p137
        $region22: #{clip_mapper_forward.1} parent=11 // pred_check_branch
          %513 = sbr.rel (%p511) target = $region24
        $region23: #{clip_mapper_forward.1} parent=11 // pred_region
          %s515 = ssub.s32 16, 16
          %516 = vsyncadd [#allocation7], %s515
          %s518 = sshll.u32 [#allocation6], 4
          %s519 = int_to_ptr.vmem [resolvable:$true] %s518
          %521 = dma.hbm_to_vmem [thread:$0]  %s4, 16, %s519, [#allocation7]
        $region24: #{clip_mapper_forward.1} parent=11 // pred_fallthru
          _
      $region12: #{clip_mapper_forward.1} parent=5 // pred_fallthru
        _
      %p522 = scmp.lt.s32.totalorder %s29, 12
      // Predicated region
      $region25: #{clip_mapper_forward.1} parent=5 // pred_check
        %p523 = pneg %p522
      $region26: #{clip_mapper_forward.1} parent=5 // pred_check_branch
        %525 = sbr.rel (%p523) target = $region28
      $region27: #{clip_mapper_forward.1} parent=5 // pred_region
        // Predicated region
        $region29: #{clip_mapper_forward.1} parent=27 // pred_check
          %p526 = pneg %p89
        $region30: #{clip_mapper_forward.1} parent=27 // pred_check_branch
          %528 = sbr.rel (%p526) target = $region32
        $region31: #{clip_mapper_forward.1} parent=27 // pred_region
          %s529 = smul.u32 2, %s36
          %p530 = scmp.lt.s32.totalorder %s37, 11
          %s531 = scalar_select %p530, %s37, 11
          %p532 = scmp.lt.s32.totalorder %s529, 1
          %s533 = scalar_select %p532, %s529, 1
          %s534 = smul.addr %s531, 2
          %s535 = sadd.s32 %s533, %s534
          %s536 = scalar_lea.vmem %s2, %s535
          %s537 = smul.u32 2, %s36
        $region32: #{clip_mapper_forward.1} parent=27 // pred_fallthru
          _
        // Predicated region
        $region33: #{clip_mapper_forward.1} parent=27 // pred_check
          %p538 = pneg %p157
        $region34: #{clip_mapper_forward.1} parent=27 // pred_check_branch
          %540 = sbr.rel (%p538) target = $region36
        $region35: #{clip_mapper_forward.1} parent=27 // pred_region
          %p541 = scmp.lt.s32.totalorder %s37, 11
          %s542 = scalar_select %p541, %s37, 11
          %s543 = scalar_lea.vmem %s5, %s542
        $region36: #{clip_mapper_forward.1} parent=27 // pred_fallthru
          _
        // Predicated region
        $region37: #{clip_mapper_forward.1} parent=27 // pred_check
          %p544 = pneg %p183
        $region38: #{clip_mapper_forward.1} parent=27 // pred_check_branch
          %546 = sbr.rel (%p544) target = $region40
        $region39: #{clip_mapper_forward.1} parent=27 // pred_region
          %p547 = scmp.lt.s32.totalorder %s37, 11
          %s548 = scalar_select %p547, %s37, 11
          %s549 = scalar_lea.vmem %s6, %s548
        $region40: #{clip_mapper_forward.1} parent=27 // pred_fallthru
          _
        // Predicated region
        $region41: #{clip_mapper_forward.1} parent=27 // pred_check
          %p550 = pneg %p209
        $region42: #{clip_mapper_forward.1} parent=27 // pred_check_branch
          %552 = sbr.rel (%p550) target = $region44
        $region43: #{clip_mapper_forward.1} parent=27 // pred_region
          %p553 = scmp.lt.s32.totalorder %s37, 11
          %s554 = scalar_select %p553, %s37, 11
          %s555 = smul.addr %s554, 48
          %s556 = smul.addr %s555, 4
          %s557 = scalar_lea.vmem %s7, %s556
        $region44: #{clip_mapper_forward.1} parent=27 // pred_fallthru
          _
        // Predicated region
        $region45: #{clip_mapper_forward.1} parent=27 // pred_check
          %p558 = pneg %p235
        $region46: #{clip_mapper_forward.1} parent=27 // pred_check_branch
          %560 = sbr.rel (%p558) target = $region48
        $region47: #{clip_mapper_forward.1} parent=27 // pred_region
          %p561 = scmp.lt.s32.totalorder %s37, 11
          %s562 = scalar_select %p561, %s37, 11
          %s563 = smul.addr %s562, 3
          %s564 = scalar_lea.vmem %s8, %s563
        $region48: #{clip_mapper_forward.1} parent=27 // pred_fallthru
          _
        // Predicated region
        $region49: #{clip_mapper_forward.1} parent=27 // pred_check
          %p565 = pneg %p261
        $region50: #{clip_mapper_forward.1} parent=27 // pred_check_branch
          %567 = sbr.rel (%p565) target = $region52
        $region51: #{clip_mapper_forward.1} parent=27 // pred_region
          %p568 = scmp.lt.s32.totalorder %s37, 11
          %s569 = scalar_select %p568, %s37, 11
          %s570 = smul.addr %s569, 16
          %s571 = smul.addr %s570, 4
          %s572 = scalar_lea.vmem %s9, %s571
        $region52: #{clip_mapper_forward.1} parent=27 // pred_fallthru
          _
        // Predicated region
        $region53: #{clip_mapper_forward.1} parent=27 // pred_check
          %p573 = pneg %p287
        $region54: #{clip_mapper_forward.1} parent=27 // pred_check_branch
          %575 = sbr.rel (%p573) target = $region56
        $region55: #{clip_mapper_forward.1} parent=27 // pred_region
          %p576 = scmp.lt.s32.totalorder %s37, 11
          %s577 = scalar_select %p576, %s37, 11
          %s578 = scalar_lea.vmem %s10, %s577
        $region56: #{clip_mapper_forward.1} parent=27 // pred_fallthru
          _
        // Predicated region
        $region57: #{clip_mapper_forward.1} parent=27 // pred_check
          %p579 = pneg %p313
        $region58: #{clip_mapper_forward.1} parent=27 // pred_check_branch
          %581 = sbr.rel (%p579) target = $region60
        $region59: #{clip_mapper_forward.1} parent=27 // pred_region
          %p582 = scmp.lt.s32.totalorder %s37, 11
          %s583 = scalar_select %p582, %s37, 11
          %s584 = scalar_lea.vmem %s11, %s583
        $region60: #{clip_mapper_forward.1} parent=27 // pred_fallthru
          _
        // Predicated region
        $region61: #{clip_mapper_forward.1} parent=27 // pred_check
          %p585 = pneg %p339
        $region62: #{clip_mapper_forward.1} parent=27 // pred_check_branch
          %587 = sbr.rel (%p585) target = $region64
        $region63: #{clip_mapper_forward.1} parent=27 // pred_region
          %p588 = scmp.lt.s32.totalorder %s37, 11
          %s589 = scalar_select %p588, %s37, 11
          %s590 = scalar_lea.vmem %s12, %s589
        $region64: #{clip_mapper_forward.1} parent=27 // pred_fallthru
          _
        // Predicated region
        $region65: #{clip_mapper_forward.1} parent=27 // pred_check
          %p591 = pneg %p365
        $region66: #{clip_mapper_forward.1} parent=27 // pred_check_branch
          %593 = sbr.rel (%p591) target = $region68
        $region67: #{clip_mapper_forward.1} parent=27 // pred_region
          %p594 = scmp.lt.s32.totalorder %s37, 11
          %s595 = scalar_select %p594, %s37, 11
          %s596 = smul.addr %s595, 64
          %s597 = smul.addr %s596, 4
          %s598 = scalar_lea.vmem %s13, %s597
        $region68: #{clip_mapper_forward.1} parent=27 // pred_fallthru
          _
        // Predicated region
        $region69: #{clip_mapper_forward.1} parent=27 // pred_check
          %p599 = pneg %p391
        $region70: #{clip_mapper_forward.1} parent=27 // pred_check_branch
          %601 = sbr.rel (%p599) target = $region72
        $region71: #{clip_mapper_forward.1} parent=27 // pred_region
          %p602 = scmp.lt.s32.totalorder %s37, 11
          %s603 = scalar_select %p602, %s37, 11
          %s604 = smul.addr %s603, 4
          %s605 = scalar_lea.vmem %s14, %s604
        $region72: #{clip_mapper_forward.1} parent=27 // pred_fallthru
          _
        // Predicated region
        $region73: #{clip_mapper_forward.1} parent=27 // pred_check
          %p606 = pneg %p417
        $region74: #{clip_mapper_forward.1} parent=27 // pred_check_branch
          %608 = sbr.rel (%p606) target = $region76
        $region75: #{clip_mapper_forward.1} parent=27 // pred_region
          %p609 = scmp.lt.s32.totalorder %s37, 11
          %s610 = scalar_select %p609, %s37, 11
          %s611 = smul.addr %s610, 64
          %s612 = smul.addr %s611, 4
          %s613 = scalar_lea.vmem %s15, %s612
        $region76: #{clip_mapper_forward.1} parent=27 // pred_fallthru
          _
        // Predicated region
        $region77: #{clip_mapper_forward.1} parent=27 // pred_check
          %p614 = pneg %p443
        $region78: #{clip_mapper_forward.1} parent=27 // pred_check_branch
          %616 = sbr.rel (%p614) target = $region80
        $region79: #{clip_mapper_forward.1} parent=27 // pred_region
          %p617 = scmp.lt.s32.totalorder %s37, 11
          %s618 = scalar_select %p617, %s37, 11
          %s619 = scalar_lea.vmem %s16, %s618
        $region80: #{clip_mapper_forward.1} parent=27 // pred_fallthru
          _
      $region28: #{clip_mapper_forward.1} parent=5 // pred_fallthru
        _
      %p620 = scmp.le.s32.totalorder 1, %s29
      %p621 = scmp.lt.s32.totalorder %s29, 13
      %p622 = pnand %p620, %p621
      %p623 = pneg %p622
      // Predicated region
      $region81: #{clip_mapper_forward.1} parent=5 // pred_check
        _
      $region82: #{clip_mapper_forward.1} parent=5 // pred_check_branch
        %625 = sbr.rel (%p622) target = $region84
      $region83: #{clip_mapper_forward.1} parent=5 // pred_region
        %s626 = ssub.s32 %s29, 1
        // Predicated region
        $region85: #{clip_mapper_forward.1} parent=83 // pred_check
          %p627 = pneg %p116
        $region86: #{clip_mapper_forward.1} parent=83 // pred_check_branch
          %629 = sbr.rel (%p627) target = $region88
        $region87: #{clip_mapper_forward.1} parent=83 // pred_region
          %630 = dma.done [#allocation5], 16
        $region88: #{clip_mapper_forward.1} parent=83 // pred_fallthru
          _
        // Predicated region
        $region89: #{clip_mapper_forward.1} parent=83 // pred_check
          %p631 = pneg %p137
        $region90: #{clip_mapper_forward.1} parent=83 // pred_check_branch
          %633 = sbr.rel (%p631) target = $region92
        $region91: #{clip_mapper_forward.1} parent=83 // pred_region
          %634 = dma.done [#allocation7], 16
        $region92: #{clip_mapper_forward.1} parent=83 // pred_fallthru
          _
        %s635 = smul.u32 2, %s38
        %p636 = scmp.lt.s32.totalorder %s635, 1
        %s637 = scalar_select %p636, %s635, 1
        %s638 = smul.addr %s637, 3
        %s639 = smul.addr %s638, 8
        %s640 = scalar_lea.vmem %s1, %s639
        %p641 = pneg %p67
        %p642 = pneg %p64
        %s643 = smul.u32 2, %s38
        %p644 = scmp.lt.s32.totalorder %s39, 11
        %s645 = scalar_select %p644, %s39, 11
        %p646 = scmp.lt.s32.totalorder %s643, 1
        %s647 = scalar_select %p646, %s643, 1
        %s648 = smul.addr %s645, 2
        %s649 = sadd.s32 %s647, %s648
        %s650 = scalar_lea.vmem %s2, %s649
        %p651 = pneg %p95
        %p652 = pneg %p92
        %p653 = pneg %p116
        %p654 = pneg %p113
        %p655 = pneg %p137
        %p656 = pneg %p134
        %p657 = scmp.lt.s32.totalorder %s39, 11
        %s658 = scalar_select %p657, %s39, 11
        %s659 = scalar_lea.vmem %s5, %s658
        %p660 = pneg %p163
        %p661 = pneg %p160
        %p662 = scmp.lt.s32.totalorder %s39, 11
        %s663 = scalar_select %p662, %s39, 11
        %s664 = scalar_lea.vmem %s6, %s663
        %p665 = pneg %p189
        %p666 = pneg %p186
        %p667 = scmp.lt.s32.totalorder %s39, 11
        %s668 = scalar_select %p667, %s39, 11
        %s669 = smul.addr %s668, 48
        %s670 = smul.addr %s669, 4
        %s671 = scalar_lea.vmem %s7, %s670
        %p672 = pneg %p215
        %p673 = pneg %p212
        %p674 = scmp.lt.s32.totalorder %s39, 11
        %s675 = scalar_select %p674, %s39, 11
        %s676 = smul.addr %s675, 3
        %s677 = scalar_lea.vmem %s8, %s676
        %p678 = pneg %p241
        %p679 = pneg %p238
        %p680 = scmp.lt.s32.totalorder %s39, 11
        %s681 = scalar_select %p680, %s39, 11
        %s682 = smul.addr %s681, 16
        %s683 = smul.addr %s682, 4
        %s684 = scalar_lea.vmem %s9, %s683
        %p685 = pneg %p267
        %p686 = pneg %p264
        %p687 = scmp.lt.s32.totalorder %s39, 11
        %s688 = scalar_select %p687, %s39, 11
        %s689 = scalar_lea.vmem %s10, %s688
        %p690 = pneg %p293
        %p691 = pneg %p290
        %p692 = scmp.lt.s32.totalorder %s39, 11
        %s693 = scalar_select %p692, %s39, 11
        %s694 = scalar_lea.vmem %s11, %s693
        %p695 = pneg %p319
        %p696 = pneg %p316
        %p697 = scmp.lt.s32.totalorder %s39, 11
        %s698 = scalar_select %p697, %s39, 11
        %s699 = scalar_lea.vmem %s12, %s698
        %p700 = pneg %p345
        %p701 = pneg %p342
        %p702 = scmp.lt.s32.totalorder %s39, 11
        %s703 = scalar_select %p702, %s39, 11
        %s704 = smul.addr %s703, 64
        %s705 = smul.addr %s704, 4
        %s706 = scalar_lea.vmem %s13, %s705
        %p707 = pneg %p371
        %p708 = pneg %p368
        %p709 = scmp.lt.s32.totalorder %s39, 11
        %s710 = scalar_select %p709, %s39, 11
        %s711 = smul.addr %s710, 4
        %s712 = scalar_lea.vmem %s14, %s711
        %p713 = pneg %p397
        %p714 = pneg %p394
        %p715 = scmp.lt.s32.totalorder %s39, 11
        %s716 = scalar_select %p715, %s39, 11
        %s717 = smul.addr %s716, 64
        %s718 = smul.addr %s717, 4
        %s719 = scalar_lea.vmem %s15, %s718
        %p720 = pneg %p423
        %p721 = pneg %p420
        %p722 = scmp.lt.s32.totalorder %s39, 11
        %s723 = scalar_select %p722, %s39, 11
        %s724 = scalar_lea.vmem %s16, %s723
        %p725 = pneg %p449
        %p726 = pneg %p446
        %p727 = pneg %p475
        %p728 = pneg %p472
        %s729 = smul.u32 2, %s38
        %p730 = scmp.lt.s32.totalorder %s729, 1
        %s731 = scalar_select %p730, %s729, 1
        %s732 = smul.addr %s731, 3
        %s733 = smul.addr %s732, 8
        %s734 = scalar_lea.vmem %s17, %s733
        %s735 = smul.u32 2, %s38
        %p736 = scmp.lt.s32.totalorder %s735, 1
        %s737 = scalar_select %p736, %s735, 1
        %s738 = smul.addr %s737, 3
        %s739 = smul.addr %s738, 8
        %s740 = scalar_lea.vmem %s1, %s739
        %s741 = smul.u32 2, %s38
        %s742 = smul.u32 2, %s38
        %p743 = scmp.lt.s32.totalorder %s39, 11
        %s744 = scalar_select %p743, %s39, 11
        %p745 = scmp.lt.s32.totalorder %s742, 1
        %s746 = scalar_select %p745, %s742, 1
        %s747 = smul.addr %s744, 2
        %s748 = sadd.s32 %s746, %s747
        %s749 = scalar_lea.vmem %s2, %s748
        %s750 = smul.u32 2, %s38
        %p751 = scmp.lt.s32.totalorder %s39, 11
        %s752 = scalar_select %p751, %s39, 11
        %s753 = scalar_lea.vmem %s5, %s752
        %p754 = scmp.lt.s32.totalorder %s39, 11
        %s755 = scalar_select %p754, %s39, 11
        %s756 = scalar_lea.vmem %s6, %s755
        %p757 = scmp.lt.s32.totalorder %s39, 11
        %s758 = scalar_select %p757, %s39, 11
        %s759 = smul.addr %s758, 48
        %s760 = smul.addr %s759, 4
        %s761 = scalar_lea.vmem %s7, %s760
        %p762 = scmp.lt.s32.totalorder %s39, 11
        %s763 = scalar_select %p762, %s39, 11
        %s764 = smul.addr %s763, 3
        %s765 = scalar_lea.vmem %s8, %s764
        %p766 = scmp.lt.s32.totalorder %s39, 11
        %s767 = scalar_select %p766, %s39, 11
        %s768 = smul.addr %s767, 16
        %s769 = smul.addr %s768, 4
        %s770 = scalar_lea.vmem %s9, %s769
        %p771 = scmp.lt.s32.totalorder %s39, 11
        %s772 = scalar_select %p771, %s39, 11
        %s773 = scalar_lea.vmem %s10, %s772
        %p774 = scmp.lt.s32.totalorder %s39, 11
        %s775 = scalar_select %p774, %s39, 11
        %s776 = scalar_lea.vmem %s11, %s775
        %p777 = scmp.lt.s32.totalorder %s39, 11
        %s778 = scalar_select %p777, %s39, 11
        %s779 = scalar_lea.vmem %s12, %s778
        %p780 = scmp.lt.s32.totalorder %s39, 11
        %s781 = scalar_select %p780, %s39, 11
        %s782 = smul.addr %s781, 64
        %s783 = smul.addr %s782, 4
        %s784 = scalar_lea.vmem %s13, %s783
        %p785 = scmp.lt.s32.totalorder %s39, 11
        %s786 = scalar_select %p785, %s39, 11
        %s787 = smul.addr %s786, 4
        %s788 = scalar_lea.vmem %s14, %s787
        %p789 = scmp.lt.s32.totalorder %s39, 11
        %s790 = scalar_select %p789, %s39, 11
        %s791 = smul.addr %s790, 64
        %s792 = smul.addr %s791, 4
        %s793 = scalar_lea.vmem %s15, %s792
        %p794 = scmp.lt.s32.totalorder %s39, 11
        %s795 = scalar_select %p794, %s39, 11
        %s796 = scalar_lea.vmem %s16, %s795
        %s797 = smul.u32 2, %s38
        %p798 = scmp.lt.s32.totalorder %s797, 1
        %s799 = scalar_select %p798, %s797, 1
        %s800 = smul.addr %s799, 3
        %s801 = smul.addr %s800, 8
        %s802 = scalar_lea.vmem %s17, %s801
        %s803 = smul.u32 2, %s38
        %s805 = sld [smem:[#allocation3 + %s39]]
        %p806 = scmp.eq.s32.totalorder %s39, 0
        // Predicated region
        $region93: #{clip_mapper_forward.1} parent=83 // pred_check
          %p807 = pneg %p806
        $region94: #{clip_mapper_forward.1} parent=83 // pred_check_branch
          %809 = sbr.rel (%p807) target = $region96
        $region95: #{clip_mapper_forward.1} parent=83 // pred_region
          %v810 = vld [vmem:[%s740] sm:$0xff]
          %v811 = vld [vmem:[%s740 + $0x8] sm:$0xff]
          %v812 = vld [vmem:[%s740 + $0x10] sm:$0xff]
          %v813 = vld [vmem:[%s740 + $0x18] sm:$0xff]
          %v814 = vld [vmem:[%s740 + $0x20] sm:$0xff]
          %v815 = vld [vmem:[%s740 + $0x28] sm:$0xff]
          %v816 = vld [vmem:[#allocation4] sm:$0x1]
          %v817 = vld [vmem:[#allocation6] sm:$0x1]
          %818 = vadd.xlane.f32.xlu0 %v810
          %v819 = vpop.xlane.xlu0 %818
          %820 = vadd.xlane.f32.xlu0 %v811
          %v821 = vpop.xlane.xlu0 %820
          %822 = vadd.xlane.f32.xlu0 %v812
          %v823 = vpop.xlane.xlu0 %822
          %824 = vadd.xlane.f32.xlu0 %v813
          %v825 = vpop.xlane.xlu0 %824
          %826 = vadd.xlane.f32.xlu0 %v814
          %v827 = vpop.xlane.xlu0 %826
          %828 = vadd.xlane.f32.xlu0 %v815
          %v829 = vpop.xlane.xlu0 %828
          %v830 = vrcp.pop 128.0
          %v831 = vmul.f32 %v819, %v830
          %v832 = vmul.f32 %v821, %v830
          %v833 = vmul.f32 %v823, %v830
          %v834 = vmul.f32 %v825, %v830
          %v835 = vmul.f32 %v827, %v830
          %v836 = vmul.f32 %v829, %v830
          %v837 = vsub.f32 %v810, %v831
          %v838 = vsub.f32 %v811, %v832
          %v839 = vsub.f32 %v812, %v833
          %v840 = vsub.f32 %v813, %v834
          %v841 = vsub.f32 %v814, %v835
          %v842 = vsub.f32 %v815, %v836
          %v843 = vmul.f32 %v837, %v837
          %v844 = vmul.f32 %v838, %v838
          %v845 = vmul.f32 %v839, %v839
          %v846 = vmul.f32 %v840, %v840
          %v847 = vmul.f32 %v841, %v841
          %v848 = vmul.f32 %v842, %v842
          %849 = vadd.xlane.f32.xlu0 %v843
          %v850 = vpop.xlane.xlu0 %849
          %851 = vadd.xlane.f32.xlu0 %v844
          %v852 = vpop.xlane.xlu0 %851
          %853 = vadd.xlane.f32.xlu0 %v845
          %v854 = vpop.xlane.xlu0 %853
          %855 = vadd.xlane.f32.xlu0 %v846
          %v856 = vpop.xlane.xlu0 %855
          %857 = vadd.xlane.f32.xlu0 %v847
          %v858 = vpop.xlane.xlu0 %857
          %859 = vadd.xlane.f32.xlu0 %v848
          %v860 = vpop.xlane.xlu0 %859
          %v861 = vmul.f32 %v850, %v830
          %v862 = vmul.f32 %v852, %v830
          %v863 = vmul.f32 %v854, %v830
          %v864 = vmul.f32 %v856, %v830
          %v865 = vmul.f32 %v858, %v830
          %v866 = vmul.f32 %v860, %v830
          %v867 = vadd.f32 %v861, 1e-05
          %v868 = vadd.f32 %v862, 1e-05
          %v869 = vadd.f32 %v863, 1e-05
          %v870 = vadd.f32 %v864, 1e-05
          %v871 = vadd.f32 %v865, 1e-05
          %v872 = vadd.f32 %v866, 1e-05
          %v873 = vrsqrt.pop %v867
          %v874 = vrsqrt.pop %v868
          %v875 = vrsqrt.pop %v869
          %v876 = vrsqrt.pop %v870
          %v877 = vrsqrt.pop %v871
          %v878 = vrsqrt.pop %v872
          %v879 = vmul.f32 %v837, %v873
          %v880 = vmul.f32 %v838, %v874
          %v881 = vmul.f32 %v839, %v875
          %v882 = vmul.f32 %v840, %v876
          %v883 = vmul.f32 %v841, %v877
          %v884 = vmul.f32 %v842, %v878
          %v886 = vlaneseq
          %v887 = vshrl.u32 %v886, 7
          %v888 = vsub.s32 0, %v887
          %v889 = vrot.slane %v816, %v888
          %v891 = vmul.f32 %v879, %v889
          %v892 = vmul.f32 %v880, %v889
          %v893 = vmul.f32 %v881, %v889
          %v894 = vmul.f32 %v882, %v889
          %v895 = vmul.f32 %v883, %v889
          %v896 = vmul.f32 %v884, %v889
          %v898 = vlaneseq
          %v899 = vshrl.u32 %v898, 7
          %v900 = vsub.s32 0, %v899
          %v901 = vrot.slane %v817, %v900
          %v903 = vadd.f32 %v891, %v901
          %v904 = vadd.f32 %v892, %v901
          %v905 = vadd.f32 %v893, %v901
          %v906 = vadd.f32 %v894, %v901
          %v907 = vadd.f32 %v895, %v901
          %v908 = vadd.f32 %v896, %v901
          %909 = vst [vmem:[%s802] sm:$0xff] %v903
          %910 = vst [vmem:[%s802 + $0x8] sm:$0xff] %v904
          %911 = vst [vmem:[%s802 + $0x10] sm:$0xff] %v905
          %912 = vst [vmem:[%s802 + $0x18] sm:$0xff] %v906
          %913 = vst [vmem:[%s802 + $0x20] sm:$0xff] %v907
          %914 = vst [vmem:[%s802 + $0x28] sm:$0xff] %v908
        $region96: #{clip_mapper_forward.1} parent=83 // pred_fallthru
          _
        %p915 = scmp.gt.s32.totalorder %s805, 0
        // Predicated region
        $region97: #{clip_mapper_forward.1} parent=83 // pred_check
          %p916 = pneg %p915
        $region98: #{clip_mapper_forward.1} parent=83 // pred_check_branch
          %918 = sbr.rel (%p916) target = $region100
        $region99: #{clip_mapper_forward.1} parent=83 // pred_region
          %v919 = vld [vmem:[%s749] sm:$0x1]
          %v920 = vld [vmem:[%s749 + $0x1] sm:$0x1]
          %921 = vst [vmem:[%s802 + $0x11] sm:$0x1] %v919
          %922 = vst [vmem:[%s802 + $0x29] sm:$0x1] %v920
        $region100: #{clip_mapper_forward.1} parent=83 // pred_fallthru
          _
        %v923 = vld [vmem:[%s802] sm:$0xff]
        %v924 = vld [vmem:[%s802 + $0x8] sm:$0xff]
        %v925 = vld [vmem:[%s802 + $0x10] sm:$0xff]
        %v926 = vld [vmem:[%s802 + $0x18] sm:$0xff]
        %v927 = vld [vmem:[%s802 + $0x20] sm:$0xff]
        %v928 = vld [vmem:[%s802 + $0x28] sm:$0xff]
        %v929 = vld [vmem:[%s753] sm:$0x1]
        %v930 = vld [vmem:[%s756] sm:$0x1]
        %931 = vadd.xlane.f32.xlu0 %v923
        %v932 = vpop.xlane.xlu0 %931
        %933 = vadd.xlane.f32.xlu0 %v924
        %v934 = vpop.xlane.xlu0 %933
        %935 = vadd.xlane.f32.xlu0 %v925
        %v936 = vpop.xlane.xlu0 %935
        %937 = vadd.xlane.f32.xlu0 %v926
        %v938 = vpop.xlane.xlu0 %937
        %939 = vadd.xlane.f32.xlu0 %v927
        %v940 = vpop.xlane.xlu0 %939
        %941 = vadd.xlane.f32.xlu0 %v928
        %v942 = vpop.xlane.xlu0 %941
        %v943 = vrcp.pop 128.0
        %v944 = vmul.f32 %v932, %v943
        %v945 = vmul.f32 %v934, %v943
        %v946 = vmul.f32 %v936, %v943
        %v947 = vmul.f32 %v938, %v943
        %v948 = vmul.f32 %v940, %v943
        %v949 = vmul.f32 %v942, %v943
        %v950 = vsub.f32 %v923, %v944
        %v951 = vsub.f32 %v924, %v945
        %v952 = vsub.f32 %v925, %v946
        %v953 = vsub.f32 %v926, %v947
        %v954 = vsub.f32 %v927, %v948
        %v955 = vsub.f32 %v928, %v949
        %v956 = vmul.f32 %v950, %v950
        %v957 = vmul.f32 %v951, %v951
        %v958 = vmul.f32 %v952, %v952
        %v959 = vmul.f32 %v953, %v953
        %v960 = vmul.f32 %v954, %v954
        %v961 = vmul.f32 %v955, %v955
        %962 = vadd.xlane.f32.xlu0 %v956
        %v963 = vpop.xlane.xlu0 %962
        %964 = vadd.xlane.f32.xlu0 %v957
        %v965 = vpop.xlane.xlu0 %964
        %966 = vadd.xlane.f32.xlu0 %v958
        %v967 = vpop.xlane.xlu0 %966
        %968 = vadd.xlane.f32.xlu0 %v959
        %v969 = vpop.xlane.xlu0 %968
        %970 = vadd.xlane.f32.xlu0 %v960
        %v971 = vpop.xlane.xlu0 %970
        %972 = vadd.xlane.f32.xlu0 %v961
        %v973 = vpop.xlane.xlu0 %972
        %v974 = vmul.f32 %v963, %v943
        %v975 = vmul.f32 %v965, %v943
        %v976 = vmul.f32 %v967, %v943
        %v977 = vmul.f32 %v969, %v943
        %v978 = vmul.f32 %v971, %v943
        %v979 = vmul.f32 %v973, %v943
        %v980 = vadd.f32 %v974, 1e-05
        %v981 = vadd.f32 %v975, 1e-05
        %v982 = vadd.f32 %v976, 1e-05
        %v983 = vadd.f32 %v977, 1e-05
        %v984 = vadd.f32 %v978, 1e-05
        %v985 = vadd.f32 %v979, 1e-05
        %v986 = vrsqrt.pop %v980
        %v987 = vrsqrt.pop %v981
        %v988 = vrsqrt.pop %v982
        %v989 = vrsqrt.pop %v983
        %v990 = vrsqrt.pop %v984
        %v991 = vrsqrt.pop %v985
        %v992 = vmul.f32 %v950, %v986
        %v993 = vmul.f32 %v951, %v987
        %v994 = vmul.f32 %v952, %v988
        %v995 = vmul.f32 %v953, %v989
        %v996 = vmul.f32 %v954, %v990
        %v997 = vmul.f32 %v955, %v991
        %v999 = vlaneseq
        %v1000 = vshrl.u32 %v999, 7
        %v1001 = vsub.s32 0, %v1000
        %v1002 = vrot.slane %v929, %v1001
        %v1004 = vmul.f32 %v992, %v1002
        %v1005 = vmul.f32 %v993, %v1002
        %v1006 = vmul.f32 %v994, %v1002
        %v1007 = vmul.f32 %v995, %v1002
        %v1008 = vmul.f32 %v996, %v1002
        %v1009 = vmul.f32 %v997, %v1002
        %v1011 = vlaneseq
        %v1012 = vshrl.u32 %v1011, 7
        %v1013 = vsub.s32 0, %v1012
        %v1014 = vrot.slane %v930, %v1013
        %v1016 = vadd.f32 %v1004, %v1014
        %v1017 = vadd.f32 %v1005, %v1014
        %v1018 = vadd.f32 %v1006, %v1014
        %v1019 = vadd.f32 %v1007, %v1014
        %v1020 = vadd.f32 %v1008, %v1014
        %v1021 = vadd.f32 %v1009, %v1014
        %v1022 = vpack.c.bf16 %v1017, %v1016
        %v1023 = vpack.c.bf16 %v1019, %v1018
        %v1024 = vpack.c.bf16 %v1021, %v1020
        %v1025 = vld [vmem:[%s761] sm:$0xff]
        %v1026 = vld [vmem:[%s761 + $0x8] sm:$0xf]
        %v1027 = vld [vmem:[%s761 + $0xc] sm:$0xff]
        %v1028 = vld [vmem:[%s761 + $0x14] sm:$0xf]
        %v1029 = vld [vmem:[%s761 + $0x18] sm:$0xff]
        %v1030 = vld [vmem:[%s761 + $0x20] sm:$0xf]
        %v1031 = vld [vmem:[%s761 + $0x24] sm:$0xff]
        %v1032 = vld [vmem:[%s761 + $0x2c] sm:$0xf]
        %v1033 = vld [vmem:[%s761 + $0x30] sm:$0xff]
        %v1034 = vld [vmem:[%s761 + $0x38] sm:$0xf]
        %v1035 = vld [vmem:[%s761 + $0x3c] sm:$0xff]
        %v1036 = vld [vmem:[%s761 + $0x44] sm:$0xf]
        %v1037 = vld [vmem:[%s761 + $0x48] sm:$0xff]
        %v1038 = vld [vmem:[%s761 + $0x50] sm:$0xf]
        %v1039 = vld [vmem:[%s761 + $0x54] sm:$0xff]
        %v1040 = vld [vmem:[%s761 + $0x5c] sm:$0xf]
        %v1041 = vld [vmem:[%s761 + $0x60] sm:$0xff]
        %v1042 = vld [vmem:[%s761 + $0x68] sm:$0xf]
        %v1043 = vld [vmem:[%s761 + $0x6c] sm:$0xff]
        %v1044 = vld [vmem:[%s761 + $0x74] sm:$0xf]
        %v1045 = vld [vmem:[%s761 + $0x78] sm:$0xff]
        %v1046 = vld [vmem:[%s761 + $0x80] sm:$0xf]
        %v1047 = vld [vmem:[%s761 + $0x84] sm:$0xff]
        %v1048 = vld [vmem:[%s761 + $0x8c] sm:$0xf]
        %v1049 = vld [vmem:[%s761 + $0x90] sm:$0xff]
        %v1050 = vld [vmem:[%s761 + $0x98] sm:$0xf]
        %v1051 = vld [vmem:[%s761 + $0x9c] sm:$0xff]
        %v1052 = vld [vmem:[%s761 + $0xa4] sm:$0xf]
        %v1053 = vld [vmem:[%s761 + $0xa8] sm:$0xff]
        %v1054 = vld [vmem:[%s761 + $0xb0] sm:$0xf]
        %v1055 = vld [vmem:[%s761 + $0xb4] sm:$0xff]
        %v1056 = vld [vmem:[%s761 + $0xbc] sm:$0xf]
        %v1057 = vld [vmem:[%s765] sm:$0x7]
        %v1059 = vlaneseq
        %v1060 = vshrl.u32 %v1059, 7
        %v1061 = vsub.s32 0, %v1060
        %v1062 = vrot.slane %v1057, %v1061
        %v1063 = vlaneseq
        %v1064 = vshrl.u32 %v1063, 7
        %v1065 = vsub.s32 1, %v1064
        %v1066 = vrot.slane %v1057, %v1065
        %v1067 = vlaneseq
        %v1068 = vshrl.u32 %v1067, 7
        %v1069 = vsub.s32 2, %v1068
        %v1070 = vrot.slane %v1057, %v1069
        %v1106 = vunpack.c.l.b16 %v1025
        %v1107 = vunpack.c.h.b16 %v1025
        %v1108 = vunpack.c.l.b16 %v1026
        %v1109 = vunpack.c.l.b16 %v1027
        %v1110 = vunpack.c.h.b16 %v1027
        %v1111 = vunpack.c.l.b16 %v1028
        %v1112 = vunpack.c.l.b16 %v1029
        %v1113 = vunpack.c.h.b16 %v1029
        %v1114 = vunpack.c.l.b16 %v1030
        %v1115 = vunpack.c.l.b16 %v1031
        %v1116 = vunpack.c.h.b16 %v1031
        %v1117 = vunpack.c.l.b16 %v1032
        %v1118 = vunpack.c.l.b16 %v1033
        %v1119 = vunpack.c.h.b16 %v1033
        %v1120 = vunpack.c.l.b16 %v1034
        %v1121 = vunpack.c.l.b16 %v1035
        %v1122 = vunpack.c.h.b16 %v1035
        %v1123 = vunpack.c.l.b16 %v1036
        %v1124 = vunpack.c.l.b16 %v1037
        %v1125 = vunpack.c.h.b16 %v1037
        %v1126 = vunpack.c.l.b16 %v1038
        %v1127 = vunpack.c.l.b16 %v1039
        %v1128 = vunpack.c.h.b16 %v1039
        %v1129 = vunpack.c.l.b16 %v1040
        %v1130 = vunpack.c.l.b16 %v1041
        %v1131 = vunpack.c.h.b16 %v1041
        %v1132 = vunpack.c.l.b16 %v1042
        %v1133 = vunpack.c.l.b16 %v1043
        %v1134 = vunpack.c.h.b16 %v1043
        %v1135 = vunpack.c.l.b16 %v1044
        %v1136 = vunpack.c.l.b16 %v1045
        %v1137 = vunpack.c.h.b16 %v1045
        %v1138 = vunpack.c.l.b16 %v1046
        %v1139 = vunpack.c.l.b16 %v1047
        %v1140 = vunpack.c.h.b16 %v1047
        %v1141 = vunpack.c.l.b16 %v1048
        %v1142 = vunpack.c.l.b16 %v1049
        %v1143 = vunpack.c.h.b16 %v1049
        %v1144 = vunpack.c.l.b16 %v1050
        %v1145 = vunpack.c.l.b16 %v1051
        %v1146 = vunpack.c.h.b16 %v1051
        %v1147 = vunpack.c.l.b16 %v1052
        %v1148 = vunpack.c.l.b16 %v1053
        %v1149 = vunpack.c.h.b16 %v1053
        %v1150 = vunpack.c.l.b16 %v1054
        %v1151 = vunpack.c.l.b16 %v1055
        %v1152 = vunpack.c.h.b16 %v1055
        %v1153 = vunpack.c.l.b16 %v1056
        %v1154 = vpack.c.b16 %v1109, %v1106
        %v1155 = vpack.c.b16 %v1110, %v1107
        %v1156 = vpack.c.b16 %v1111, %v1108
        %v1157 = vpack.c.b16 %v1115, %v1112
        %v1158 = vpack.c.b16 %v1116, %v1113
        %v1159 = vpack.c.b16 %v1117, %v1114
        %v1160 = vpack.c.b16 %v1121, %v1118
        %v1161 = vpack.c.b16 %v1122, %v1119
        %v1162 = vpack.c.b16 %v1123, %v1120
        %v1163 = vpack.c.b16 %v1127, %v1124
        %v1164 = vpack.c.b16 %v1128, %v1125
        %v1165 = vpack.c.b16 %v1129, %v1126
        %v1166 = vpack.c.b16 %v1133, %v1130
        %v1167 = vpack.c.b16 %v1134, %v1131
        %v1168 = vpack.c.b16 %v1135, %v1132
        %v1169 = vpack.c.b16 %v1139, %v1136
        %v1170 = vpack.c.b16 %v1140, %v1137
        %v1171 = vpack.c.b16 %v1141, %v1138
        %v1172 = vpack.c.b16 %v1145, %v1142
        %v1173 = vpack.c.b16 %v1146, %v1143
        %v1174 = vpack.c.b16 %v1147, %v1144
        %v1175 = vpack.c.b16 %v1151, %v1148
        %v1176 = vpack.c.b16 %v1152, %v1149
        %v1177 = vpack.c.b16 %v1153, %v1150
        %1202 = vmatprep.subr.bf16.mxu0 %v1155
        %1203 = vmatpush1.bf16.msra.mxu0 %v1154
        %1204 = vmatprep.subr.bf16.mxu0 %v1158
        %1205 = vmatpush1.bf16.msra.mxu0 %v1157
        %1206 = vmatprep.subr.bf16.mxu0 %v1161
        %1207 = vmatpush1.bf16.msra.mxu0 %v1160
        %1208 = vmatprep.subr.bf16.mxu0 %v1164
        %1209 = vmatpush1.bf16.msra.mxu0 %v1163
        %1210 = vmatprep.subr.bf16.mxu0 %v1167
        %1211 = vmatpush1.bf16.msra.mxu0 %v1166
        %1212 = vmatprep.subr.bf16.mxu0 %v1170
        %1213 = vmatpush1.bf16.msra.mxu0 %v1169
        %1214 = vmatprep.subr.bf16.mxu0 %v1173
        %1215 = vmatpush1.bf16.msra.mxu0 %v1172
        %1216 = vmatprep.subr.bf16.mxu0 %v1176
        %1217 = vmatpush1.bf16.msra.mxu0 %v1175
        %1218 = vmatprep.subr.bf16.mxu0 0
        %1219 = vmatpush1.bf16.msra.mxu0 0
        %1220 = vmatprep.subr.bf16.mxu0 0
        %1221 = vmatpush1.bf16.msra.mxu0 0
        %1222 = vmatprep.subr.bf16.mxu0 0
        %1223 = vmatpush1.bf16.msra.mxu0 0
        %1224 = vmatprep.subr.bf16.mxu0 0
        %1225 = vmatpush1.bf16.msra.mxu0 0
        %1226 = vmatprep.subr.bf16.mxu0 0
        %1227 = vmatpush1.bf16.msra.mxu0 0
        %1228 = vmatprep.subr.bf16.mxu0 0
        %1229 = vmatpush1.bf16.msra.mxu0 0
        %1230 = vmatprep.subr.bf16.mxu0 0
        %1231 = vmatpush1.bf16.msra.mxu0 0
        %1232 = vmatprep.subr.bf16.mxu0 0
        %1233 = vmatpush1.bf16.msra.mxu0 0
        %1234 = vmatprep.mubr.bf16.mxu0 0
        %1235 = vmatmul.mubr.bf16.gmra.mrb[0].mxu0 %v1022
        %v1236 = vpop.f32.mrb[0].mxu0
        %v1237 = vadd.f32 %v1062, %v1236
        %v1238 = vpop.f32.mrb[0].mxu0
        %v1239 = vadd.f32 %v1066, %v1238
        %v1240 = vpop.f32.mrb[0].mxu0
        %v1241 = vadd.f32 %v1062, %v1240
        %v1242 = vpop.f32.mrb[0].mxu0
        %v1243 = vadd.f32 %v1066, %v1242
        %1244 = vmatprep.mubr.bf16.mxu0 0
        %1245 = vmatmul.mubr.bf16.gmra.mrb[0].mxu0 %v1023
        %v1246 = vpop.f32.mrb[0].mxu0
        %v1247 = vadd.f32 %v1062, %v1246
        %v1248 = vpop.f32.mrb[0].mxu0
        %v1249 = vadd.f32 %v1066, %v1248
        %v1250 = vpop.f32.mrb[0].mxu0
        %v1251 = vadd.f32 %v1062, %v1250
        %v1252 = vpop.f32.mrb[0].mxu0
        %v1253 = vadd.f32 %v1066, %v1252
        %1254 = vmatprep.mubr.bf16.mxu0 0
        %1255 = vmatmul.mubr.bf16.gmra.mrb[0].mxu0 %v1024
        %v1256 = vpop.f32.mrb[0].mxu0
        %v1257 = vadd.f32 %v1062, %v1256
        %v1258 = vpop.f32.mrb[0].mxu0
        %v1259 = vadd.f32 %v1066, %v1258
        %v1260 = vpop.f32.mrb[0].mxu0
        %v1261 = vadd.f32 %v1062, %v1260
        %v1262 = vpop.f32.mrb[0].mxu0
        %v1263 = vadd.f32 %v1066, %v1262
        %1264 = vdwg.mxu0
        %1265 = vmatprep.subr.bf16.mxu0 0
        %1266 = vmatpush1.bf16.msra.mxu0 %v1156
        %1267 = vmatprep.subr.bf16.mxu0 0
        %1268 = vmatpush1.bf16.msra.mxu0 %v1159
        %1269 = vmatprep.subr.bf16.mxu0 0
        %1270 = vmatpush1.bf16.msra.mxu0 %v1162
        %1271 = vmatprep.subr.bf16.mxu0 0
        %1272 = vmatpush1.bf16.msra.mxu0 %v1165
        %1273 = vmatprep.subr.bf16.mxu0 0
        %1274 = vmatpush1.bf16.msra.mxu0 %v1168
        %1275 = vmatprep.subr.bf16.mxu0 0
        %1276 = vmatpush1.bf16.msra.mxu0 %v1171
        %1277 = vmatprep.subr.bf16.mxu0 0
        %1278 = vmatpush1.bf16.msra.mxu0 %v1174
        %1279 = vmatprep.subr.bf16.mxu0 0
        %1280 = vmatpush1.bf16.msra.mxu0 %v1177
        %1281 = vmatprep.subr.bf16.mxu0 0
        %1282 = vmatpush1.bf16.msra.mxu0 0
        %1283 = vmatprep.subr.bf16.mxu0 0
        %1284 = vmatpush1.bf16.msra.mxu0 0
        %1285 = vmatprep.subr.bf16.mxu0 0
        %1286 = vmatpush1.bf16.msra.mxu0 0
        %1287 = vmatprep.subr.bf16.mxu0 0
        %1288 = vmatpush1.bf16.msra.mxu0 0
        %1289 = vmatprep.subr.bf16.mxu0 0
        %1290 = vmatpush1.bf16.msra.mxu0 0
        %1291 = vmatprep.subr.bf16.mxu0 0
        %1292 = vmatpush1.bf16.msra.mxu0 0
        %1293 = vmatprep.subr.bf16.mxu0 0
        %1294 = vmatpush1.bf16.msra.mxu0 0
        %1295 = vmatprep.subr.bf16.mxu0 0
        %1296 = vmatpush1.bf16.msra.mxu0 0
        %1297 = vmatprep.mubr.bf16.mxu0 0
        %1298 = vmatmul.mubr.bf16.gmra.mrb[0].mxu0 %v1022
        %v1299 = vpop.f32.mrb[0].mxu0
        %v1300 = vadd.f32 %v1070, %v1299
        %v1301 = vpop.f32.mrb[0].mxu0
        %v1302 = vpop.f32.mrb[0].mxu0
        %v1303 = vadd.f32 %v1070, %v1302
        %v1304 = vpop.f32.mrb[0].mxu0
        %1305 = vmatprep.mubr.bf16.mxu0 0
        %1306 = vmatmul.mubr.bf16.gmra.mrb[0].mxu0 %v1023
        %v1307 = vpop.f32.mrb[0].mxu0
        %v1308 = vadd.f32 %v1070, %v1307
        %v1309 = vpop.f32.mrb[0].mxu0
        %v1310 = vpop.f32.mrb[0].mxu0
        %v1311 = vadd.f32 %v1070, %v1310
        %v1312 = vpop.f32.mrb[0].mxu0
        %1313 = vmatprep.mubr.bf16.mxu0 0
        %1314 = vmatmul.mubr.bf16.gmra.mrb[0].mxu0 %v1024
        %v1315 = vpop.f32.mrb[0].mxu0
        %v1316 = vadd.f32 %v1070, %v1315
        %v1317 = vpop.f32.mrb[0].mxu0
        %v1318 = vpop.f32.mrb[0].mxu0
        %v1319 = vadd.f32 %v1070, %v1318
        %v1320 = vpop.f32.mrb[0].mxu0
        %1321 = vdwg.mxu0
        %v1322 = vpack.c.bf16 %v1241, %v1237
        %v1323 = vpack.c.bf16 %v1243, %v1239
        %v1324 = vpack.c.bf16 %v1303, %v1300
        %v1325 = vpack.c.bf16 %v1251, %v1247
        %v1326 = vpack.c.bf16 %v1253, %v1249
        %v1327 = vpack.c.bf16 %v1311, %v1308
        %v1328 = vpack.c.bf16 %v1261, %v1257
        %v1329 = vpack.c.bf16 %v1263, %v1259
        %v1330 = vpack.c.bf16 %v1319, %v1316
        %v1331 = vlaneseq
        %v1332 = vand.u32 %v1331, 127
        %s1333 = sadd.s32 %s805, 17
        %v1334 = vstv %s1333
        %vm1335 = vcmp.lt.s32.totalorder %v1332, %v1334
        %v1336 = vsel %vm1335, 0.0, -1e+30
        %v1337 = vld [vmem:[%s773] sm:$0x1]
        %v1339 = vlaneseq
        %v1340 = vshrl.u32 %v1339, 7
        %v1341 = vsub.s32 0, %v1340
        %v1342 = vrot.slane %v1337, %v1341
        %v1344 = vadd.f32 %v923, %v1342
        %v1345 = vadd.f32 %v924, %v1342
        %v1346 = vadd.f32 %v925, %v1342
        %vm1347 = vcmask 261120
        %v1349 = vsel %vm1347, %v1322, 0
        %v1352 = vsel %vm1347, %v1325, 0
        %v1355 = vsel %vm1347, %v1323, 0
        %v1358 = vsel %vm1347, %v1326, 0
        %1360 = vmatprep.subr.bf16.mxu0 0
        %1361 = vmatpush1.bf16.xpose.msra.mxu0 %v1355
        %1362 = vmatprep.subr.bf16.mxu0 0
        %1363 = vmatpush1.bf16.xpose.msra.mxu0 %v1358
        %1364 = vmatprep.subr.bf16.mxu0 0
        %1365 = vmatpush1.bf16.xpose.msra.mxu0 0
        %1366 = vmatprep.subr.bf16.mxu0 0
        %1367 = vmatpush1.bf16.xpose.msra.mxu0 0
        %1368 = vmatprep.subr.bf16.mxu0 0
        %1369 = vmatpush1.bf16.xpose.msra.mxu0 0
        %1370 = vmatprep.subr.bf16.mxu0 0
        %1371 = vmatpush1.bf16.xpose.msra.mxu0 0
        %1372 = vmatprep.subr.bf16.mxu0 0
        %1373 = vmatpush1.bf16.xpose.msra.mxu0 0
        %1374 = vmatprep.subr.bf16.mxu0 0
        %1375 = vmatpush1.bf16.xpose.msra.mxu0 0
        %1376 = vmatprep.subr.bf16.mxu0 0
        %1377 = vmatpush1.bf16.xpose.msra.mxu0 0
        %1378 = vmatprep.subr.bf16.mxu0 0
        %1379 = vmatpush1.bf16.xpose.msra.mxu0 0
        %1380 = vmatprep.subr.bf16.mxu0 0
        %1381 = vmatpush1.bf16.xpose.msra.mxu0 0
        %1382 = vmatprep.subr.bf16.mxu0 0
        %1383 = vmatpush1.bf16.xpose.msra.mxu0 0
        %1384 = vmatprep.subr.bf16.mxu0 0
        %1385 = vmatpush1.bf16.xpose.msra.mxu0 0
        %1386 = vmatprep.subr.bf16.mxu0 0
        %1387 = vmatpush1.bf16.xpose.msra.mxu0 0
        %1388 = vmatprep.subr.bf16.mxu0 0
        %1389 = vmatpush1.bf16.xpose.msra.mxu0 0
        %1390 = vmatprep.subr.bf16.mxu0 0
        %1391 = vmatpush1.bf16.xpose.msra.mxu0 0
        %1392 = vmatprep.mubr.bf16.mxu0 0
        %1393 = vmatmul.mubr.bf16.gmra.mrb[0].mxu0 %v1349
        %v1394 = vpop.f32.mrb[0].mxu0
        %v1395 = vadd.f32 %v1336, %v1394
        %v1396 = vpop.f32.mrb[0].mxu0
        %v1397 = vpop.f32.mrb[0].mxu0
        %v1398 = vadd.f32 %v1336, %v1397
        %v1399 = vpop.f32.mrb[0].mxu0
        %1400 = vmatprep.mubr.bf16.mxu0 0
        %1401 = vmatmul.mubr.bf16.gmra.mrb[0].mxu0 %v1352
        %v1402 = vpop.f32.mrb[0].mxu0
        %v1403 = vadd.f32 %v1336, %v1402
        %v1404 = vpop.f32.mrb[0].mxu0
        %v1405 = vpop.f32.mrb[0].mxu0
        %v1406 = vpop.f32.mrb[0].mxu0
        %1407 = vdwg.mxu0
        %vm1408 = vcmask 195584
        %v1409 = vsel %vm1408, %v1395, -inf
        %1410 = vmax.xlane.f32.xlu0 %v1409
        %v1411 = vpop.xlane.xlu0 %1410
        %v1412 = vsel %vm1408, %v1398, -inf
        %1413 = vmax.xlane.f32.xlu0 %v1412
        %v1414 = vpop.xlane.xlu0 %1413
        %v1415 = vsel %vm1408, %v1403, -inf
        %1416 = vmax.xlane.f32.xlu0 %v1415
        %v1417 = vpop.xlane.xlu0 %1416
        %v1418 = vsub.f32 %v1395, %v1411
        %v1419 = vsub.f32 %v1398, %v1414
        %v1420 = vsub.f32 %v1403, %v1417
        %v1421 = vmul.f32 %v1418, 1.442695
        %v1422 = vpow.pop %v1421
        %v1423 = vmul.f32 %v1419, 1.442695
        %v1424 = vpow.pop %v1423
        %v1425 = vmul.f32 %v1420, 1.442695
        %v1426 = vpow.pop %v1425
        %v1427 = vsel %vm1408, %v1422, 0.0
        %1428 = vadd.xlane.f32.xlu0 %v1427
        %v1429 = vpop.xlane.xlu0 %1428
        %v1430 = vsel %vm1408, %v1424, 0.0
        %1431 = vadd.xlane.f32.xlu0 %v1430
        %v1432 = vpop.xlane.xlu0 %1431
        %v1433 = vsel %vm1408, %v1426, 0.0
        %1434 = vadd.xlane.f32.xlu0 %v1433
        %v1435 = vpop.xlane.xlu0 %1434
        %v1436 = vrcp.pop %v1429
        %v1437 = vrcp.pop %v1432
        %v1438 = vrcp.pop %v1435
        %v1439 = vmul.f32 %v1422, %v1436
        %v1440 = vmul.f32 %v1424, %v1437
        %v1441 = vmul.f32 %v1426, %v1438
        %v1442 = vpack.c.bf16 %v1440, %v1439
        %v1443 = vpack.c.bf16 %v1441, %v1441
        %v1445 = vsel %vm1408, %v1442, 0
        %v1448 = vsel %vm1408, %v1443, 0
        %vm1450 = vcmask 1043456
        %v1452 = vsel %vm1450, %v1327, 0
        %1454 = vmatprep.subr.bf16.mxu0 0
        %1455 = vmatpush1.bf16.msra.mxu0 %v1324
        %1456 = vmatprep.subr.bf16.mxu0 0
        %1457 = vmatpush1.bf16.msra.mxu0 %v1452
        %1458 = vmatprep.subr.bf16.mxu0 0
        %1459 = vmatpush1.bf16.msra.mxu0 0
        %1460 = vmatprep.subr.bf16.mxu0 0
        %1461 = vmatpush1.bf16.msra.mxu0 0
        %1462 = vmatprep.subr.bf16.mxu0 0
        %1463 = vmatpush1.bf16.msra.mxu0 0
        %1464 = vmatprep.subr.bf16.mxu0 0
        %1465 = vmatpush1.bf16.msra.mxu0 0
        %1466 = vmatprep.subr.bf16.mxu0 0
        %1467 = vmatpush1.bf16.msra.mxu0 0
        %1468 = vmatprep.subr.bf16.mxu0 0
        %1469 = vmatpush1.bf16.msra.mxu0 0
        %1470 = vmatprep.subr.bf16.mxu0 0
        %1471 = vmatpush1.bf16.msra.mxu0 0
        %1472 = vmatprep.subr.bf16.mxu0 0
        %1473 = vmatpush1.bf16.msra.mxu0 0
        %1474 = vmatprep.subr.bf16.mxu0 0
        %1475 = vmatpush1.bf16.msra.mxu0 0
        %1476 = vmatprep.subr.bf16.mxu0 0
        %1477 = vmatpush1.bf16.msra.mxu0 0
        %1478 = vmatprep.subr.bf16.mxu0 0
        %1479 = vmatpush1.bf16.msra.mxu0 0
        %1480 = vmatprep.subr.bf16.mxu0 0
        %1481 = vmatpush1.bf16.msra.mxu0 0
        %1482 = vmatprep.subr.bf16.mxu0 0
        %1483 = vmatpush1.bf16.msra.mxu0 0
        %1484 = vmatprep.subr.bf16.mxu0 0
        %1485 = vmatpush1.bf16.msra.mxu0 0
        %1486 = vmatprep.mubr.bf16.mxu0 0
        %1487 = vmatmul.mubr.bf16.gmra.mrb[0].mxu0 %v1445
        %v1488 = vpop.f32.mrb[0].mxu0
        %v1489 = vadd.f32 0.0, %v1488
        %v1490 = vpop.f32.mrb[0].mxu0
        %v1491 = vpop.f32.mrb[0].mxu0
        %v1492 = vadd.f32 0.0, %v1491
        %v1493 = vpop.f32.mrb[0].mxu0
        %1494 = vmatprep.mubr.bf16.mxu0 0
        %1495 = vmatmul.mubr.bf16.gmra.mrb[0].mxu0 %v1448
        %v1496 = vpop.f32.mrb[0].mxu0
        %v1497 = vadd.f32 0.0, %v1496
        %v1498 = vpop.f32.mrb[0].mxu0
        %v1499 = vpop.f32.mrb[0].mxu0
        %v1500 = vpop.f32.mrb[0].mxu0
        %1501 = vdwg.mxu0
        %v1502 = vpack.c.bf16 %v1492, %v1489
        %v1503 = vpack.c.bf16 %v1497, %v1497
        %v1504 = vld [vmem:[%s770] sm:$0xf]
        %v1505 = vld [vmem:[%s770 + $0x4] sm:$0xf]
        %v1506 = vld [vmem:[%s770 + $0x8] sm:$0xf]
        %v1507 = vld [vmem:[%s770 + $0xc] sm:$0xf]
        %v1512 = vunpack.c.l.b16 %v1504
        %v1513 = vunpack.c.l.b16 %v1505
        %v1514 = vunpack.c.l.b16 %v1506
        %v1515 = vunpack.c.l.b16 %v1507
        %v1516 = vpack.c.b16 %v1513, %v1512
        %v1517 = vpack.c.b16 %v1515, %v1514
        %v1521 = vsel %vm1347, %v1502, 0
        %v1524 = vsel %vm1347, %v1503, 0
        %1526 = vmatprep.subr.bf16.mxu0 0
        %1527 = vmatpush1.bf16.msra.mxu0 %v1516
        %1528 = vmatprep.subr.bf16.mxu0 0
        %1529 = vmatpush1.bf16.msra.mxu0 %v1517
        %1530 = vmatprep.subr.bf16.mxu0 0
        %1531 = vmatpush1.bf16.msra.mxu0 0
        %1532 = vmatprep.subr.bf16.mxu0 0
        %1533 = vmatpush1.bf16.msra.mxu0 0
        %1534 = vmatprep.subr.bf16.mxu0 0
        %1535 = vmatpush1.bf16.msra.mxu0 0
        %1536 = vmatprep.subr.bf16.mxu0 0
        %1537 = vmatpush1.bf16.msra.mxu0 0
        %1538 = vmatprep.subr.bf16.mxu0 0
        %1539 = vmatpush1.bf16.msra.mxu0 0
        %1540 = vmatprep.subr.bf16.mxu0 0
        %1541 = vmatpush1.bf16.msra.mxu0 0
        %1542 = vmatprep.subr.bf16.mxu0 0
        %1543 = vmatpush1.bf16.msra.mxu0 0
        %1544 = vmatprep.subr.bf16.mxu0 0
        %1545 = vmatpush1.bf16.msra.mxu0 0
        %1546 = vmatprep.subr.bf16.mxu0 0
        %1547 = vmatpush1.bf16.msra.mxu0 0
        %1548 = vmatprep.subr.bf16.mxu0 0
        %1549 = vmatpush1.bf16.msra.mxu0 0
        %1550 = vmatprep.subr.bf16.mxu0 0
        %1551 = vmatpush1.bf16.msra.mxu0 0
        %1552 = vmatprep.subr.bf16.mxu0 0
        %1553 = vmatpush1.bf16.msra.mxu0 0
        %1554 = vmatprep.subr.bf16.mxu0 0
        %1555 = vmatpush1.bf16.msra.mxu0 0
        %1556 = vmatprep.subr.bf16.mxu0 0
        %1557 = vmatpush1.bf16.msra.mxu0 0
        %1558 = vmatprep.mubr.bf16.mxu0 0
        %1559 = vmatmul.mubr.bf16.gmra.mrb[0].mxu0 %v1521
        %v1560 = vpop.f32.mrb[0].mxu0
        %v1561 = vadd.f32 0.0, %v1560
        %v1562 = vpop.f32.mrb[0].mxu0
        %v1563 = vpop.f32.mrb[0].mxu0
        %v1564 = vadd.f32 0.0, %v1563
        %v1565 = vpop.f32.mrb[0].mxu0
        %1566 = vmatprep.mubr.bf16.mxu0 0
        %1567 = vmatmul.mubr.bf16.gmra.mrb[0].mxu0 %v1524
        %v1568 = vpop.f32.mrb[0].mxu0
        %v1569 = vadd.f32 0.0, %v1568
        %v1570 = vpop.f32.mrb[0].mxu0
        %v1571 = vpop.f32.mrb[0].mxu0
        %v1572 = vpop.f32.mrb[0].mxu0
        %1573 = vdwg.mxu0
        %v1574 = vadd.f32 %v1344, %v1561
        %v1575 = vadd.f32 %v1345, %v1564
        %v1576 = vadd.f32 %v1346, %v1569
        %1579 = vrot.lane.b32.xlu0 %v1322, 96
        %v1580 = vpop.permute.xlu0 %1579
        %1581 = vrot.lane.b32.xlu0 %v1325, 96
        %v1582 = vpop.permute.xlu0 %1581
        %1585 = vrot.lane.b32.xlu0 %v1323, 96
        %v1586 = vpop.permute.xlu0 %1585
        %1587 = vrot.lane.b32.xlu0 %v1326, 96
        %v1588 = vpop.permute.xlu0 %1587
        %v1590 = vsel %vm1347, %v1580, 0
        %v1593 = vsel %vm1347, %v1582, 0
        %v1596 = vsel %vm1347, %v1586, 0
        %v1599 = vsel %vm1347, %v1588, 0
        %1601 = vmatprep.subr.bf16.mxu0 0
        %1602 = vmatpush1.bf16.xpose.msra.mxu0 %v1596
        %1603 = vmatprep.subr.bf16.mxu0 0
        %1604 = vmatpush1.bf16.xpose.msra.mxu0 %v1599
        %1605 = vmatprep.subr.bf16.mxu0 0
        %1606 = vmatpush1.bf16.xpose.msra.mxu0 0
        %1607 = vmatprep.subr.bf16.mxu0 0
        %1608 = vmatpush1.bf16.xpose.msra.mxu0 0
        %1609 = vmatprep.subr.bf16.mxu0 0
        %1610 = vmatpush1.bf16.xpose.msra.mxu0 0
        %1611 = vmatprep.subr.bf16.mxu0 0
        %1612 = vmatpush1.bf16.xpose.msra.mxu0 0
        %1613 = vmatprep.subr.bf16.mxu0 0
        %1614 = vmatpush1.bf16.xpose.msra.mxu0 0
        %1615 = vmatprep.subr.bf16.mxu0 0
        %1616 = vmatpush1.bf16.xpose.msra.mxu0 0
        %1617 = vmatprep.subr.bf16.mxu0 0
        %1618 = vmatpush1.bf16.xpose.msra.mxu0 0
        %1619 = vmatprep.subr.bf16.mxu0 0
        %1620 = vmatpush1.bf16.xpose.msra.mxu0 0
        %1621 = vmatprep.subr.bf16.mxu0 0
        %1622 = vmatpush1.bf16.xpose.msra.mxu0 0
        %1623 = vmatprep.subr.bf16.mxu0 0
        %1624 = vmatpush1.bf16.xpose.msra.mxu0 0
        %1625 = vmatprep.subr.bf16.mxu0 0
        %1626 = vmatpush1.bf16.xpose.msra.mxu0 0
        %1627 = vmatprep.subr.bf16.mxu0 0
        %1628 = vmatpush1.bf16.xpose.msra.mxu0 0
        %1629 = vmatprep.subr.bf16.mxu0 0
        %1630 = vmatpush1.bf16.xpose.msra.mxu0 0
        %1631 = vmatprep.subr.bf16.mxu0 0
        %1632 = vmatpush1.bf16.xpose.msra.mxu0 0
        %1633 = vmatprep.mubr.bf16.mxu0 0
        %1634 = vmatmul.mubr.bf16.gmra.mrb[0].mxu0 %v1590
        %v1635 = vpop.f32.mrb[0].mxu0
        %v1636 = vadd.f32 %v1336, %v1635
        %v1637 = vpop.f32.mrb[0].mxu0
        %v1638 = vpop.f32.mrb[0].mxu0
        %v1639 = vadd.f32 %v1336, %v1638
        %v1640 = vpop.f32.mrb[0].mxu0
        %1641 = vmatprep.mubr.bf16.mxu0 0
        %1642 = vmatmul.mubr.bf16.gmra.mrb[0].mxu0 %v1593
        %v1643 = vpop.f32.mrb[0].mxu0
        %v1644 = vadd.f32 %v1336, %v1643
        %v1645 = vpop.f32.mrb[0].mxu0
        %v1646 = vpop.f32.mrb[0].mxu0
        %v1647 = vpop.f32.mrb[0].mxu0
        %1648 = vdwg.mxu0
        %v1649 = vsel %vm1408, %v1636, -inf
        %1650 = vmax.xlane.f32.xlu0 %v1649
        %v1651 = vpop.xlane.xlu0 %1650
        %v1652 = vsel %vm1408, %v1639, -inf
        %1653 = vmax.xlane.f32.xlu0 %v1652
        %v1654 = vpop.xlane.xlu0 %1653
        %v1655 = vsel %vm1408, %v1644, -inf
        %1656 = vmax.xlane.f32.xlu0 %v1655
        %v1657 = vpop.xlane.xlu0 %1656
        %v1658 = vsub.f32 %v1636, %v1651
        %v1659 = vsub.f32 %v1639, %v1654
        %v1660 = vsub.f32 %v1644, %v1657
        %v1661 = vmul.f32 %v1658, 1.442695
        %v1662 = vpow.pop %v1661
        %v1663 = vmul.f32 %v1659, 1.442695
        %v1664 = vpow.pop %v1663
        %v1665 = vmul.f32 %v1660, 1.442695
        %v1666 = vpow.pop %v1665
        %v1667 = vsel %vm1408, %v1662, 0.0
        %1668 = vadd.xlane.f32.xlu0 %v1667
        %v1669 = vpop.xlane.xlu0 %1668
        %v1670 = vsel %vm1408, %v1664, 0.0
        %1671 = vadd.xlane.f32.xlu0 %v1670
        %v1672 = vpop.xlane.xlu0 %1671
        %v1673 = vsel %vm1408, %v1666, 0.0
        %1674 = vadd.xlane.f32.xlu0 %v1673
        %v1675 = vpop.xlane.xlu0 %1674
        %v1676 = vrcp.pop %v1669
        %v1677 = vrcp.pop %v1672
        %v1678 = vrcp.pop %v1675
        %v1679 = vmul.f32 %v1662, %v1676
        %v1680 = vmul.f32 %v1664, %v1677
        %v1681 = vmul.f32 %v1666, %v1678
        %v1682 = vpack.c.bf16 %v1680, %v1679
        %v1683 = vpack.c.bf16 %v1681, %v1681
        %1686 = vrot.lane.b32.xlu0 %v1324, 96
        %v1687 = vpop.permute.xlu0 %1686
        %1688 = vrot.lane.b32.xlu0 %v1327, 96
        %v1689 = vpop.permute.xlu0 %1688
        %v1692 = vsel %vm1408, %v1682, 0
        %v1695 = vsel %vm1408, %v1683, 0
        %v1698 = vsel %vm1450, %v1689, 0
        %1700 = vmatprep.subr.bf16.mxu0 0
        %1701 = vmatpush1.bf16.msra.mxu0 %v1687
        %1702 = vmatprep.subr.bf16.mxu0 0
        %1703 = vmatpush1.bf16.msra.mxu0 %v1698
        %1704 = vmatprep.subr.bf16.mxu0 0
        %1705 = vmatpush1.bf16.msra.mxu0 0
        %1706 = vmatprep.subr.bf16.mxu0 0
        %1707 = vmatpush1.bf16.msra.mxu0 0
        %1708 = vmatprep.subr.bf16.mxu0 0
        %1709 = vmatpush1.bf16.msra.mxu0 0
        %1710 = vmatprep.subr.bf16.mxu0 0
        %1711 = vmatpush1.bf16.msra.mxu0 0
        %1712 = vmatprep.subr.bf16.mxu0 0
        %1713 = vmatpush1.bf16.msra.mxu0 0
        %1714 = vmatprep.subr.bf16.mxu0 0
        %1715 = vmatpush1.bf16.msra.mxu0 0
        %1716 = vmatprep.subr.bf16.mxu0 0
        %1717 = vmatpush1.bf16.msra.mxu0 0
        %1718 = vmatprep.subr.bf16.mxu0 0
        %1719 = vmatpush1.bf16.msra.mxu0 0
        %1720 = vmatprep.subr.bf16.mxu0 0
        %1721 = vmatpush1.bf16.msra.mxu0 0
        %1722 = vmatprep.subr.bf16.mxu0 0
        %1723 = vmatpush1.bf16.msra.mxu0 0
        %1724 = vmatprep.subr.bf16.mxu0 0
        %1725 = vmatpush1.bf16.msra.mxu0 0
        %1726 = vmatprep.subr.bf16.mxu0 0
        %1727 = vmatpush1.bf16.msra.mxu0 0
        %1728 = vmatprep.subr.bf16.mxu0 0
        %1729 = vmatpush1.bf16.msra.mxu0 0
        %1730 = vmatprep.subr.bf16.mxu0 0
        %1731 = vmatpush1.bf16.msra.mxu0 0
        %1732 = vmatprep.mubr.bf16.mxu0 0
        %1733 = vmatmul.mubr.bf16.gmra.mrb[0].mxu0 %v1692
        %v1734 = vpop.f32.mrb[0].mxu0
        %v1735 = vadd.f32 0.0, %v1734
        %v1736 = vpop.f32.mrb[0].mxu0
        %v1737 = vpop.f32.mrb[0].mxu0
        %v1738 = vadd.f32 0.0, %v1737
        %v1739 = vpop.f32.mrb[0].mxu0
        %1740 = vmatprep.mubr.bf16.mxu0 0
        %1741 = vmatmul.mubr.bf16.gmra.mrb[0].mxu0 %v1695
        %v1742 = vpop.f32.mrb[0].mxu0
        %v1743 = vadd.f32 0.0, %v1742
        %v1744 = vpop.f32.mrb[0].mxu0
        %v1745 = vpop.f32.mrb[0].mxu0
        %v1746 = vpop.f32.mrb[0].mxu0
        %1747 = vdwg.mxu0
        %v1748 = vpack.c.bf16 %v1738, %v1735
        %v1749 = vpack.c.bf16 %v1743, %v1743
        %v1750 = vld [vmem:[%s770 + $0x10] sm:$0xf]
        %v1751 = vld [vmem:[%s770 + $0x14] sm:$0xf]
        %v1752 = vld [vmem:[%s770 + $0x18] sm:$0xf]
        %v1753 = vld [vmem:[%s770 + $0x1c] sm:$0xf]
        %v1758 = vunpack.c.l.b16 %v1750
        %v1759 = vunpack.c.l.b16 %v1751
        %v1760 = vunpack.c.l.b16 %v1752
        %v1761 = vunpack.c.l.b16 %v1753
        %v1762 = vpack.c.b16 %v1759, %v1758
        %v1763 = vpack.c.b16 %v1761, %v1760
        %v1767 = vsel %vm1347, %v1748, 0
        %v1770 = vsel %vm1347, %v1749, 0
        %1772 = vmatprep.subr.bf16.mxu0 0
        %1773 = vmatpush1.bf16.msra.mxu0 %v1762
        %1774 = vmatprep.subr.bf16.mxu0 0
        %1775 = vmatpush1.bf16.msra.mxu0 %v1763
        %1776 = vmatprep.subr.bf16.mxu0 0
        %1777 = vmatpush1.bf16.msra.mxu0 0
        %1778 = vmatprep.subr.bf16.mxu0 0
        %1779 = vmatpush1.bf16.msra.mxu0 0
        %1780 = vmatprep.subr.bf16.mxu0 0
        %1781 = vmatpush1.bf16.msra.mxu0 0
        %1782 = vmatprep.subr.bf16.mxu0 0
        %1783 = vmatpush1.bf16.msra.mxu0 0
        %1784 = vmatprep.subr.bf16.mxu0 0
        %1785 = vmatpush1.bf16.msra.mxu0 0
        %1786 = vmatprep.subr.bf16.mxu0 0
        %1787 = vmatpush1.bf16.msra.mxu0 0
        %1788 = vmatprep.subr.bf16.mxu0 0
        %1789 = vmatpush1.bf16.msra.mxu0 0
        %1790 = vmatprep.subr.bf16.mxu0 0
        %1791 = vmatpush1.bf16.msra.mxu0 0
        %1792 = vmatprep.subr.bf16.mxu0 0
        %1793 = vmatpush1.bf16.msra.mxu0 0
        %1794 = vmatprep.subr.bf16.mxu0 0
        %1795 = vmatpush1.bf16.msra.mxu0 0
        %1796 = vmatprep.subr.bf16.mxu0 0
        %1797 = vmatpush1.bf16.msra.mxu0 0
        %1798 = vmatprep.subr.bf16.mxu0 0
        %1799 = vmatpush1.bf16.msra.mxu0 0
        %1800 = vmatprep.subr.bf16.mxu0 0
        %1801 = vmatpush1.bf16.msra.mxu0 0
        %1802 = vmatprep.subr.bf16.mxu0 0
        %1803 = vmatpush1.bf16.msra.mxu0 0
        %1804 = vmatprep.mubr.bf16.mxu0 0
        %1805 = vmatmul.mubr.bf16.gmra.mrb[0].mxu0 %v1767
        %v1806 = vpop.f32.mrb[0].mxu0
        %v1807 = vadd.f32 0.0, %v1806
        %v1808 = vpop.f32.mrb[0].mxu0
        %v1809 = vpop.f32.mrb[0].mxu0
        %v1810 = vadd.f32 0.0, %v1809
        %v1811 = vpop.f32.mrb[0].mxu0
        %1812 = vmatprep.mubr.bf16.mxu0 0
        %1813 = vmatmul.mubr.bf16.gmra.mrb[0].mxu0 %v1770
        %v1814 = vpop.f32.mrb[0].mxu0
        %v1815 = vadd.f32 0.0, %v1814
        %v1816 = vpop.f32.mrb[0].mxu0
        %v1817 = vpop.f32.mrb[0].mxu0
        %v1818 = vpop.f32.mrb[0].mxu0
        %1819 = vdwg.mxu0
        %v1820 = vadd.f32 %v1574, %v1807
        %v1821 = vadd.f32 %v1575, %v1810
        %v1822 = vadd.f32 %v1576, %v1815
        %1823 = vrot.lane.b32.xlu0 %v1322, 64
        %v1824 = vpop.permute.xlu0 %1823
        %1825 = vrot.lane.b32.xlu0 %v1325, 64
        %v1826 = vpop.permute.xlu0 %1825
        %1827 = vrot.lane.b32.xlu0 %v1323, 64
        %v1828 = vpop.permute.xlu0 %1827
        %1829 = vrot.lane.b32.xlu0 %v1326, 64
        %v1830 = vpop.permute.xlu0 %1829
        %v1832 = vsel %vm1347, %v1824, 0
        %v1835 = vsel %vm1347, %v1826, 0
        %v1838 = vsel %vm1347, %v1828, 0
        %v1841 = vsel %vm1347, %v1830, 0
        %1843 = vmatprep.subr.bf16.mxu0 0
        %1844 = vmatpush1.bf16.xpose.msra.mxu0 %v1838
        %1845 = vmatprep.subr.bf16.mxu0 0
        %1846 = vmatpush1.bf16.xpose.msra.mxu0 %v1841
        %1847 = vmatprep.subr.bf16.mxu0 0
        %1848 = vmatpush1.bf16.xpose.msra.mxu0 0
        %1849 = vmatprep.subr.bf16.mxu0 0
        %1850 = vmatpush1.bf16.xpose.msra.mxu0 0
        %1851 = vmatprep.subr.bf16.mxu0 0
        %1852 = vmatpush1.bf16.xpose.msra.mxu0 0
        %1853 = vmatprep.subr.bf16.mxu0 0
        %1854 = vmatpush1.bf16.xpose.msra.mxu0 0
        %1855 = vmatprep.subr.bf16.mxu0 0
        %1856 = vmatpush1.bf16.xpose.msra.mxu0 0
        %1857 = vmatprep.subr.bf16.mxu0 0
        %1858 = vmatpush1.bf16.xpose.msra.mxu0 0
        %1859 = vmatprep.subr.bf16.mxu0 0
        %1860 = vmatpush1.bf16.xpose.msra.mxu0 0
        %1861 = vmatprep.subr.bf16.mxu0 0
        %1862 = vmatpush1.bf16.xpose.msra.mxu0 0
        %1863 = vmatprep.subr.bf16.mxu0 0
        %1864 = vmatpush1.bf16.xpose.msra.mxu0 0
        %1865 = vmatprep.subr.bf16.mxu0 0
        %1866 = vmatpush1.bf16.xpose.msra.mxu0 0
        %1867 = vmatprep.subr.bf16.mxu0 0
        %1868 = vmatpush1.bf16.xpose.msra.mxu0 0
        %1869 = vmatprep.subr.bf16.mxu0 0
        %1870 = vmatpush1.bf16.xpose.msra.mxu0 0
        %1871 = vmatprep.subr.bf16.mxu0 0
        %1872 = vmatpush1.bf16.xpose.msra.mxu0 0
        %1873 = vmatprep.subr.bf16.mxu0 0
        %1874 = vmatpush1.bf16.xpose.msra.mxu0 0
        %1875 = vmatprep.mubr.bf16.mxu0 0
        %1876 = vmatmul.mubr.bf16.gmra.mrb[0].mxu0 %v1832
        %v1877 = vpop.f32.mrb[0].mxu0
        %v1878 = vadd.f32 %v1336, %v1877
        %v1879 = vpop.f32.mrb[0].mxu0
        %v1880 = vpop.f32.mrb[0].mxu0
        %v1881 = vadd.f32 %v1336, %v1880
        %v1882 = vpop.f32.mrb[0].mxu0
        %1883 = vmatprep.mubr.bf16.mxu0 0
        %1884 = vmatmul.mubr.bf16.gmra.mrb[0].mxu0 %v1835
        %v1885 = vpop.f32.mrb[0].mxu0
        %v1886 = vadd.f32 %v1336, %v1885
        %v1887 = vpop.f32.mrb[0].mxu0
        %v1888 = vpop.f32.mrb[0].mxu0
        %v1889 = vpop.f32.mrb[0].mxu0
        %1890 = vdwg.mxu0
        %v1891 = vsel %vm1408, %v1878, -inf
        %1892 = vmax.xlane.f32.xlu0 %v1891
        %v1893 = vpop.xlane.xlu0 %1892
        %v1894 = vsel %vm1408, %v1881, -inf
        %1895 = vmax.xlane.f32.xlu0 %v1894
        %v1896 = vpop.xlane.xlu0 %1895
        %v1897 = vsel %vm1408, %v1886, -inf
        %1898 = vmax.xlane.f32.xlu0 %v1897
        %v1899 = vpop.xlane.xlu0 %1898
        %v1900 = vsub.f32 %v1878, %v1893
        %v1901 = vsub.f32 %v1881, %v1896
        %v1902 = vsub.f32 %v1886, %v1899
        %v1903 = vmul.f32 %v1900, 1.442695
        %v1904 = vpow.pop %v1903
        %v1905 = vmul.f32 %v1901, 1.442695
        %v1906 = vpow.pop %v1905
        %v1907 = vmul.f32 %v1902, 1.442695
        %v1908 = vpow.pop %v1907
        %v1909 = vsel %vm1408, %v1904, 0.0
        %1910 = vadd.xlane.f32.xlu0 %v1909
        %v1911 = vpop.xlane.xlu0 %1910
        %v1912 = vsel %vm1408, %v1906, 0.0
        %1913 = vadd.xlane.f32.xlu0 %v1912
        %v1914 = vpop.xlane.xlu0 %1913
        %v1915 = vsel %vm1408, %v1908, 0.0
        %1916 = vadd.xlane.f32.xlu0 %v1915
        %v1917 = vpop.xlane.xlu0 %1916
        %v1918 = vrcp.pop %v1911
        %v1919 = vrcp.pop %v1914
        %v1920 = vrcp.pop %v1917
        %v1921 = vmul.f32 %v1904, %v1918
        %v1922 = vmul.f32 %v1906, %v1919
        %v1923 = vmul.f32 %v1908, %v1920
        %v1924 = vpack.c.bf16 %v1922, %v1921
        %v1925 = vpack.c.bf16 %v1923, %v1923
        %1926 = vrot.lane.b32.xlu0 %v1324, 64
        %v1927 = vpop.permute.xlu0 %1926
        %1928 = vrot.lane.b32.xlu0 %v1327, 64
        %v1929 = vpop.permute.xlu0 %1928
        %v1932 = vsel %vm1408, %v1924, 0
        %v1935 = vsel %vm1408, %v1925, 0
        %v1938 = vsel %vm1450, %v1929, 0
        %1940 = vmatprep.subr.bf16.mxu0 0
        %1941 = vmatpush1.bf16.msra.mxu0 %v1927
        %1942 = vmatprep.subr.bf16.mxu0 0
        %1943 = vmatpush1.bf16.msra.mxu0 %v1938
        %1944 = vmatprep.subr.bf16.mxu0 0
        %1945 = vmatpush1.bf16.msra.mxu0 0
        %1946 = vmatprep.subr.bf16.mxu0 0
        %1947 = vmatpush1.bf16.msra.mxu0 0
        %1948 = vmatprep.subr.bf16.mxu0 0
        %1949 = vmatpush1.bf16.msra.mxu0 0
        %1950 = vmatprep.subr.bf16.mxu0 0
        %1951 = vmatpush1.bf16.msra.mxu0 0
        %1952 = vmatprep.subr.bf16.mxu0 0
        %1953 = vmatpush1.bf16.msra.mxu0 0
        %1954 = vmatprep.subr.bf16.mxu0 0
        %1955 = vmatpush1.bf16.msra.mxu0 0
        %1956 = vmatprep.subr.bf16.mxu0 0
        %1957 = vmatpush1.bf16.msra.mxu0 0
        %1958 = vmatprep.subr.bf16.mxu0 0
        %1959 = vmatpush1.bf16.msra.mxu0 0
        %1960 = vmatprep.subr.bf16.mxu0 0
        %1961 = vmatpush1.bf16.msra.mxu0 0
        %1962 = vmatprep.subr.bf16.mxu0 0
        %1963 = vmatpush1.bf16.msra.mxu0 0
        %1964 = vmatprep.subr.bf16.mxu0 0
        %1965 = vmatpush1.bf16.msra.mxu0 0
        %1966 = vmatprep.subr.bf16.mxu0 0
        %1967 = vmatpush1.bf16.msra.mxu0 0
        %1968 = vmatprep.subr.bf16.mxu0 0
        %1969 = vmatpush1.bf16.msra.mxu0 0
        %1970 = vmatprep.subr.bf16.mxu0 0
        %1971 = vmatpush1.bf16.msra.mxu0 0
        %1972 = vmatprep.mubr.bf16.mxu0 0
        %1973 = vmatmul.mubr.bf16.gmra.mrb[0].mxu0 %v1932
        %v1974 = vpop.f32.mrb[0].mxu0
        %v1975 = vadd.f32 0.0, %v1974
        %v1976 = vpop.f32.mrb[0].mxu0
        %v1977 = vpop.f32.mrb[0].mxu0
        %v1978 = vadd.f32 0.0, %v1977
        %v1979 = vpop.f32.mrb[0].mxu0
        %1980 = vmatprep.mubr.bf16.mxu0 0
        %1981 = vmatmul.mubr.bf16.gmra.mrb[0].mxu0 %v1935
        %v1982 = vpop.f32.mrb[0].mxu0
        %v1983 = vadd.f32 0.0, %v1982
        %v1984 = vpop.f32.mrb[0].mxu0
        %v1985 = vpop.f32.mrb[0].mxu0
        %v1986 = vpop.f32.mrb[0].mxu0
        %1987 = vdwg.mxu0
        %v1988 = vpack.c.bf16 %v1978, %v1975
        %v1989 = vpack.c.bf16 %v1983, %v1983
        %v1990 = vld [vmem:[%s770 + $0x20] sm:$0xf]
        %v1991 = vld [vmem:[%s770 + $0x24] sm:$0xf]
        %v1992 = vld [vmem:[%s770 + $0x28] sm:$0xf]
        %v1993 = vld [vmem:[%s770 + $0x2c] sm:$0xf]
        %v1998 = vunpack.c.l.b16 %v1990
        %v1999 = vunpack.c.l.b16 %v1991
        %v2000 = vunpack.c.l.b16 %v1992
        %v2001 = vunpack.c.l.b16 %v1993
        %v2002 = vpack.c.b16 %v1999, %v1998
        %v2003 = vpack.c.b16 %v2001, %v2000
        %v2007 = vsel %vm1347, %v1988, 0
        %v2010 = vsel %vm1347, %v1989, 0
        %2012 = vmatprep.subr.bf16.mxu0 0
        %2013 = vmatpush1.bf16.msra.mxu0 %v2002
        %2014 = vmatprep.subr.bf16.mxu0 0
        %2015 = vmatpush1.bf16.msra.mxu0 %v2003
        %2016 = vmatprep.subr.bf16.mxu0 0
        %2017 = vmatpush1.bf16.msra.mxu0 0
        %2018 = vmatprep.subr.bf16.mxu0 0
        %2019 = vmatpush1.bf16.msra.mxu0 0
        %2020 = vmatprep.subr.bf16.mxu0 0
        %2021 = vmatpush1.bf16.msra.mxu0 0
        %2022 = vmatprep.subr.bf16.mxu0 0
        %2023 = vmatpush1.bf16.msra.mxu0 0
        %2024 = vmatprep.subr.bf16.mxu0 0
        %2025 = vmatpush1.bf16.msra.mxu0 0
        %2026 = vmatprep.subr.bf16.mxu0 0
        %2027 = vmatpush1.bf16.msra.mxu0 0
        %2028 = vmatprep.subr.bf16.mxu0 0
        %2029 = vmatpush1.bf16.msra.mxu0 0
        %2030 = vmatprep.subr.bf16.mxu0 0
        %2031 = vmatpush1.bf16.msra.mxu0 0
        %2032 = vmatprep.subr.bf16.mxu0 0
        %2033 = vmatpush1.bf16.msra.mxu0 0
        %2034 = vmatprep.subr.bf16.mxu0 0
        %2035 = vmatpush1.bf16.msra.mxu0 0
        %2036 = vmatprep.subr.bf16.mxu0 0
        %2037 = vmatpush1.bf16.msra.mxu0 0
        %2038 = vmatprep.subr.bf16.mxu0 0
        %2039 = vmatpush1.bf16.msra.mxu0 0
        %2040 = vmatprep.subr.bf16.mxu0 0
        %2041 = vmatpush1.bf16.msra.mxu0 0
        %2042 = vmatprep.subr.bf16.mxu0 0
        %2043 = vmatpush1.bf16.msra.mxu0 0
        %2044 = vmatprep.mubr.bf16.mxu0 0
        %2045 = vmatmul.mubr.bf16.gmra.mrb[0].mxu0 %v2007
        %v2046 = vpop.f32.mrb[0].mxu0
        %v2047 = vadd.f32 0.0, %v2046
        %v2048 = vpop.f32.mrb[0].mxu0
        %v2049 = vpop.f32.mrb[0].mxu0
        %v2050 = vadd.f32 0.0, %v2049
        %v2051 = vpop.f32.mrb[0].mxu0
        %2052 = vmatprep.mubr.bf16.mxu0 0
        %2053 = vmatmul.mubr.bf16.gmra.mrb[0].mxu0 %v2010
        %v2054 = vpop.f32.mrb[0].mxu0
        %v2055 = vadd.f32 0.0, %v2054
        %v2056 = vpop.f32.mrb[0].mxu0
        %v2057 = vpop.f32.mrb[0].mxu0
        %v2058 = vpop.f32.mrb[0].mxu0
        %2059 = vdwg.mxu0
        %v2060 = vadd.f32 %v1820, %v2047
        %v2061 = vadd.f32 %v1821, %v2050
        %v2062 = vadd.f32 %v1822, %v2055
        %2063 = vrot.lane.b32.xlu0 %v1322, 32
        %v2064 = vpop.permute.xlu0 %2063
        %2065 = vrot.lane.b32.xlu0 %v1325, 32
        %v2066 = vpop.permute.xlu0 %2065
        %2067 = vrot.lane.b32.xlu0 %v1323, 32
        %v2068 = vpop.permute.xlu0 %2067
        %2069 = vrot.lane.b32.xlu0 %v1326, 32
        %v2070 = vpop.permute.xlu0 %2069
        %v2072 = vsel %vm1347, %v2064, 0
        %v2075 = vsel %vm1347, %v2066, 0
        %v2078 = vsel %vm1347, %v2068, 0
        %v2081 = vsel %vm1347, %v2070, 0
        %2083 = vmatprep.subr.bf16.mxu0 0
        %2084 = vmatpush1.bf16.xpose.msra.mxu0 %v2078
        %2085 = vmatprep.subr.bf16.mxu0 0
        %2086 = vmatpush1.bf16.xpose.msra.mxu0 %v2081
        %2087 = vmatprep.subr.bf16.mxu0 0
        %2088 = vmatpush1.bf16.xpose.msra.mxu0 0
        %2089 = vmatprep.subr.bf16.mxu0 0
        %2090 = vmatpush1.bf16.xpose.msra.mxu0 0
        %2091 = vmatprep.subr.bf16.mxu0 0
        %2092 = vmatpush1.bf16.xpose.msra.mxu0 0
        %2093 = vmatprep.subr.bf16.mxu0 0
        %2094 = vmatpush1.bf16.xpose.msra.mxu0 0
        %2095 = vmatprep.subr.bf16.mxu0 0
        %2096 = vmatpush1.bf16.xpose.msra.mxu0 0
        %2097 = vmatprep.subr.bf16.mxu0 0
        %2098 = vmatpush1.bf16.xpose.msra.mxu0 0
        %2099 = vmatprep.subr.bf16.mxu0 0
        %2100 = vmatpush1.bf16.xpose.msra.mxu0 0
        %2101 = vmatprep.subr.bf16.mxu0 0
        %2102 = vmatpush1.bf16.xpose.msra.mxu0 0
        %2103 = vmatprep.subr.bf16.mxu0 0
        %2104 = vmatpush1.bf16.xpose.msra.mxu0 0
        %2105 = vmatprep.subr.bf16.mxu0 0
        %2106 = vmatpush1.bf16.xpose.msra.mxu0 0
        %2107 = vmatprep.subr.bf16.mxu0 0
        %2108 = vmatpush1.bf16.xpose.msra.mxu0 0
        %2109 = vmatprep.subr.bf16.mxu0 0
        %2110 = vmatpush1.bf16.xpose.msra.mxu0 0
        %2111 = vmatprep.subr.bf16.mxu0 0
        %2112 = vmatpush1.bf16.xpose.msra.mxu0 0
        %2113 = vmatprep.subr.bf16.mxu0 0
        %2114 = vmatpush1.bf16.xpose.msra.mxu0 0
        %2115 = vmatprep.mubr.bf16.mxu0 0
        %2116 = vmatmul.mubr.bf16.gmra.mrb[0].mxu0 %v2072
        %v2117 = vpop.f32.mrb[0].mxu0
        %v2118 = vadd.f32 %v1336, %v2117
        %v2119 = vpop.f32.mrb[0].mxu0
        %v2120 = vpop.f32.mrb[0].mxu0
        %v2121 = vadd.f32 %v1336, %v2120
        %v2122 = vpop.f32.mrb[0].mxu0
        %2123 = vmatprep.mubr.bf16.mxu0 0
        %2124 = vmatmul.mubr.bf16.gmra.mrb[0].mxu0 %v2075
        %v2125 = vpop.f32.mrb[0].mxu0
        %v2126 = vadd.f32 %v1336, %v2125
        %v2127 = vpop.f32.mrb[0].mxu0
        %v2128 = vpop.f32.mrb[0].mxu0
        %v2129 = vpop.f32.mrb[0].mxu0
        %2130 = vdwg.mxu0
        %v2131 = vsel %vm1408, %v2118, -inf
        %2132 = vmax.xlane.f32.xlu0 %v2131
        %v2133 = vpop.xlane.xlu0 %2132
        %v2134 = vsel %vm1408, %v2121, -inf
        %2135 = vmax.xlane.f32.xlu0 %v2134
        %v2136 = vpop.xlane.xlu0 %2135
        %v2137 = vsel %vm1408, %v2126, -inf
        %2138 = vmax.xlane.f32.xlu0 %v2137
        %v2139 = vpop.xlane.xlu0 %2138
        %v2140 = vsub.f32 %v2118, %v2133
        %v2141 = vsub.f32 %v2121, %v2136
        %v2142 = vsub.f32 %v2126, %v2139
        %v2143 = vmul.f32 %v2140, 1.442695
        %v2144 = vpow.pop %v2143
        %v2145 = vmul.f32 %v2141, 1.442695
        %v2146 = vpow.pop %v2145
        %v2147 = vmul.f32 %v2142, 1.442695
        %v2148 = vpow.pop %v2147
        %v2149 = vsel %vm1408, %v2144, 0.0
        %2150 = vadd.xlane.f32.xlu0 %v2149
        %v2151 = vpop.xlane.xlu0 %2150
        %v2152 = vsel %vm1408, %v2146, 0.0
        %2153 = vadd.xlane.f32.xlu0 %v2152
        %v2154 = vpop.xlane.xlu0 %2153
        %v2155 = vsel %vm1408, %v2148, 0.0
        %2156 = vadd.xlane.f32.xlu0 %v2155
        %v2157 = vpop.xlane.xlu0 %2156
        %v2158 = vrcp.pop %v2151
        %v2159 = vrcp.pop %v2154
        %v2160 = vrcp.pop %v2157
        %v2161 = vmul.f32 %v2144, %v2158
        %v2162 = vmul.f32 %v2146, %v2159
        %v2163 = vmul.f32 %v2148, %v2160
        %v2164 = vpack.c.bf16 %v2162, %v2161
        %v2165 = vpack.c.bf16 %v2163, %v2163
        %2166 = vrot.lane.b32.xlu0 %v1324, 32
        %v2167 = vpop.permute.xlu0 %2166
        %2168 = vrot.lane.b32.xlu0 %v1327, 32
        %v2169 = vpop.permute.xlu0 %2168
        %v2172 = vsel %vm1408, %v2164, 0
        %v2175 = vsel %vm1408, %v2165, 0
        %v2178 = vsel %vm1450, %v2169, 0
        %2180 = vmatprep.subr.bf16.mxu0 0
        %2181 = vmatpush1.bf16.msra.mxu0 %v2167
        %2182 = vmatprep.subr.bf16.mxu0 0
        %2183 = vmatpush1.bf16.msra.mxu0 %v2178
        %2184 = vmatprep.subr.bf16.mxu0 0
        %2185 = vmatpush1.bf16.msra.mxu0 0
        %2186 = vmatprep.subr.bf16.mxu0 0
        %2187 = vmatpush1.bf16.msra.mxu0 0
        %2188 = vmatprep.subr.bf16.mxu0 0
        %2189 = vmatpush1.bf16.msra.mxu0 0
        %2190 = vmatprep.subr.bf16.mxu0 0
        %2191 = vmatpush1.bf16.msra.mxu0 0
        %2192 = vmatprep.subr.bf16.mxu0 0
        %2193 = vmatpush1.bf16.msra.mxu0 0
        %2194 = vmatprep.subr.bf16.mxu0 0
        %2195 = vmatpush1.bf16.msra.mxu0 0
        %2196 = vmatprep.subr.bf16.mxu0 0
        %2197 = vmatpush1.bf16.msra.mxu0 0
        %2198 = vmatprep.subr.bf16.mxu0 0
        %2199 = vmatpush1.bf16.msra.mxu0 0
        %2200 = vmatprep.subr.bf16.mxu0 0
        %2201 = vmatpush1.bf16.msra.mxu0 0
        %2202 = vmatprep.subr.bf16.mxu0 0
        %2203 = vmatpush1.bf16.msra.mxu0 0
        %2204 = vmatprep.subr.bf16.mxu0 0
        %2205 = vmatpush1.bf16.msra.mxu0 0
        %2206 = vmatprep.subr.bf16.mxu0 0
        %2207 = vmatpush1.bf16.msra.mxu0 0
        %2208 = vmatprep.subr.bf16.mxu0 0
        %2209 = vmatpush1.bf16.msra.mxu0 0
        %2210 = vmatprep.subr.bf16.mxu0 0
        %2211 = vmatpush1.bf16.msra.mxu0 0
        %2212 = vmatprep.mubr.bf16.mxu0 0
        %2213 = vmatmul.mubr.bf16.gmra.mrb[0].mxu0 %v2172
        %v2214 = vpop.f32.mrb[0].mxu0
        %v2215 = vadd.f32 0.0, %v2214
        %v2216 = vpop.f32.mrb[0].mxu0
        %v2217 = vpop.f32.mrb[0].mxu0
        %v2218 = vadd.f32 0.0, %v2217
        %v2219 = vpop.f32.mrb[0].mxu0
        %2220 = vmatprep.mubr.bf16.mxu0 0
        %2221 = vmatmul.mubr.bf16.gmra.mrb[0].mxu0 %v2175
        %v2222 = vpop.f32.mrb[0].mxu0
        %v2223 = vadd.f32 0.0, %v2222
        %v2224 = vpop.f32.mrb[0].mxu0
        %v2225 = vpop.f32.mrb[0].mxu0
        %v2226 = vpop.f32.mrb[0].mxu0
        %2227 = vdwg.mxu0
        %v2228 = vpack.c.bf16 %v2218, %v2215
        %v2229 = vpack.c.bf16 %v2223, %v2223
        %v2230 = vld [vmem:[%s770 + $0x30] sm:$0xf]
        %v2231 = vld [vmem:[%s770 + $0x34] sm:$0xf]
        %v2232 = vld [vmem:[%s770 + $0x38] sm:$0xf]
        %v2233 = vld [vmem:[%s770 + $0x3c] sm:$0xf]
        %v2238 = vunpack.c.l.b16 %v2230
        %v2239 = vunpack.c.l.b16 %v2231
        %v2240 = vunpack.c.l.b16 %v2232
        %v2241 = vunpack.c.l.b16 %v2233
        %v2242 = vpack.c.b16 %v2239, %v2238
        %v2243 = vpack.c.b16 %v2241, %v2240
        %v2247 = vsel %vm1347, %v2228, 0
        %v2250 = vsel %vm1347, %v2229, 0
        %2252 = vmatprep.subr.bf16.mxu0 0
        %2253 = vmatpush1.bf16.msra.mxu0 %v2242
        %2254 = vmatprep.subr.bf16.mxu0 0
        %2255 = vmatpush1.bf16.msra.mxu0 %v2243
        %2256 = vmatprep.subr.bf16.mxu0 0
        %2257 = vmatpush1.bf16.msra.mxu0 0
        %2258 = vmatprep.subr.bf16.mxu0 0
        %2259 = vmatpush1.bf16.msra.mxu0 0
        %2260 = vmatprep.subr.bf16.mxu0 0
        %2261 = vmatpush1.bf16.msra.mxu0 0
        %2262 = vmatprep.subr.bf16.mxu0 0
        %2263 = vmatpush1.bf16.msra.mxu0 0
        %2264 = vmatprep.subr.bf16.mxu0 0
        %2265 = vmatpush1.bf16.msra.mxu0 0
        %2266 = vmatprep.subr.bf16.mxu0 0
        %2267 = vmatpush1.bf16.msra.mxu0 0
        %2268 = vmatprep.subr.bf16.mxu0 0
        %2269 = vmatpush1.bf16.msra.mxu0 0
        %2270 = vmatprep.subr.bf16.mxu0 0
        %2271 = vmatpush1.bf16.msra.mxu0 0
        %2272 = vmatprep.subr.bf16.mxu0 0
        %2273 = vmatpush1.bf16.msra.mxu0 0
        %2274 = vmatprep.subr.bf16.mxu0 0
        %2275 = vmatpush1.bf16.msra.mxu0 0
        %2276 = vmatprep.subr.bf16.mxu0 0
        %2277 = vmatpush1.bf16.msra.mxu0 0
        %2278 = vmatprep.subr.bf16.mxu0 0
        %2279 = vmatpush1.bf16.msra.mxu0 0
        %2280 = vmatprep.subr.bf16.mxu0 0
        %2281 = vmatpush1.bf16.msra.mxu0 0
        %2282 = vmatprep.subr.bf16.mxu0 0
        %2283 = vmatpush1.bf16.msra.mxu0 0
        %2284 = vmatprep.mubr.bf16.mxu0 0
        %2285 = vmatmul.mubr.bf16.gmra.mrb[0].mxu0 %v2247
        %v2286 = vpop.f32.mrb[0].mxu0
        %v2287 = vadd.f32 0.0, %v2286
        %v2288 = vpop.f32.mrb[0].mxu0
        %v2289 = vpop.f32.mrb[0].mxu0
        %v2290 = vadd.f32 0.0, %v2289
        %v2291 = vpop.f32.mrb[0].mxu0
        %2292 = vmatprep.mubr.bf16.mxu0 0
        %2293 = vmatmul.mubr.bf16.gmra.mrb[0].mxu0 %v2250
        %v2294 = vpop.f32.mrb[0].mxu0
        %v2295 = vadd.f32 0.0, %v2294
        %v2296 = vpop.f32.mrb[0].mxu0
        %v2297 = vpop.f32.mrb[0].mxu0
        %v2298 = vpop.f32.mrb[0].mxu0
        %2299 = vdwg.mxu0
        %v2300 = vadd.f32 %v2060, %v2287
        %v2301 = vadd.f32 %v2061, %v2290
        %v2302 = vadd.f32 %v2062, %v2295
        %v2303 = vadd.f32 %v926, %v1342
        %v2304 = vadd.f32 %v927, %v1342
        %v2305 = vadd.f32 %v928, %v1342
        %vm2307 = vcmask 1043456
        %v2308 = vrot.slane %v1325, 4
        %v2309 = vrot.slane %v1328, 4
        %v2310 = vsel %vm2307, %v2308, %v2309
        %v2312 = vrot.slane %v1326, 4
        %v2313 = vrot.slane %v1329, 4
        %v2314 = vsel %vm2307, %v2312, %v2313
        %v2316 = vsel %vm1347, %v2310, 0
        %v2319 = vsel %vm1347, %v2309, 0
        %v2322 = vsel %vm1347, %v2314, 0
        %v2325 = vsel %vm1347, %v2313, 0
        %2327 = vmatprep.subr.bf16.mxu0 0
        %2328 = vmatpush1.bf16.xpose.msra.mxu0 %v2322
        %2329 = vmatprep.subr.bf16.mxu0 0
        %2330 = vmatpush1.bf16.xpose.msra.mxu0 %v2325
        %2331 = vmatprep.subr.bf16.mxu0 0
        %2332 = vmatpush1.bf16.xpose.msra.mxu0 0
        %2333 = vmatprep.subr.bf16.mxu0 0
        %2334 = vmatpush1.bf16.xpose.msra.mxu0 0
        %2335 = vmatprep.subr.bf16.mxu0 0
        %2336 = vmatpush1.bf16.xpose.msra.mxu0 0
        %2337 = vmatprep.subr.bf16.mxu0 0
        %2338 = vmatpush1.bf16.xpose.msra.mxu0 0
        %2339 = vmatprep.subr.bf16.mxu0 0
        %2340 = vmatpush1.bf16.xpose.msra.mxu0 0
        %2341 = vmatprep.subr.bf16.mxu0 0
        %2342 = vmatpush1.bf16.xpose.msra.mxu0 0
        %2343 = vmatprep.subr.bf16.mxu0 0
        %2344 = vmatpush1.bf16.xpose.msra.mxu0 0
        %2345 = vmatprep.subr.bf16.mxu0 0
        %2346 = vmatpush1.bf16.xpose.msra.mxu0 0
        %2347 = vmatprep.subr.bf16.mxu0 0
        %2348 = vmatpush1.bf16.xpose.msra.mxu0 0
        %2349 = vmatprep.subr.bf16.mxu0 0
        %2350 = vmatpush1.bf16.xpose.msra.mxu0 0
        %2351 = vmatprep.subr.bf16.mxu0 0
        %2352 = vmatpush1.bf16.xpose.msra.mxu0 0
        %2353 = vmatprep.subr.bf16.mxu0 0
        %2354 = vmatpush1.bf16.xpose.msra.mxu0 0
        %2355 = vmatprep.subr.bf16.mxu0 0
        %2356 = vmatpush1.bf16.xpose.msra.mxu0 0
        %2357 = vmatprep.subr.bf16.mxu0 0
        %2358 = vmatpush1.bf16.xpose.msra.mxu0 0
        %2359 = vmatprep.mubr.bf16.mxu0 0
        %2360 = vmatmul.mubr.bf16.gmra.mrb[0].mxu0 %v2316
        %v2361 = vpop.f32.mrb[0].mxu0
        %v2362 = vadd.f32 %v1336, %v2361
        %v2363 = vpop.f32.mrb[0].mxu0
        %v2364 = vpop.f32.mrb[0].mxu0
        %v2365 = vadd.f32 %v1336, %v2364
        %v2366 = vpop.f32.mrb[0].mxu0
        %2367 = vmatprep.mubr.bf16.mxu0 0
        %2368 = vmatmul.mubr.bf16.gmra.mrb[0].mxu0 %v2319
        %v2369 = vpop.f32.mrb[0].mxu0
        %v2370 = vadd.f32 %v1336, %v2369
        %v2371 = vpop.f32.mrb[0].mxu0
        %v2372 = vpop.f32.mrb[0].mxu0
        %v2373 = vpop.f32.mrb[0].mxu0
        %2374 = vdwg.mxu0
        %v2375 = vsel %vm1408, %v2362, -inf
        %2376 = vmax.xlane.f32.xlu0 %v2375
        %v2377 = vpop.xlane.xlu0 %2376
        %v2378 = vsel %vm1408, %v2365, -inf
        %2379 = vmax.xlane.f32.xlu0 %v2378
        %v2380 = vpop.xlane.xlu0 %2379
        %v2381 = vsel %vm1408, %v2370, -inf
        %2382 = vmax.xlane.f32.xlu0 %v2381
        %v2383 = vpop.xlane.xlu0 %2382
        %v2384 = vsub.f32 %v2362, %v2377
        %v2385 = vsub.f32 %v2365, %v2380
        %v2386 = vsub.f32 %v2370, %v2383
        %v2387 = vmul.f32 %v2384, 1.442695
        %v2388 = vpow.pop %v2387
        %v2389 = vmul.f32 %v2385, 1.442695
        %v2390 = vpow.pop %v2389
        %v2391 = vmul.f32 %v2386, 1.442695
        %v2392 = vpow.pop %v2391
        %v2393 = vsel %vm1408, %v2388, 0.0
        %2394 = vadd.xlane.f32.xlu0 %v2393
        %v2395 = vpop.xlane.xlu0 %2394
        %v2396 = vsel %vm1408, %v2390, 0.0
        %2397 = vadd.xlane.f32.xlu0 %v2396
        %v2398 = vpop.xlane.xlu0 %2397
        %v2399 = vsel %vm1408, %v2392, 0.0
        %2400 = vadd.xlane.f32.xlu0 %v2399
        %v2401 = vpop.xlane.xlu0 %2400
        %v2402 = vrcp.pop %v2395
        %v2403 = vrcp.pop %v2398
        %v2404 = vrcp.pop %v2401
        %v2405 = vmul.f32 %v2388, %v2402
        %v2406 = vmul.f32 %v2390, %v2403
        %v2407 = vmul.f32 %v2392, %v2404
        %v2408 = vpack.c.bf16 %v2406, %v2405
        %v2409 = vpack.c.bf16 %v2407, %v2407
        %v2411 = vrot.slane %v1327, 4
        %v2412 = vrot.slane %v1330, 4
        %v2413 = vsel %vm2307, %v2411, %v2412
        %v2416 = vsel %vm1408, %v2408, 0
        %v2419 = vsel %vm1408, %v2409, 0
        %v2422 = vsel %vm1450, %v2412, 0
        %2424 = vmatprep.subr.bf16.mxu0 0
        %2425 = vmatpush1.bf16.msra.mxu0 %v2413
        %2426 = vmatprep.subr.bf16.mxu0 0
        %2427 = vmatpush1.bf16.msra.mxu0 %v2422
        %2428 = vmatprep.subr.bf16.mxu0 0
        %2429 = vmatpush1.bf16.msra.mxu0 0
        %2430 = vmatprep.subr.bf16.mxu0 0
        %2431 = vmatpush1.bf16.msra.mxu0 0
        %2432 = vmatprep.subr.bf16.mxu0 0
        %2433 = vmatpush1.bf16.msra.mxu0 0
        %2434 = vmatprep.subr.bf16.mxu0 0
        %2435 = vmatpush1.bf16.msra.mxu0 0
        %2436 = vmatprep.subr.bf16.mxu0 0
        %2437 = vmatpush1.bf16.msra.mxu0 0
        %2438 = vmatprep.subr.bf16.mxu0 0
        %2439 = vmatpush1.bf16.msra.mxu0 0
        %2440 = vmatprep.subr.bf16.mxu0 0
        %2441 = vmatpush1.bf16.msra.mxu0 0
        %2442 = vmatprep.subr.bf16.mxu0 0
        %2443 = vmatpush1.bf16.msra.mxu0 0
        %2444 = vmatprep.subr.bf16.mxu0 0
        %2445 = vmatpush1.bf16.msra.mxu0 0
        %2446 = vmatprep.subr.bf16.mxu0 0
        %2447 = vmatpush1.bf16.msra.mxu0 0
        %2448 = vmatprep.subr.bf16.mxu0 0
        %2449 = vmatpush1.bf16.msra.mxu0 0
        %2450 = vmatprep.subr.bf16.mxu0 0
        %2451 = vmatpush1.bf16.msra.mxu0 0
        %2452 = vmatprep.subr.bf16.mxu0 0
        %2453 = vmatpush1.bf16.msra.mxu0 0
        %2454 = vmatprep.subr.bf16.mxu0 0
        %2455 = vmatpush1.bf16.msra.mxu0 0
        %2456 = vmatprep.mubr.bf16.mxu0 0
        %2457 = vmatmul.mubr.bf16.gmra.mrb[0].mxu0 %v2416
        %v2458 = vpop.f32.mrb[0].mxu0
        %v2459 = vadd.f32 0.0, %v2458
        %v2460 = vpop.f32.mrb[0].mxu0
        %v2461 = vpop.f32.mrb[0].mxu0
        %v2462 = vadd.f32 0.0, %v2461
        %v2463 = vpop.f32.mrb[0].mxu0
        %2464 = vmatprep.mubr.bf16.mxu0 0
        %2465 = vmatmul.mubr.bf16.gmra.mrb[0].mxu0 %v2419
        %v2466 = vpop.f32.mrb[0].mxu0
        %v2467 = vadd.f32 0.0, %v2466
        %v2468 = vpop.f32.mrb[0].mxu0
        %v2469 = vpop.f32.mrb[0].mxu0
        %v2470 = vpop.f32.mrb[0].mxu0
        %2471 = vdwg.mxu0
        %v2472 = vpack.c.bf16 %v2462, %v2459
        %v2473 = vpack.c.bf16 %v2467, %v2467
        %v2475 = vsel %vm1347, %v2472, 0
        %v2478 = vsel %vm1347, %v2473, 0
        %2480 = vmatprep.subr.bf16.mxu0 0
        %2481 = vmatpush1.bf16.msra.mxu0 %v1516
        %2482 = vmatprep.subr.bf16.mxu0 0
        %2483 = vmatpush1.bf16.msra.mxu0 %v1517
        %2484 = vmatprep.subr.bf16.mxu0 0
        %2485 = vmatpush1.bf16.msra.mxu0 0
        %2486 = vmatprep.subr.bf16.mxu0 0
        %2487 = vmatpush1.bf16.msra.mxu0 0
        %2488 = vmatprep.subr.bf16.mxu0 0
        %2489 = vmatpush1.bf16.msra.mxu0 0
        %2490 = vmatprep.subr.bf16.mxu0 0
        %2491 = vmatpush1.bf16.msra.mxu0 0
        %2492 = vmatprep.subr.bf16.mxu0 0
        %2493 = vmatpush1.bf16.msra.mxu0 0
        %2494 = vmatprep.subr.bf16.mxu0 0
        %2495 = vmatpush1.bf16.msra.mxu0 0
        %2496 = vmatprep.subr.bf16.mxu0 0
        %2497 = vmatpush1.bf16.msra.mxu0 0
        %2498 = vmatprep.subr.bf16.mxu0 0
        %2499 = vmatpush1.bf16.msra.mxu0 0
        %2500 = vmatprep.subr.bf16.mxu0 0
        %2501 = vmatpush1.bf16.msra.mxu0 0
        %2502 = vmatprep.subr.bf16.mxu0 0
        %2503 = vmatpush1.bf16.msra.mxu0 0
        %2504 = vmatprep.subr.bf16.mxu0 0
        %2505 = vmatpush1.bf16.msra.mxu0 0
        %2506 = vmatprep.subr.bf16.mxu0 0
        %2507 = vmatpush1.bf16.msra.mxu0 0
        %2508 = vmatprep.subr.bf16.mxu0 0
        %2509 = vmatpush1.bf16.msra.mxu0 0
        %2510 = vmatprep.subr.bf16.mxu0 0
        %2511 = vmatpush1.bf16.msra.mxu0 0
        %2512 = vmatprep.mubr.bf16.mxu0 0
        %2513 = vmatmul.mubr.bf16.gmra.mrb[0].mxu0 %v2475
        %v2514 = vpop.f32.mrb[0].mxu0
        %v2515 = vadd.f32 0.0, %v2514
        %v2516 = vpop.f32.mrb[0].mxu0
        %v2517 = vpop.f32.mrb[0].mxu0
        %v2518 = vadd.f32 0.0, %v2517
        %v2519 = vpop.f32.mrb[0].mxu0
        %2520 = vmatprep.mubr.bf16.mxu0 0
        %2521 = vmatmul.mubr.bf16.gmra.mrb[0].mxu0 %v2478
        %v2522 = vpop.f32.mrb[0].mxu0
        %v2523 = vadd.f32 0.0, %v2522
        %v2524 = vpop.f32.mrb[0].mxu0
        %v2525 = vpop.f32.mrb[0].mxu0
        %v2526 = vpop.f32.mrb[0].mxu0
        %2527 = vdwg.mxu0
        %v2528 = vadd.f32 %v2303, %v2515
        %v2529 = vadd.f32 %v2304, %v2518
        %v2530 = vadd.f32 %v2305, %v2523
        %2531 = vrot.lane.b32.xlu0 %v2310, 96
        %v2532 = vpop.permute.xlu0 %2531
        %2533 = vrot.lane.b32.xlu0 %v2309, 96
        %v2534 = vpop.permute.xlu0 %2533
        %2535 = vrot.lane.b32.xlu0 %v2314, 96
        %v2536 = vpop.permute.xlu0 %2535
        %2537 = vrot.lane.b32.xlu0 %v2313, 96
        %v2538 = vpop.permute.xlu0 %2537
        %v2540 = vsel %vm1347, %v2532, 0
        %v2543 = vsel %vm1347, %v2534, 0
        %v2546 = vsel %vm1347, %v2536, 0
        %v2549 = vsel %vm1347, %v2538, 0
        %2551 = vmatprep.subr.bf16.mxu0 0
        %2552 = vmatpush1.bf16.xpose.msra.mxu0 %v2546
        %2553 = vmatprep.subr.bf16.mxu0 0
        %2554 = vmatpush1.bf16.xpose.msra.mxu0 %v2549
        %2555 = vmatprep.subr.bf16.mxu0 0
        %2556 = vmatpush1.bf16.xpose.msra.mxu0 0
        %2557 = vmatprep.subr.bf16.mxu0 0
        %2558 = vmatpush1.bf16.xpose.msra.mxu0 0
        %2559 = vmatprep.subr.bf16.mxu0 0
        %2560 = vmatpush1.bf16.xpose.msra.mxu0 0
        %2561 = vmatprep.subr.bf16.mxu0 0
        %2562 = vmatpush1.bf16.xpose.msra.mxu0 0
        %2563 = vmatprep.subr.bf16.mxu0 0
        %2564 = vmatpush1.bf16.xpose.msra.mxu0 0
        %2565 = vmatprep.subr.bf16.mxu0 0
        %2566 = vmatpush1.bf16.xpose.msra.mxu0 0
        %2567 = vmatprep.subr.bf16.mxu0 0
        %2568 = vmatpush1.bf16.xpose.msra.mxu0 0
        %2569 = vmatprep.subr.bf16.mxu0 0
        %2570 = vmatpush1.bf16.xpose.msra.mxu0 0
        %2571 = vmatprep.subr.bf16.mxu0 0
        %2572 = vmatpush1.bf16.xpose.msra.mxu0 0
        %2573 = vmatprep.subr.bf16.mxu0 0
        %2574 = vmatpush1.bf16.xpose.msra.mxu0 0
        %2575 = vmatprep.subr.bf16.mxu0 0
        %2576 = vmatpush1.bf16.xpose.msra.mxu0 0
        %2577 = vmatprep.subr.bf16.mxu0 0
        %2578 = vmatpush1.bf16.xpose.msra.mxu0 0
        %2579 = vmatprep.subr.bf16.mxu0 0
        %2580 = vmatpush1.bf16.xpose.msra.mxu0 0
        %2581 = vmatprep.subr.bf16.mxu0 0
        %2582 = vmatpush1.bf16.xpose.msra.mxu0 0
        %2583 = vmatprep.mubr.bf16.mxu0 0
        %2584 = vmatmul.mubr.bf16.gmra.mrb[0].mxu0 %v2540
        %v2585 = vpop.f32.mrb[0].mxu0
        %v2586 = vadd.f32 %v1336, %v2585
        %v2587 = vpop.f32.mrb[0].mxu0
        %v2588 = vpop.f32.mrb[0].mxu0
        %v2589 = vadd.f32 %v1336, %v2588
        %v2590 = vpop.f32.mrb[0].mxu0
        %2591 = vmatprep.mubr.bf16.mxu0 0
        %2592 = vmatmul.mubr.bf16.gmra.mrb[0].mxu0 %v2543
        %v2593 = vpop.f32.mrb[0].mxu0
        %v2594 = vadd.f32 %v1336, %v2593
        %v2595 = vpop.f32.mrb[0].mxu0
        %v2596 = vpop.f32.mrb[0].mxu0
        %v2597 = vpop.f32.mrb[0].mxu0
        %2598 = vdwg.mxu0
        %v2599 = vsel %vm1408, %v2586, -inf
        %2600 = vmax.xlane.f32.xlu0 %v2599
        %v2601 = vpop.xlane.xlu0 %2600
        %v2602 = vsel %vm1408, %v2589, -inf
        %2603 = vmax.xlane.f32.xlu0 %v2602
        %v2604 = vpop.xlane.xlu0 %2603
        %v2605 = vsel %vm1408, %v2594, -inf
        %2606 = vmax.xlane.f32.xlu0 %v2605
        %v2607 = vpop.xlane.xlu0 %2606
        %v2608 = vsub.f32 %v2586, %v2601
        %v2609 = vsub.f32 %v2589, %v2604
        %v2610 = vsub.f32 %v2594, %v2607
        %v2611 = vmul.f32 %v2608, 1.442695
        %v2612 = vpow.pop %v2611
        %v2613 = vmul.f32 %v2609, 1.442695
        %v2614 = vpow.pop %v2613
        %v2615 = vmul.f32 %v2610, 1.442695
        %v2616 = vpow.pop %v2615
        %v2617 = vsel %vm1408, %v2612, 0.0
        %2618 = vadd.xlane.f32.xlu0 %v2617
        %v2619 = vpop.xlane.xlu0 %2618
        %v2620 = vsel %vm1408, %v2614, 0.0
        %2621 = vadd.xlane.f32.xlu0 %v2620
        %v2622 = vpop.xlane.xlu0 %2621
        %v2623 = vsel %vm1408, %v2616, 0.0
        %2624 = vadd.xlane.f32.xlu0 %v2623
        %v2625 = vpop.xlane.xlu0 %2624
        %v2626 = vrcp.pop %v2619
        %v2627 = vrcp.pop %v2622
        %v2628 = vrcp.pop %v2625
        %v2629 = vmul.f32 %v2612, %v2626
        %v2630 = vmul.f32 %v2614, %v2627
        %v2631 = vmul.f32 %v2616, %v2628
        %v2632 = vpack.c.bf16 %v2630, %v2629
        %v2633 = vpack.c.bf16 %v2631, %v2631
        %2634 = vrot.lane.b32.xlu0 %v2413, 96
        %v2635 = vpop.permute.xlu0 %2634
        %2636 = vrot.lane.b32.xlu0 %v2412, 96
        %v2637 = vpop.permute.xlu0 %2636
        %v2640 = vsel %vm1408, %v2632, 0
        %v2643 = vsel %vm1408, %v2633, 0
        %v2646 = vsel %vm1450, %v2637, 0
        %2648 = vmatprep.subr.bf16.mxu0 0
        %2649 = vmatpush1.bf16.msra.mxu0 %v2635
        %2650 = vmatprep.subr.bf16.mxu0 0
        %2651 = vmatpush1.bf16.msra.mxu0 %v2646
        %2652 = vmatprep.subr.bf16.mxu0 0
        %2653 = vmatpush1.bf16.msra.mxu0 0
        %2654 = vmatprep.subr.bf16.mxu0 0
        %2655 = vmatpush1.bf16.msra.mxu0 0
        %2656 = vmatprep.subr.bf16.mxu0 0
        %2657 = vmatpush1.bf16.msra.mxu0 0
        %2658 = vmatprep.subr.bf16.mxu0 0
        %2659 = vmatpush1.bf16.msra.mxu0 0
        %2660 = vmatprep.subr.bf16.mxu0 0
        %2661 = vmatpush1.bf16.msra.mxu0 0
        %2662 = vmatprep.subr.bf16.mxu0 0
        %2663 = vmatpush1.bf16.msra.mxu0 0
        %2664 = vmatprep.subr.bf16.mxu0 0
        %2665 = vmatpush1.bf16.msra.mxu0 0
        %2666 = vmatprep.subr.bf16.mxu0 0
        %2667 = vmatpush1.bf16.msra.mxu0 0
        %2668 = vmatprep.subr.bf16.mxu0 0
        %2669 = vmatpush1.bf16.msra.mxu0 0
        %2670 = vmatprep.subr.bf16.mxu0 0
        %2671 = vmatpush1.bf16.msra.mxu0 0
        %2672 = vmatprep.subr.bf16.mxu0 0
        %2673 = vmatpush1.bf16.msra.mxu0 0
        %2674 = vmatprep.subr.bf16.mxu0 0
        %2675 = vmatpush1.bf16.msra.mxu0 0
        %2676 = vmatprep.subr.bf16.mxu0 0
        %2677 = vmatpush1.bf16.msra.mxu0 0
        %2678 = vmatprep.subr.bf16.mxu0 0
        %2679 = vmatpush1.bf16.msra.mxu0 0
        %2680 = vmatprep.mubr.bf16.mxu0 0
        %2681 = vmatmul.mubr.bf16.gmra.mrb[0].mxu0 %v2640
        %v2682 = vpop.f32.mrb[0].mxu0
        %v2683 = vadd.f32 0.0, %v2682
        %v2684 = vpop.f32.mrb[0].mxu0
        %v2685 = vpop.f32.mrb[0].mxu0
        %v2686 = vadd.f32 0.0, %v2685
        %v2687 = vpop.f32.mrb[0].mxu0
        %2688 = vmatprep.mubr.bf16.mxu0 0
        %2689 = vmatmul.mubr.bf16.gmra.mrb[0].mxu0 %v2643
        %v2690 = vpop.f32.mrb[0].mxu0
        %v2691 = vadd.f32 0.0, %v2690
        %v2692 = vpop.f32.mrb[0].mxu0
        %v2693 = vpop.f32.mrb[0].mxu0
        %v2694 = vpop.f32.mrb[0].mxu0
        %2695 = vdwg.mxu0
        %v2696 = vpack.c.bf16 %v2686, %v2683
        %v2697 = vpack.c.bf16 %v2691, %v2691
        %v2699 = vsel %vm1347, %v2696, 0
        %v2702 = vsel %vm1347, %v2697, 0
        %2704 = vmatprep.subr.bf16.mxu0 0
        %2705 = vmatpush1.bf16.msra.mxu0 %v1762
        %2706 = vmatprep.subr.bf16.mxu0 0
        %2707 = vmatpush1.bf16.msra.mxu0 %v1763
        %2708 = vmatprep.subr.bf16.mxu0 0
        %2709 = vmatpush1.bf16.msra.mxu0 0
        %2710 = vmatprep.subr.bf16.mxu0 0
        %2711 = vmatpush1.bf16.msra.mxu0 0
        %2712 = vmatprep.subr.bf16.mxu0 0
        %2713 = vmatpush1.bf16.msra.mxu0 0
        %2714 = vmatprep.subr.bf16.mxu0 0
        %2715 = vmatpush1.bf16.msra.mxu0 0
        %2716 = vmatprep.subr.bf16.mxu0 0
        %2717 = vmatpush1.bf16.msra.mxu0 0
        %2718 = vmatprep.subr.bf16.mxu0 0
        %2719 = vmatpush1.bf16.msra.mxu0 0
        %2720 = vmatprep.subr.bf16.mxu0 0
        %2721 = vmatpush1.bf16.msra.mxu0 0
        %2722 = vmatprep.subr.bf16.mxu0 0
        %2723 = vmatpush1.bf16.msra.mxu0 0
        %2724 = vmatprep.subr.bf16.mxu0 0
        %2725 = vmatpush1.bf16.msra.mxu0 0
        %2726 = vmatprep.subr.bf16.mxu0 0
        %2727 = vmatpush1.bf16.msra.mxu0 0
        %2728 = vmatprep.subr.bf16.mxu0 0
        %2729 = vmatpush1.bf16.msra.mxu0 0
        %2730 = vmatprep.subr.bf16.mxu0 0
        %2731 = vmatpush1.bf16.msra.mxu0 0
        %2732 = vmatprep.subr.bf16.mxu0 0
        %2733 = vmatpush1.bf16.msra.mxu0 0
        %2734 = vmatprep.subr.bf16.mxu0 0
        %2735 = vmatpush1.bf16.msra.mxu0 0
        %2736 = vmatprep.mubr.bf16.mxu0 0
        %2737 = vmatmul.mubr.bf16.gmra.mrb[0].mxu0 %v2699
        %v2738 = vpop.f32.mrb[0].mxu0
        %v2739 = vadd.f32 0.0, %v2738
        %v2740 = vpop.f32.mrb[0].mxu0
        %v2741 = vpop.f32.mrb[0].mxu0
        %v2742 = vadd.f32 0.0, %v2741
        %v2743 = vpop.f32.mrb[0].mxu0
        %2744 = vmatprep.mubr.bf16.mxu0 0
        %2745 = vmatmul.mubr.bf16.gmra.mrb[0].mxu0 %v2702
        %v2746 = vpop.f32.mrb[0].mxu0
        %v2747 = vadd.f32 0.0, %v2746
        %v2748 = vpop.f32.mrb[0].mxu0
        %v2749 = vpop.f32.mrb[0].mxu0
        %v2750 = vpop.f32.mrb[0].mxu0
        %2751 = vdwg.mxu0
        %v2752 = vadd.f32 %v2528, %v2739
        %v2753 = vadd.f32 %v2529, %v2742
        %v2754 = vadd.f32 %v2530, %v2747
        %2755 = vrot.lane.b32.xlu0 %v2310, 64
        %v2756 = vpop.permute.xlu0 %2755
        %2757 = vrot.lane.b32.xlu0 %v2309, 64
        %v2758 = vpop.permute.xlu0 %2757
        %2759 = vrot.lane.b32.xlu0 %v2314, 64
        %v2760 = vpop.permute.xlu0 %2759
        %2761 = vrot.lane.b32.xlu0 %v2313, 64
        %v2762 = vpop.permute.xlu0 %2761
        %v2764 = vsel %vm1347, %v2756, 0
        %v2767 = vsel %vm1347, %v2758, 0
        %v2770 = vsel %vm1347, %v2760, 0
        %v2773 = vsel %vm1347, %v2762, 0
        %2775 = vmatprep.subr.bf16.mxu0 0
        %2776 = vmatpush1.bf16.xpose.msra.mxu0 %v2770
        %2777 = vmatprep.subr.bf16.mxu0 0
        %2778 = vmatpush1.bf16.xpose.msra.mxu0 %v2773
        %2779 = vmatprep.subr.bf16.mxu0 0
        %2780 = vmatpush1.bf16.xpose.msra.mxu0 0
        %2781 = vmatprep.subr.bf16.mxu0 0
        %2782 = vmatpush1.bf16.xpose.msra.mxu0 0
        %2783 = vmatprep.subr.bf16.mxu0 0
        %2784 = vmatpush1.bf16.xpose.msra.mxu0 0
        %2785 = vmatprep.subr.bf16.mxu0 0
        %2786 = vmatpush1.bf16.xpose.msra.mxu0 0
        %2787 = vmatprep.subr.bf16.mxu0 0
        %2788 = vmatpush1.bf16.xpose.msra.mxu0 0
        %2789 = vmatprep.subr.bf16.mxu0 0
        %2790 = vmatpush1.bf16.xpose.msra.mxu0 0
        %2791 = vmatprep.subr.bf16.mxu0 0
        %2792 = vmatpush1.bf16.xpose.msra.mxu0 0
        %2793 = vmatprep.subr.bf16.mxu0 0
        %2794 = vmatpush1.bf16.xpose.msra.mxu0 0
        %2795 = vmatprep.subr.bf16.mxu0 0
        %2796 = vmatpush1.bf16.xpose.msra.mxu0 0
        %2797 = vmatprep.subr.bf16.mxu0 0
        %2798 = vmatpush1.bf16.xpose.msra.mxu0 0
        %2799 = vmatprep.subr.bf16.mxu0 0
        %2800 = vmatpush1.bf16.xpose.msra.mxu0 0
        %2801 = vmatprep.subr.bf16.mxu0 0
        %2802 = vmatpush1.bf16.xpose.msra.mxu0 0
        %2803 = vmatprep.subr.bf16.mxu0 0
        %2804 = vmatpush1.bf16.xpose.msra.mxu0 0
        %2805 = vmatprep.subr.bf16.mxu0 0
        %2806 = vmatpush1.bf16.xpose.msra.mxu0 0
        %2807 = vmatprep.mubr.bf16.mxu0 0
        %2808 = vmatmul.mubr.bf16.gmra.mrb[0].mxu0 %v2764
        %v2809 = vpop.f32.mrb[0].mxu0
        %v2810 = vadd.f32 %v1336, %v2809
        %v2811 = vpop.f32.mrb[0].mxu0
        %v2812 = vpop.f32.mrb[0].mxu0
        %v2813 = vadd.f32 %v1336, %v2812
        %v2814 = vpop.f32.mrb[0].mxu0
        %2815 = vmatprep.mubr.bf16.mxu0 0
        %2816 = vmatmul.mubr.bf16.gmra.mrb[0].mxu0 %v2767
        %v2817 = vpop.f32.mrb[0].mxu0
        %v2818 = vadd.f32 %v1336, %v2817
        %v2819 = vpop.f32.mrb[0].mxu0
        %v2820 = vpop.f32.mrb[0].mxu0
        %v2821 = vpop.f32.mrb[0].mxu0
        %2822 = vdwg.mxu0
        %v2823 = vsel %vm1408, %v2810, -inf
        %2824 = vmax.xlane.f32.xlu0 %v2823
        %v2825 = vpop.xlane.xlu0 %2824
        %v2826 = vsel %vm1408, %v2813, -inf
        %2827 = vmax.xlane.f32.xlu0 %v2826
        %v2828 = vpop.xlane.xlu0 %2827
        %v2829 = vsel %vm1408, %v2818, -inf
        %2830 = vmax.xlane.f32.xlu0 %v2829
        %v2831 = vpop.xlane.xlu0 %2830
        %v2832 = vsub.f32 %v2810, %v2825
        %v2833 = vsub.f32 %v2813, %v2828
        %v2834 = vsub.f32 %v2818, %v2831
        %v2835 = vmul.f32 %v2832, 1.442695
        %v2836 = vpow.pop %v2835
        %v2837 = vmul.f32 %v2833, 1.442695
        %v2838 = vpow.pop %v2837
        %v2839 = vmul.f32 %v2834, 1.442695
        %v2840 = vpow.pop %v2839
        %v2841 = vsel %vm1408, %v2836, 0.0
        %2842 = vadd.xlane.f32.xlu0 %v2841
        %v2843 = vpop.xlane.xlu0 %2842
        %v2844 = vsel %vm1408, %v2838, 0.0
        %2845 = vadd.xlane.f32.xlu0 %v2844
        %v2846 = vpop.xlane.xlu0 %2845
        %v2847 = vsel %vm1408, %v2840, 0.0
        %2848 = vadd.xlane.f32.xlu0 %v2847
        %v2849 = vpop.xlane.xlu0 %2848
        %v2850 = vrcp.pop %v2843
        %v2851 = vrcp.pop %v2846
        %v2852 = vrcp.pop %v2849
        %v2853 = vmul.f32 %v2836, %v2850
        %v2854 = vmul.f32 %v2838, %v2851
        %v2855 = vmul.f32 %v2840, %v2852
        %v2856 = vpack.c.bf16 %v2854, %v2853
        %v2857 = vpack.c.bf16 %v2855, %v2855
        %2858 = vrot.lane.b32.xlu0 %v2413, 64
        %v2859 = vpop.permute.xlu0 %2858
        %2860 = vrot.lane.b32.xlu0 %v2412, 64
        %v2861 = vpop.permute.xlu0 %2860
        %v2864 = vsel %vm1408, %v2856, 0
        %v2867 = vsel %vm1408, %v2857, 0
        %v2870 = vsel %vm1450, %v2861, 0
        %2872 = vmatprep.subr.bf16.mxu0 0
        %2873 = vmatpush1.bf16.msra.mxu0 %v2859
        %2874 = vmatprep.subr.bf16.mxu0 0
        %2875 = vmatpush1.bf16.msra.mxu0 %v2870
        %2876 = vmatprep.subr.bf16.mxu0 0
        %2877 = vmatpush1.bf16.msra.mxu0 0
        %2878 = vmatprep.subr.bf16.mxu0 0
        %2879 = vmatpush1.bf16.msra.mxu0 0
        %2880 = vmatprep.subr.bf16.mxu0 0
        %2881 = vmatpush1.bf16.msra.mxu0 0
        %2882 = vmatprep.subr.bf16.mxu0 0
        %2883 = vmatpush1.bf16.msra.mxu0 0
        %2884 = vmatprep.subr.bf16.mxu0 0
        %2885 = vmatpush1.bf16.msra.mxu0 0
        %2886 = vmatprep.subr.bf16.mxu0 0
        %2887 = vmatpush1.bf16.msra.mxu0 0
        %2888 = vmatprep.subr.bf16.mxu0 0
        %2889 = vmatpush1.bf16.msra.mxu0 0
        %2890 = vmatprep.subr.bf16.mxu0 0
        %2891 = vmatpush1.bf16.msra.mxu0 0
        %2892 = vmatprep.subr.bf16.mxu0 0
        %2893 = vmatpush1.bf16.msra.mxu0 0
        %2894 = vmatprep.subr.bf16.mxu0 0
        %2895 = vmatpush1.bf16.msra.mxu0 0
        %2896 = vmatprep.subr.bf16.mxu0 0
        %2897 = vmatpush1.bf16.msra.mxu0 0
        %2898 = vmatprep.subr.bf16.mxu0 0
        %2899 = vmatpush1.bf16.msra.mxu0 0
        %2900 = vmatprep.subr.bf16.mxu0 0
        %2901 = vmatpush1.bf16.msra.mxu0 0
        %2902 = vmatprep.subr.bf16.mxu0 0
        %2903 = vmatpush1.bf16.msra.mxu0 0
        %2904 = vmatprep.mubr.bf16.mxu0 0
        %2905 = vmatmul.mubr.bf16.gmra.mrb[0].mxu0 %v2864
        %v2906 = vpop.f32.mrb[0].mxu0
        %v2907 = vadd.f32 0.0, %v2906
        %v2908 = vpop.f32.mrb[0].mxu0
        %v2909 = vpop.f32.mrb[0].mxu0
        %v2910 = vadd.f32 0.0, %v2909
        %v2911 = vpop.f32.mrb[0].mxu0
        %2912 = vmatprep.mubr.bf16.mxu0 0
        %2913 = vmatmul.mubr.bf16.gmra.mrb[0].mxu0 %v2867
        %v2914 = vpop.f32.mrb[0].mxu0
        %v2915 = vadd.f32 0.0, %v2914
        %v2916 = vpop.f32.mrb[0].mxu0
        %v2917 = vpop.f32.mrb[0].mxu0
        %v2918 = vpop.f32.mrb[0].mxu0
        %2919 = vdwg.mxu0
        %v2920 = vpack.c.bf16 %v2910, %v2907
        %v2921 = vpack.c.bf16 %v2915, %v2915
        %v2923 = vsel %vm1347, %v2920, 0
        %v2926 = vsel %vm1347, %v2921, 0
        %2928 = vmatprep.subr.bf16.mxu0 0
        %2929 = vmatpush1.bf16.msra.mxu0 %v2002
        %2930 = vmatprep.subr.bf16.mxu0 0
        %2931 = vmatpush1.bf16.msra.mxu0 %v2003
        %2932 = vmatprep.subr.bf16.mxu0 0
        %2933 = vmatpush1.bf16.msra.mxu0 0
        %2934 = vmatprep.subr.bf16.mxu0 0
        %2935 = vmatpush1.bf16.msra.mxu0 0
        %2936 = vmatprep.subr.bf16.mxu0 0
        %2937 = vmatpush1.bf16.msra.mxu0 0
        %2938 = vmatprep.subr.bf16.mxu0 0
        %2939 = vmatpush1.bf16.msra.mxu0 0
        %2940 = vmatprep.subr.bf16.mxu0 0
        %2941 = vmatpush1.bf16.msra.mxu0 0
        %2942 = vmatprep.subr.bf16.mxu0 0
        %2943 = vmatpush1.bf16.msra.mxu0 0
        %2944 = vmatprep.subr.bf16.mxu0 0
        %2945 = vmatpush1.bf16.msra.mxu0 0
        %2946 = vmatprep.subr.bf16.mxu0 0
        %2947 = vmatpush1.bf16.msra.mxu0 0
        %2948 = vmatprep.subr.bf16.mxu0 0
        %2949 = vmatpush1.bf16.msra.mxu0 0
        %2950 = vmatprep.subr.bf16.mxu0 0
        %2951 = vmatpush1.bf16.msra.mxu0 0
        %2952 = vmatprep.subr.bf16.mxu0 0
        %2953 = vmatpush1.bf16.msra.mxu0 0
        %2954 = vmatprep.subr.bf16.mxu0 0
        %2955 = vmatpush1.bf16.msra.mxu0 0
        %2956 = vmatprep.subr.bf16.mxu0 0
        %2957 = vmatpush1.bf16.msra.mxu0 0
        %2958 = vmatprep.subr.bf16.mxu0 0
        %2959 = vmatpush1.bf16.msra.mxu0 0
        %2960 = vmatprep.mubr.bf16.mxu0 0
        %2961 = vmatmul.mubr.bf16.gmra.mrb[0].mxu0 %v2923
        %v2962 = vpop.f32.mrb[0].mxu0
        %v2963 = vadd.f32 0.0, %v2962
        %v2964 = vpop.f32.mrb[0].mxu0
        %v2965 = vpop.f32.mrb[0].mxu0
        %v2966 = vadd.f32 0.0, %v2965
        %v2967 = vpop.f32.mrb[0].mxu0
        %2968 = vmatprep.mubr.bf16.mxu0 0
        %2969 = vmatmul.mubr.bf16.gmra.mrb[0].mxu0 %v2926
        %v2970 = vpop.f32.mrb[0].mxu0
        %v2971 = vadd.f32 0.0, %v2970
        %v2972 = vpop.f32.mrb[0].mxu0
        %v2973 = vpop.f32.mrb[0].mxu0
        %v2974 = vpop.f32.mrb[0].mxu0
        %2975 = vdwg.mxu0
        %v2976 = vadd.f32 %v2752, %v2963
        %v2977 = vadd.f32 %v2753, %v2966
        %v2978 = vadd.f32 %v2754, %v2971
        %2979 = vrot.lane.b32.xlu0 %v2310, 32
        %v2980 = vpop.permute.xlu0 %2979
        %2981 = vrot.lane.b32.xlu0 %v2309, 32
        %v2982 = vpop.permute.xlu0 %2981
        %2983 = vrot.lane.b32.xlu0 %v2314, 32
        %v2984 = vpop.permute.xlu0 %2983
        %2985 = vrot.lane.b32.xlu0 %v2313, 32
        %v2986 = vpop.permute.xlu0 %2985
        %v2988 = vsel %vm1347, %v2980, 0
        %v2991 = vsel %vm1347, %v2982, 0
        %v2994 = vsel %vm1347, %v2984, 0
        %v2997 = vsel %vm1347, %v2986, 0
        %2999 = vmatprep.subr.bf16.mxu0 0
        %3000 = vmatpush1.bf16.xpose.msra.mxu0 %v2994
        %3001 = vmatprep.subr.bf16.mxu0 0
        %3002 = vmatpush1.bf16.xpose.msra.mxu0 %v2997
        %3003 = vmatprep.subr.bf16.mxu0 0
        %3004 = vmatpush1.bf16.xpose.msra.mxu0 0
        %3005 = vmatprep.subr.bf16.mxu0 0
        %3006 = vmatpush1.bf16.xpose.msra.mxu0 0
        %3007 = vmatprep.subr.bf16.mxu0 0
        %3008 = vmatpush1.bf16.xpose.msra.mxu0 0
        %3009 = vmatprep.subr.bf16.mxu0 0
        %3010 = vmatpush1.bf16.xpose.msra.mxu0 0
        %3011 = vmatprep.subr.bf16.mxu0 0
        %3012 = vmatpush1.bf16.xpose.msra.mxu0 0
        %3013 = vmatprep.subr.bf16.mxu0 0
        %3014 = vmatpush1.bf16.xpose.msra.mxu0 0
        %3015 = vmatprep.subr.bf16.mxu0 0
        %3016 = vmatpush1.bf16.xpose.msra.mxu0 0
        %3017 = vmatprep.subr.bf16.mxu0 0
        %3018 = vmatpush1.bf16.xpose.msra.mxu0 0
        %3019 = vmatprep.subr.bf16.mxu0 0
        %3020 = vmatpush1.bf16.xpose.msra.mxu0 0
        %3021 = vmatprep.subr.bf16.mxu0 0
        %3022 = vmatpush1.bf16.xpose.msra.mxu0 0
        %3023 = vmatprep.subr.bf16.mxu0 0
        %3024 = vmatpush1.bf16.xpose.msra.mxu0 0
        %3025 = vmatprep.subr.bf16.mxu0 0
        %3026 = vmatpush1.bf16.xpose.msra.mxu0 0
        %3027 = vmatprep.subr.bf16.mxu0 0
        %3028 = vmatpush1.bf16.xpose.msra.mxu0 0
        %3029 = vmatprep.subr.bf16.mxu0 0
        %3030 = vmatpush1.bf16.xpose.msra.mxu0 0
        %3031 = vmatprep.mubr.bf16.mxu0 0
        %3032 = vmatmul.mubr.bf16.gmra.mrb[0].mxu0 %v2988
        %v3033 = vpop.f32.mrb[0].mxu0
        %v3034 = vadd.f32 %v1336, %v3033
        %v3035 = vpop.f32.mrb[0].mxu0
        %v3036 = vpop.f32.mrb[0].mxu0
        %v3037 = vadd.f32 %v1336, %v3036
        %v3038 = vpop.f32.mrb[0].mxu0
        %3039 = vmatprep.mubr.bf16.mxu0 0
        %3040 = vmatmul.mubr.bf16.gmra.mrb[0].mxu0 %v2991
        %v3041 = vpop.f32.mrb[0].mxu0
        %v3042 = vadd.f32 %v1336, %v3041
        %v3043 = vpop.f32.mrb[0].mxu0
        %v3044 = vpop.f32.mrb[0].mxu0
        %v3045 = vpop.f32.mrb[0].mxu0
        %3046 = vdwg.mxu0
        %v3047 = vsel %vm1408, %v3034, -inf
        %3048 = vmax.xlane.f32.xlu0 %v3047
        %v3049 = vpop.xlane.xlu0 %3048
        %v3050 = vsel %vm1408, %v3037, -inf
        %3051 = vmax.xlane.f32.xlu0 %v3050
        %v3052 = vpop.xlane.xlu0 %3051
        %v3053 = vsel %vm1408, %v3042, -inf
        %3054 = vmax.xlane.f32.xlu0 %v3053
        %v3055 = vpop.xlane.xlu0 %3054
        %v3056 = vsub.f32 %v3034, %v3049
        %v3057 = vsub.f32 %v3037, %v3052
        %v3058 = vsub.f32 %v3042, %v3055
        %v3059 = vmul.f32 %v3056, 1.442695
        %v3060 = vpow.pop %v3059
        %v3061 = vmul.f32 %v3057, 1.442695
        %v3062 = vpow.pop %v3061
        %v3063 = vmul.f32 %v3058, 1.442695
        %v3064 = vpow.pop %v3063
        %v3065 = vsel %vm1408, %v3060, 0.0
        %3066 = vadd.xlane.f32.xlu0 %v3065
        %v3067 = vpop.xlane.xlu0 %3066
        %v3068 = vsel %vm1408, %v3062, 0.0
        %3069 = vadd.xlane.f32.xlu0 %v3068
        %v3070 = vpop.xlane.xlu0 %3069
        %v3071 = vsel %vm1408, %v3064, 0.0
        %3072 = vadd.xlane.f32.xlu0 %v3071
        %v3073 = vpop.xlane.xlu0 %3072
        %v3074 = vrcp.pop %v3067
        %v3075 = vrcp.pop %v3070
        %v3076 = vrcp.pop %v3073
        %v3077 = vmul.f32 %v3060, %v3074
        %v3078 = vmul.f32 %v3062, %v3075
        %v3079 = vmul.f32 %v3064, %v3076
        %v3080 = vpack.c.bf16 %v3078, %v3077
        %v3081 = vpack.c.bf16 %v3079, %v3079
        %3082 = vrot.lane.b32.xlu0 %v2413, 32
        %v3083 = vpop.permute.xlu0 %3082
        %3084 = vrot.lane.b32.xlu0 %v2412, 32
        %v3085 = vpop.permute.xlu0 %3084
        %v3088 = vsel %vm1408, %v3080, 0
        %v3091 = vsel %vm1408, %v3081, 0
        %v3094 = vsel %vm1450, %v3085, 0
        %3096 = vmatprep.subr.bf16.mxu0 0
        %3097 = vmatpush1.bf16.msra.mxu0 %v3083
        %3098 = vmatprep.subr.bf16.mxu0 0
        %3099 = vmatpush1.bf16.msra.mxu0 %v3094
        %3100 = vmatprep.subr.bf16.mxu0 0
        %3101 = vmatpush1.bf16.msra.mxu0 0
        %3102 = vmatprep.subr.bf16.mxu0 0
        %3103 = vmatpush1.bf16.msra.mxu0 0
        %3104 = vmatprep.subr.bf16.mxu0 0
        %3105 = vmatpush1.bf16.msra.mxu0 0
        %3106 = vmatprep.subr.bf16.mxu0 0
        %3107 = vmatpush1.bf16.msra.mxu0 0
        %3108 = vmatprep.subr.bf16.mxu0 0
        %3109 = vmatpush1.bf16.msra.mxu0 0
        %3110 = vmatprep.subr.bf16.mxu0 0
        %3111 = vmatpush1.bf16.msra.mxu0 0
        %3112 = vmatprep.subr.bf16.mxu0 0
        %3113 = vmatpush1.bf16.msra.mxu0 0
        %3114 = vmatprep.subr.bf16.mxu0 0
        %3115 = vmatpush1.bf16.msra.mxu0 0
        %3116 = vmatprep.subr.bf16.mxu0 0
        %3117 = vmatpush1.bf16.msra.mxu0 0
        %3118 = vmatprep.subr.bf16.mxu0 0
        %3119 = vmatpush1.bf16.msra.mxu0 0
        %3120 = vmatprep.subr.bf16.mxu0 0
        %3121 = vmatpush1.bf16.msra.mxu0 0
        %3122 = vmatprep.subr.bf16.mxu0 0
        %3123 = vmatpush1.bf16.msra.mxu0 0
        %3124 = vmatprep.subr.bf16.mxu0 0
        %3125 = vmatpush1.bf16.msra.mxu0 0
        %3126 = vmatprep.subr.bf16.mxu0 0
        %3127 = vmatpush1.bf16.msra.mxu0 0
        %3128 = vmatprep.mubr.bf16.mxu0 0
        %3129 = vmatmul.mubr.bf16.gmra.mrb[0].mxu0 %v3088
        %v3130 = vpop.f32.mrb[0].mxu0
        %v3131 = vadd.f32 0.0, %v3130
        %v3132 = vpop.f32.mrb[0].mxu0
        %v3133 = vpop.f32.mrb[0].mxu0
        %v3134 = vadd.f32 0.0, %v3133
        %v3135 = vpop.f32.mrb[0].mxu0
        %3136 = vmatprep.mubr.bf16.mxu0 0
        %3137 = vmatmul.mubr.bf16.gmra.mrb[0].mxu0 %v3091
        %v3138 = vpop.f32.mrb[0].mxu0
        %v3139 = vadd.f32 0.0, %v3138
        %v3140 = vpop.f32.mrb[0].mxu0
        %v3141 = vpop.f32.mrb[0].mxu0
        %v3142 = vpop.f32.mrb[0].mxu0
        %3143 = vdwg.mxu0
        %v3144 = vpack.c.bf16 %v3134, %v3131
        %v3145 = vpack.c.bf16 %v3139, %v3139
        %v3147 = vsel %vm1347, %v3144, 0
        %v3150 = vsel %vm1347, %v3145, 0
        %3152 = vmatprep.subr.bf16.mxu0 0
        %3153 = vmatpush1.bf16.msra.mxu0 %v2242
        %3154 = vmatprep.subr.bf16.mxu0 0
        %3155 = vmatpush1.bf16.msra.mxu0 %v2243
        %3156 = vmatprep.subr.bf16.mxu0 0
        %3157 = vmatpush1.bf16.msra.mxu0 0
        %3158 = vmatprep.subr.bf16.mxu0 0
        %3159 = vmatpush1.bf16.msra.mxu0 0
        %3160 = vmatprep.subr.bf16.mxu0 0
        %3161 = vmatpush1.bf16.msra.mxu0 0
        %3162 = vmatprep.subr.bf16.mxu0 0
        %3163 = vmatpush1.bf16.msra.mxu0 0
        %3164 = vmatprep.subr.bf16.mxu0 0
        %3165 = vmatpush1.bf16.msra.mxu0 0
        %3166 = vmatprep.subr.bf16.mxu0 0
        %3167 = vmatpush1.bf16.msra.mxu0 0
        %3168 = vmatprep.subr.bf16.mxu0 0
        %3169 = vmatpush1.bf16.msra.mxu0 0
        %3170 = vmatprep.subr.bf16.mxu0 0
        %3171 = vmatpush1.bf16.msra.mxu0 0
        %3172 = vmatprep.subr.bf16.mxu0 0
        %3173 = vmatpush1.bf16.msra.mxu0 0
        %3174 = vmatprep.subr.bf16.mxu0 0
        %3175 = vmatpush1.bf16.msra.mxu0 0
        %3176 = vmatprep.subr.bf16.mxu0 0
        %3177 = vmatpush1.bf16.msra.mxu0 0
        %3178 = vmatprep.subr.bf16.mxu0 0
        %3179 = vmatpush1.bf16.msra.mxu0 0
        %3180 = vmatprep.subr.bf16.mxu0 0
        %3181 = vmatpush1.bf16.msra.mxu0 0
        %3182 = vmatprep.subr.bf16.mxu0 0
        %3183 = vmatpush1.bf16.msra.mxu0 0
        %3184 = vmatprep.mubr.bf16.mxu0 0
        %3185 = vmatmul.mubr.bf16.gmra.mrb[0].mxu0 %v3147
        %v3186 = vpop.f32.mrb[0].mxu0
        %v3187 = vadd.f32 0.0, %v3186
        %v3188 = vpop.f32.mrb[0].mxu0
        %v3189 = vpop.f32.mrb[0].mxu0
        %v3190 = vadd.f32 0.0, %v3189
        %v3191 = vpop.f32.mrb[0].mxu0
        %3192 = vmatprep.mubr.bf16.mxu0 0
        %3193 = vmatmul.mubr.bf16.gmra.mrb[0].mxu0 %v3150
        %v3194 = vpop.f32.mrb[0].mxu0
        %v3195 = vadd.f32 0.0, %v3194
        %v3196 = vpop.f32.mrb[0].mxu0
        %v3197 = vpop.f32.mrb[0].mxu0
        %v3198 = vpop.f32.mrb[0].mxu0
        %3199 = vdwg.mxu0
        %v3200 = vadd.f32 %v2976, %v3187
        %v3201 = vadd.f32 %v2977, %v3190
        %v3202 = vadd.f32 %v2978, %v3195
        %v3203 = vld [vmem:[%s776] sm:$0x1]
        %v3204 = vld [vmem:[%s779] sm:$0x1]
        %3205 = vadd.xlane.f32.xlu0 %v2300
        %v3206 = vpop.xlane.xlu0 %3205
        %3207 = vadd.xlane.f32.xlu0 %v2301
        %v3208 = vpop.xlane.xlu0 %3207
        %3209 = vadd.xlane.f32.xlu0 %v2302
        %v3210 = vpop.xlane.xlu0 %3209
        %3211 = vadd.xlane.f32.xlu0 %v3200
        %v3212 = vpop.xlane.xlu0 %3211
        %3213 = vadd.xlane.f32.xlu0 %v3201
        %v3214 = vpop.xlane.xlu0 %3213
        %3215 = vadd.xlane.f32.xlu0 %v3202
        %v3216 = vpop.xlane.xlu0 %3215
        %v3217 = vmul.f32 %v3206, %v943
        %v3218 = vmul.f32 %v3208, %v943
        %v3219 = vmul.f32 %v3210, %v943
        %v3220 = vmul.f32 %v3212, %v943
        %v3221 = vmul.f32 %v3214, %v943
        %v3222 = vmul.f32 %v3216, %v943
        %v3223 = vsub.f32 %v2300, %v3217
        %v3224 = vsub.f32 %v2301, %v3218
        %v3225 = vsub.f32 %v2302, %v3219
        %v3226 = vsub.f32 %v3200, %v3220
        %v3227 = vsub.f32 %v3201, %v3221
        %v3228 = vsub.f32 %v3202, %v3222
        %v3229 = vmul.f32 %v3223, %v3223
        %v3230 = vmul.f32 %v3224, %v3224
        %v3231 = vmul.f32 %v3225, %v3225
        %v3232 = vmul.f32 %v3226, %v3226
        %v3233 = vmul.f32 %v3227, %v3227
        %v3234 = vmul.f32 %v3228, %v3228
        %3235 = vadd.xlane.f32.xlu0 %v3229
        %v3236 = vpop.xlane.xlu0 %3235
        %3237 = vadd.xlane.f32.xlu0 %v3230
        %v3238 = vpop.xlane.xlu0 %3237
        %3239 = vadd.xlane.f32.xlu0 %v3231
        %v3240 = vpop.xlane.xlu0 %3239
        %3241 = vadd.xlane.f32.xlu0 %v3232
        %v3242 = vpop.xlane.xlu0 %3241
        %3243 = vadd.xlane.f32.xlu0 %v3233
        %v3244 = vpop.xlane.xlu0 %3243
        %3245 = vadd.xlane.f32.xlu0 %v3234
        %v3246 = vpop.xlane.xlu0 %3245
        %v3247 = vmul.f32 %v3236, %v943
        %v3248 = vmul.f32 %v3238, %v943
        %v3249 = vmul.f32 %v3240, %v943
        %v3250 = vmul.f32 %v3242, %v943
        %v3251 = vmul.f32 %v3244, %v943
        %v3252 = vmul.f32 %v3246, %v943
        %v3253 = vadd.f32 %v3247, 1e-05
        %v3254 = vadd.f32 %v3248, 1e-05
        %v3255 = vadd.f32 %v3249, 1e-05
        %v3256 = vadd.f32 %v3250, 1e-05
        %v3257 = vadd.f32 %v3251, 1e-05
        %v3258 = vadd.f32 %v3252, 1e-05
        %v3259 = vrsqrt.pop %v3253
        %v3260 = vrsqrt.pop %v3254
        %v3261 = vrsqrt.pop %v3255
        %v3262 = vrsqrt.pop %v3256
        %v3263 = vrsqrt.pop %v3257
        %v3264 = vrsqrt.pop %v3258
        %v3265 = vmul.f32 %v3223, %v3259
        %v3266 = vmul.f32 %v3224, %v3260
        %v3267 = vmul.f32 %v3225, %v3261
        %v3268 = vmul.f32 %v3226, %v3262
        %v3269 = vmul.f32 %v3227, %v3263
        %v3270 = vmul.f32 %v3228, %v3264
        %v3272 = vlaneseq
        %v3273 = vshrl.u32 %v3272, 7
        %v3274 = vsub.s32 0, %v3273
        %v3275 = vrot.slane %v3203, %v3274
        %v3277 = vmul.f32 %v3265, %v3275
        %v3278 = vmul.f32 %v3266, %v3275
        %v3279 = vmul.f32 %v3267, %v3275
        %v3280 = vmul.f32 %v3268, %v3275
        %v3281 = vmul.f32 %v3269, %v3275
        %v3282 = vmul.f32 %v3270, %v3275
        %v3284 = vlaneseq
        %v3285 = vshrl.u32 %v3284, 7
        %v3286 = vsub.s32 0, %v3285
        %v3287 = vrot.slane %v3204, %v3286
        %v3289 = vadd.f32 %v3277, %v3287
        %v3290 = vadd.f32 %v3278, %v3287
        %v3291 = vadd.f32 %v3279, %v3287
        %v3292 = vadd.f32 %v3280, %v3287
        %v3293 = vadd.f32 %v3281, %v3287
        %v3294 = vadd.f32 %v3282, %v3287
        %v3295 = vpack.c.bf16 %v3290, %v3289
        %v3296 = vpack.c.bf16 %v3292, %v3291
        %v3297 = vpack.c.bf16 %v3294, %v3293
        %v3298 = vld [vmem:[%s796] sm:$0x1]
        %v3300 = vlaneseq
        %v3301 = vshrl.u32 %v3300, 7
        %v3302 = vsub.s32 0, %v3301
        %v3303 = vrot.slane %v3298, %v3302
        %v3305 = vadd.f32 %v2300, %v3303
        %v3306 = vadd.f32 %v2301, %v3303
        %v3307 = vadd.f32 %v2302, %v3303
        %v3308 = vadd.f32 %v3200, %v3303
        %v3309 = vadd.f32 %v3201, %v3303
        %v3310 = vadd.f32 %v3202, %v3303
        %v3311 = vld [vmem:[%s784] sm:$0xff]
        %v3312 = vld [vmem:[%s784 + $0x8] sm:$0xff]
        %v3313 = vld [vmem:[%s784 + $0x10] sm:$0xff]
        %v3314 = vld [vmem:[%s784 + $0x18] sm:$0xff]
        %v3315 = vld [vmem:[%s784 + $0x20] sm:$0xff]
        %v3316 = vld [vmem:[%s784 + $0x28] sm:$0xff]
        %v3317 = vld [vmem:[%s784 + $0x30] sm:$0xff]
        %v3318 = vld [vmem:[%s784 + $0x38] sm:$0xff]
        %v3319 = vld [vmem:[%s784 + $0x40] sm:$0xff]
        %v3320 = vld [vmem:[%s784 + $0x48] sm:$0xff]
        %v3321 = vld [vmem:[%s784 + $0x50] sm:$0xff]
        %v3322 = vld [vmem:[%s784 + $0x58] sm:$0xff]
        %v3323 = vld [vmem:[%s784 + $0x60] sm:$0xff]
        %v3324 = vld [vmem:[%s784 + $0x68] sm:$0xff]
        %v3325 = vld [vmem:[%s784 + $0x70] sm:$0xff]
        %v3326 = vld [vmem:[%s784 + $0x78] sm:$0xff]
        %v3327 = vld [vmem:[%s784 + $0x80] sm:$0xff]
        %v3328 = vld [vmem:[%s784 + $0x88] sm:$0xff]
        %v3329 = vld [vmem:[%s784 + $0x90] sm:$0xff]
        %v3330 = vld [vmem:[%s784 + $0x98] sm:$0xff]
        %v3331 = vld [vmem:[%s784 + $0xa0] sm:$0xff]
        %v3332 = vld [vmem:[%s784 + $0xa8] sm:$0xff]
        %v3333 = vld [vmem:[%s784 + $0xb0] sm:$0xff]
        %v3334 = vld [vmem:[%s784 + $0xb8] sm:$0xff]
        %v3335 = vld [vmem:[%s784 + $0xc0] sm:$0xff]
        %v3336 = vld [vmem:[%s784 + $0xc8] sm:$0xff]
        %v3337 = vld [vmem:[%s784 + $0xd0] sm:$0xff]
        %v3338 = vld [vmem:[%s784 + $0xd8] sm:$0xff]
        %v3339 = vld [vmem:[%s784 + $0xe0] sm:$0xff]
        %v3340 = vld [vmem:[%s784 + $0xe8] sm:$0xff]
        %v3341 = vld [vmem:[%s784 + $0xf0] sm:$0xff]
        %v3342 = vld [vmem:[%s784 + $0xf8] sm:$0xff]
        %v3343 = vld [vmem:[%s788] sm:$0xf]
        %v3345 = vlaneseq
        %v3346 = vshrl.u32 %v3345, 7
        %v3347 = vsub.s32 0, %v3346
        %v3348 = vrot.slane %v3343, %v3347
        %v3349 = vlaneseq
        %v3350 = vshrl.u32 %v3349, 7
        %v3351 = vsub.s32 1, %v3350
        %v3352 = vrot.slane %v3343, %v3351
        %v3353 = vlaneseq
        %v3354 = vshrl.u32 %v3353, 7
        %v3355 = vsub.s32 2, %v3354
        %v3356 = vrot.slane %v3343, %v3355
        %v3357 = vlaneseq
        %v3358 = vshrl.u32 %v3357, 7
        %v3359 = vsub.s32 3, %v3358
        %v3360 = vrot.slane %v3343, %v3359
        %v3397 = vunpack.c.l.b16 %v3311
        %v3398 = vunpack.c.h.b16 %v3311
        %v3399 = vunpack.c.l.b16 %v3312
        %v3400 = vunpack.c.h.b16 %v3312
        %v3401 = vunpack.c.l.b16 %v3313
        %v3402 = vunpack.c.h.b16 %v3313
        %v3403 = vunpack.c.l.b16 %v3314
        %v3404 = vunpack.c.h.b16 %v3314
        %v3405 = vunpack.c.l.b16 %v3315
        %v3406 = vunpack.c.h.b16 %v3315
        %v3407 = vunpack.c.l.b16 %v3316
        %v3408 = vunpack.c.h.b16 %v3316
        %v3409 = vunpack.c.l.b16 %v3317
        %v3410 = vunpack.c.h.b16 %v3317
        %v3411 = vunpack.c.l.b16 %v3318
        %v3412 = vunpack.c.h.b16 %v3318
        %v3413 = vunpack.c.l.b16 %v3319
        %v3414 = vunpack.c.h.b16 %v3319
        %v3415 = vunpack.c.l.b16 %v3320
        %v3416 = vunpack.c.h.b16 %v3320
        %v3417 = vunpack.c.l.b16 %v3321
        %v3418 = vunpack.c.h.b16 %v3321
        %v3419 = vunpack.c.l.b16 %v3322
        %v3420 = vunpack.c.h.b16 %v3322
        %v3421 = vunpack.c.l.b16 %v3323
        %v3422 = vunpack.c.h.b16 %v3323
        %v3423 = vunpack.c.l.b16 %v3324
        %v3424 = vunpack.c.h.b16 %v3324
        %v3425 = vunpack.c.l.b16 %v3325
        %v3426 = vunpack.c.h.b16 %v3325
        %v3427 = vunpack.c.l.b16 %v3326
        %v3428 = vunpack.c.h.b16 %v3326
        %v3429 = vunpack.c.l.b16 %v3327
        %v3430 = vunpack.c.h.b16 %v3327
        %v3431 = vunpack.c.l.b16 %v3328
        %v3432 = vunpack.c.h.b16 %v3328
        %v3433 = vunpack.c.l.b16 %v3329
        %v3434 = vunpack.c.h.b16 %v3329
        %v3435 = vunpack.c.l.b16 %v3330
        %v3436 = vunpack.c.h.b16 %v3330
        %v3437 = vunpack.c.l.b16 %v3331
        %v3438 = vunpack.c.h.b16 %v3331
        %v3439 = vunpack.c.l.b16 %v3332
        %v3440 = vunpack.c.h.b16 %v3332
        %v3441 = vunpack.c.l.b16 %v3333
        %v3442 = vunpack.c.h.b16 %v3333
        %v3443 = vunpack.c.l.b16 %v3334
        %v3444 = vunpack.c.h.b16 %v3334
        %v3445 = vunpack.c.l.b16 %v3335
        %v3446 = vunpack.c.h.b16 %v3335
        %v3447 = vunpack.c.l.b16 %v3336
        %v3448 = vunpack.c.h.b16 %v3336
        %v3449 = vunpack.c.l.b16 %v3337
        %v3450 = vunpack.c.h.b16 %v3337
        %v3451 = vunpack.c.l.b16 %v3338
        %v3452 = vunpack.c.h.b16 %v3338
        %v3453 = vunpack.c.l.b16 %v3339
        %v3454 = vunpack.c.h.b16 %v3339
        %v3455 = vunpack.c.l.b16 %v3340
        %v3456 = vunpack.c.h.b16 %v3340
        %v3457 = vunpack.c.l.b16 %v3341
        %v3458 = vunpack.c.h.b16 %v3341
        %v3459 = vunpack.c.l.b16 %v3342
        %v3460 = vunpack.c.h.b16 %v3342
        %v3461 = vpack.c.b16 %v3401, %v3397
        %v3462 = vpack.c.b16 %v3402, %v3398
        %v3463 = vpack.c.b16 %v3403, %v3399
        %v3464 = vpack.c.b16 %v3404, %v3400
        %v3465 = vpack.c.b16 %v3409, %v3405
        %v3466 = vpack.c.b16 %v3410, %v3406
        %v3467 = vpack.c.b16 %v3411, %v3407
        %v3468 = vpack.c.b16 %v3412, %v3408
        %v3469 = vpack.c.b16 %v3417, %v3413
        %v3470 = vpack.c.b16 %v3418, %v3414
        %v3471 = vpack.c.b16 %v3419, %v3415
        %v3472 = vpack.c.b16 %v3420, %v3416
        %v3473 = vpack.c.b16 %v3425, %v3421
        %v3474 = vpack.c.b16 %v3426, %v3422
        %v3475 = vpack.c.b16 %v3427, %v3423
        %v3476 = vpack.c.b16 %v3428, %v3424
        %v3477 = vpack.c.b16 %v3433, %v3429
        %v3478 = vpack.c.b16 %v3434, %v3430
        %v3479 = vpack.c.b16 %v3435, %v3431
        %v3480 = vpack.c.b16 %v3436, %v3432
        %v3481 = vpack.c.b16 %v3441, %v3437
        %v3482 = vpack.c.b16 %v3442, %v3438
        %v3483 = vpack.c.b16 %v3443, %v3439
        %v3484 = vpack.c.b16 %v3444, %v3440
        %v3485 = vpack.c.b16 %v3449, %v3445
        %v3486 = vpack.c.b16 %v3450, %v3446
        %v3487 = vpack.c.b16 %v3451, %v3447
        %v3488 = vpack.c.b16 %v3452, %v3448
        %v3489 = vpack.c.b16 %v3457, %v3453
        %v3490 = vpack.c.b16 %v3458, %v3454
        %v3491 = vpack.c.b16 %v3459, %v3455
        %v3492 = vpack.c.b16 %v3460, %v3456
        %3525 = vmatprep.subr.bf16.mxu0 %v3462
        %3526 = vmatpush1.bf16.msra.mxu0 %v3461
        %3527 = vmatprep.subr.bf16.mxu0 %v3466
        %3528 = vmatpush1.bf16.msra.mxu0 %v3465
        %3529 = vmatprep.subr.bf16.mxu0 %v3470
        %3530 = vmatpush1.bf16.msra.mxu0 %v3469
        %3531 = vmatprep.subr.bf16.mxu0 %v3474
        %3532 = vmatpush1.bf16.msra.mxu0 %v3473
        %3533 = vmatprep.subr.bf16.mxu0 %v3478
        %3534 = vmatpush1.bf16.msra.mxu0 %v3477
        %3535 = vmatprep.subr.bf16.mxu0 %v3482
        %3536 = vmatpush1.bf16.msra.mxu0 %v3481
        %3537 = vmatprep.subr.bf16.mxu0 %v3486
        %3538 = vmatpush1.bf16.msra.mxu0 %v3485
        %3539 = vmatprep.subr.bf16.mxu0 %v3490
        %3540 = vmatpush1.bf16.msra.mxu0 %v3489
        %3541 = vmatprep.subr.bf16.mxu0 0
        %3542 = vmatpush1.bf16.msra.mxu0 0
        %3543 = vmatprep.subr.bf16.mxu0 0
        %3544 = vmatpush1.bf16.msra.mxu0 0
        %3545 = vmatprep.subr.bf16.mxu0 0
        %3546 = vmatpush1.bf16.msra.mxu0 0
        %3547 = vmatprep.subr.bf16.mxu0 0
        %3548 = vmatpush1.bf16.msra.mxu0 0
        %3549 = vmatprep.subr.bf16.mxu0 0
        %3550 = vmatpush1.bf16.msra.mxu0 0
        %3551 = vmatprep.subr.bf16.mxu0 0
        %3552 = vmatpush1.bf16.msra.mxu0 0
        %3553 = vmatprep.subr.bf16.mxu0 0
        %3554 = vmatpush1.bf16.msra.mxu0 0
        %3555 = vmatprep.subr.bf16.mxu0 0
        %3556 = vmatpush1.bf16.msra.mxu0 0
        %3557 = vmatprep.mubr.bf16.mxu0 0
        %3558 = vmatmul.mubr.bf16.gmra.mrb[0].mxu0 %v3295
        %v3559 = vpop.f32.mrb[0].mxu0
        %v3560 = vadd.f32 %v3348, %v3559
        %v3561 = vpop.f32.mrb[0].mxu0
        %v3562 = vadd.f32 %v3352, %v3561
        %v3563 = vpop.f32.mrb[0].mxu0
        %v3564 = vadd.f32 %v3348, %v3563
        %v3565 = vpop.f32.mrb[0].mxu0
        %v3566 = vadd.f32 %v3352, %v3565
        %3567 = vmatprep.mubr.bf16.mxu0 0
        %3568 = vmatmul.mubr.bf16.gmra.mrb[0].mxu0 %v3296
        %v3569 = vpop.f32.mrb[0].mxu0
        %v3570 = vadd.f32 %v3348, %v3569
        %v3571 = vpop.f32.mrb[0].mxu0
        %v3572 = vadd.f32 %v3352, %v3571
        %v3573 = vpop.f32.mrb[0].mxu0
        %v3574 = vadd.f32 %v3348, %v3573
        %v3575 = vpop.f32.mrb[0].mxu0
        %v3576 = vadd.f32 %v3352, %v3575
        %3577 = vmatprep.mubr.bf16.mxu0 0
        %3578 = vmatmul.mubr.bf16.gmra.mrb[0].mxu0 %v3297
        %v3579 = vpop.f32.mrb[0].mxu0
        %v3580 = vadd.f32 %v3348, %v3579
        %v3581 = vpop.f32.mrb[0].mxu0
        %v3582 = vadd.f32 %v3352, %v3581
        %v3583 = vpop.f32.mrb[0].mxu0
        %v3584 = vadd.f32 %v3348, %v3583
        %v3585 = vpop.f32.mrb[0].mxu0
        %v3586 = vadd.f32 %v3352, %v3585
        %3587 = vdwg.mxu0
        %3588 = vmatprep.subr.bf16.mxu0 %v3464
        %3589 = vmatpush1.bf16.msra.mxu0 %v3463
        %3590 = vmatprep.subr.bf16.mxu0 %v3468
        %3591 = vmatpush1.bf16.msra.mxu0 %v3467
        %3592 = vmatprep.subr.bf16.mxu0 %v3472
        %3593 = vmatpush1.bf16.msra.mxu0 %v3471
        %3594 = vmatprep.subr.bf16.mxu0 %v3476
        %3595 = vmatpush1.bf16.msra.mxu0 %v3475
        %3596 = vmatprep.subr.bf16.mxu0 %v3480
        %3597 = vmatpush1.bf16.msra.mxu0 %v3479
        %3598 = vmatprep.subr.bf16.mxu0 %v3484
        %3599 = vmatpush1.bf16.msra.mxu0 %v3483
        %3600 = vmatprep.subr.bf16.mxu0 %v3488
        %3601 = vmatpush1.bf16.msra.mxu0 %v3487
        %3602 = vmatprep.subr.bf16.mxu0 %v3492
        %3603 = vmatpush1.bf16.msra.mxu0 %v3491
        %3604 = vmatprep.subr.bf16.mxu0 0
        %3605 = vmatpush1.bf16.msra.mxu0 0
        %3606 = vmatprep.subr.bf16.mxu0 0
        %3607 = vmatpush1.bf16.msra.mxu0 0
        %3608 = vmatprep.subr.bf16.mxu0 0
        %3609 = vmatpush1.bf16.msra.mxu0 0
        %3610 = vmatprep.subr.bf16.mxu0 0
        %3611 = vmatpush1.bf16.msra.mxu0 0
        %3612 = vmatprep.subr.bf16.mxu0 0
        %3613 = vmatpush1.bf16.msra.mxu0 0
        %3614 = vmatprep.subr.bf16.mxu0 0
        %3615 = vmatpush1.bf16.msra.mxu0 0
        %3616 = vmatprep.subr.bf16.mxu0 0
        %3617 = vmatpush1.bf16.msra.mxu0 0
        %3618 = vmatprep.subr.bf16.mxu0 0
        %3619 = vmatpush1.bf16.msra.mxu0 0
        %3620 = vmatprep.mubr.bf16.mxu0 0
        %3621 = vmatmul.mubr.bf16.gmra.mrb[0].mxu0 %v3295
        %v3622 = vpop.f32.mrb[0].mxu0
        %v3623 = vadd.f32 %v3356, %v3622
        %v3624 = vpop.f32.mrb[0].mxu0
        %v3625 = vadd.f32 %v3360, %v3624
        %v3626 = vpop.f32.mrb[0].mxu0
        %v3627 = vadd.f32 %v3356, %v3626
        %v3628 = vpop.f32.mrb[0].mxu0
        %v3629 = vadd.f32 %v3360, %v3628
        %3630 = vmatprep.mubr.bf16.mxu0 0
        %3631 = vmatmul.mubr.bf16.gmra.mrb[0].mxu0 %v3296
        %v3632 = vpop.f32.mrb[0].mxu0
        %v3633 = vadd.f32 %v3356, %v3632
        %v3634 = vpop.f32.mrb[0].mxu0
        %v3635 = vadd.f32 %v3360, %v3634
        %v3636 = vpop.f32.mrb[0].mxu0
        %v3637 = vadd.f32 %v3356, %v3636
        %v3638 = vpop.f32.mrb[0].mxu0
        %v3639 = vadd.f32 %v3360, %v3638
        %3640 = vmatprep.mubr.bf16.mxu0 0
        %3641 = vmatmul.mubr.bf16.gmra.mrb[0].mxu0 %v3297
        %v3642 = vpop.f32.mrb[0].mxu0
        %v3643 = vadd.f32 %v3356, %v3642
        %v3644 = vpop.f32.mrb[0].mxu0
        %v3645 = vadd.f32 %v3360, %v3644
        %v3646 = vpop.f32.mrb[0].mxu0
        %v3647 = vadd.f32 %v3356, %v3646
        %v3648 = vpop.f32.mrb[0].mxu0
        %v3649 = vadd.f32 %v3360, %v3648
        %3650 = vdwg.mxu0
        %v3651 = vmul.f32 %v3560, 1.702
        %v3652 = vmul.f32 %v3562, 1.702
        %v3653 = vmul.f32 %v3623, 1.702
        %v3654 = vmul.f32 %v3625, 1.702
        %v3655 = vmul.f32 %v3564, 1.702
        %v3656 = vmul.f32 %v3566, 1.702
        %v3657 = vmul.f32 %v3627, 1.702
        %v3658 = vmul.f32 %v3629, 1.702
        %v3659 = vmul.f32 %v3570, 1.702
        %v3660 = vmul.f32 %v3572, 1.702
        %v3661 = vmul.f32 %v3633, 1.702
        %v3662 = vmul.f32 %v3635, 1.702
        %v3663 = vmul.f32 %v3574, 1.702
        %v3664 = vmul.f32 %v3576, 1.702
        %v3665 = vmul.f32 %v3637, 1.702
        %v3666 = vmul.f32 %v3639, 1.702
        %v3667 = vmul.f32 %v3580, 1.702
        %v3668 = vmul.f32 %v3582, 1.702
        %v3669 = vmul.f32 %v3643, 1.702
        %v3670 = vmul.f32 %v3645, 1.702
        %v3671 = vmul.f32 %v3584, 1.702
        %v3672 = vmul.f32 %v3586, 1.702
        %v3673 = vmul.f32 %v3647, 1.702
        %v3674 = vmul.f32 %v3649, 1.702
        %v3675 = vxor.u32 %v3651, 2147483648
        %v3676 = vxor.u32 %v3652, 2147483648
        %v3677 = vxor.u32 %v3653, 2147483648
        %v3678 = vxor.u32 %v3654, 2147483648
        %v3679 = vxor.u32 %v3655, 2147483648
        %v3680 = vxor.u32 %v3656, 2147483648
        %v3681 = vxor.u32 %v3657, 2147483648
        %v3682 = vxor.u32 %v3658, 2147483648
        %v3683 = vxor.u32 %v3659, 2147483648
        %v3684 = vxor.u32 %v3660, 2147483648
        %v3685 = vxor.u32 %v3661, 2147483648
        %v3686 = vxor.u32 %v3662, 2147483648
        %v3687 = vxor.u32 %v3663, 2147483648
        %v3688 = vxor.u32 %v3664, 2147483648
        %v3689 = vxor.u32 %v3665, 2147483648
        %v3690 = vxor.u32 %v3666, 2147483648
        %v3691 = vxor.u32 %v3667, 2147483648
        %v3692 = vxor.u32 %v3668, 2147483648
        %v3693 = vxor.u32 %v3669, 2147483648
        %v3694 = vxor.u32 %v3670, 2147483648
        %v3695 = vxor.u32 %v3671, 2147483648
        %v3696 = vxor.u32 %v3672, 2147483648
        %v3697 = vxor.u32 %v3673, 2147483648
        %v3698 = vxor.u32 %v3674, 2147483648
        %v3699 = vmul.f32 %v3675, 1.442695
        %v3700 = vpow.pop %v3699
        %v3701 = vmul.f32 %v3676, 1.442695
        %v3702 = vpow.pop %v3701
        %v3703 = vmul.f32 %v3677, 1.442695
        %v3704 = vpow.pop %v3703
        %v3705 = vmul.f32 %v3678, 1.442695
        %v3706 = vpow.pop %v3705
        %v3707 = vmul.f32 %v3679, 1.442695
        %v3708 = vpow.pop %v3707
        %v3709 = vmul.f32 %v3680, 1.442695
        %v3710 = vpow.pop %v3709
        %v3711 = vmul.f32 %v3681, 1.442695
        %v3712 = vpow.pop %v3711
        %v3713 = vmul.f32 %v3682, 1.442695
        %v3714 = vpow.pop %v3713
        %v3715 = vmul.f32 %v3683, 1.442695
        %v3716 = vpow.pop %v3715
        %v3717 = vmul.f32 %v3684, 1.442695
        %v3718 = vpow.pop %v3717
        %v3719 = vmul.f32 %v3685, 1.442695
        %v3720 = vpow.pop %v3719
        %v3721 = vmul.f32 %v3686, 1.442695
        %v3722 = vpow.pop %v3721
        %v3723 = vmul.f32 %v3687, 1.442695
        %v3724 = vpow.pop %v3723
        %v3725 = vmul.f32 %v3688, 1.442695
        %v3726 = vpow.pop %v3725
        %v3727 = vmul.f32 %v3689, 1.442695
        %v3728 = vpow.pop %v3727
        %v3729 = vmul.f32 %v3690, 1.442695
        %v3730 = vpow.pop %v3729
        %v3731 = vmul.f32 %v3691, 1.442695
        %v3732 = vpow.pop %v3731
        %v3733 = vmul.f32 %v3692, 1.442695
        %v3734 = vpow.pop %v3733
        %v3735 = vmul.f32 %v3693, 1.442695
        %v3736 = vpow.pop %v3735
        %v3737 = vmul.f32 %v3694, 1.442695
        %v3738 = vpow.pop %v3737
        %v3739 = vmul.f32 %v3695, 1.442695
        %v3740 = vpow.pop %v3739
        %v3741 = vmul.f32 %v3696, 1.442695
        %v3742 = vpow.pop %v3741
        %v3743 = vmul.f32 %v3697, 1.442695
        %v3744 = vpow.pop %v3743
        %v3745 = vmul.f32 %v3698, 1.442695
        %v3746 = vpow.pop %v3745
        %v3747 = vadd.f32 %v3700, 1.0
        %v3748 = vadd.f32 %v3702, 1.0
        %v3749 = vadd.f32 %v3704, 1.0
        %v3750 = vadd.f32 %v3706, 1.0
        %v3751 = vadd.f32 %v3708, 1.0
        %v3752 = vadd.f32 %v3710, 1.0
        %v3753 = vadd.f32 %v3712, 1.0
        %v3754 = vadd.f32 %v3714, 1.0
        %v3755 = vadd.f32 %v3716, 1.0
        %v3756 = vadd.f32 %v3718, 1.0
        %v3757 = vadd.f32 %v3720, 1.0
        %v3758 = vadd.f32 %v3722, 1.0
        %v3759 = vadd.f32 %v3724, 1.0
        %v3760 = vadd.f32 %v3726, 1.0
        %v3761 = vadd.f32 %v3728, 1.0
        %v3762 = vadd.f32 %v3730, 1.0
        %v3763 = vadd.f32 %v3732, 1.0
        %v3764 = vadd.f32 %v3734, 1.0
        %v3765 = vadd.f32 %v3736, 1.0
        %v3766 = vadd.f32 %v3738, 1.0
        %v3767 = vadd.f32 %v3740, 1.0
        %v3768 = vadd.f32 %v3742, 1.0
        %v3769 = vadd.f32 %v3744, 1.0
        %v3770 = vadd.f32 %v3746, 1.0
        %v3771 = vrcp.pop %v3747
        %v3772 = vmul.f32 1.0, %v3771
        %v3773 = vrcp.pop %v3748
        %v3774 = vmul.f32 1.0, %v3773
        %v3775 = vrcp.pop %v3749
        %v3776 = vmul.f32 1.0, %v3775
        %v3777 = vrcp.pop %v3750
        %v3778 = vmul.f32 1.0, %v3777
        %v3779 = vrcp.pop %v3751
        %v3780 = vmul.f32 1.0, %v3779
        %v3781 = vrcp.pop %v3752
        %v3782 = vmul.f32 1.0, %v3781
        %v3783 = vrcp.pop %v3753
        %v3784 = vmul.f32 1.0, %v3783
        %v3785 = vrcp.pop %v3754
        %v3786 = vmul.f32 1.0, %v3785
        %v3787 = vrcp.pop %v3755
        %v3788 = vmul.f32 1.0, %v3787
        %v3789 = vrcp.pop %v3756
        %v3790 = vmul.f32 1.0, %v3789
        %v3791 = vrcp.pop %v3757
        %v3792 = vmul.f32 1.0, %v3791
        %v3793 = vrcp.pop %v3758
        %v3794 = vmul.f32 1.0, %v3793
        %v3795 = vrcp.pop %v3759
        %v3796 = vmul.f32 1.0, %v3795
        %v3797 = vrcp.pop %v3760
        %v3798 = vmul.f32 1.0, %v3797
        %v3799 = vrcp.pop %v3761
        %v3800 = vmul.f32 1.0, %v3799
        %v3801 = vrcp.pop %v3762
        %v3802 = vmul.f32 1.0, %v3801
        %v3803 = vrcp.pop %v3763
        %v3804 = vmul.f32 1.0, %v3803
        %v3805 = vrcp.pop %v3764
        %v3806 = vmul.f32 1.0, %v3805
        %v3807 = vrcp.pop %v3765
        %v3808 = vmul.f32 1.0, %v3807
        %v3809 = vrcp.pop %v3766
        %v3810 = vmul.f32 1.0, %v3809
        %v3811 = vrcp.pop %v3767
        %v3812 = vmul.f32 1.0, %v3811
        %v3813 = vrcp.pop %v3768
        %v3814 = vmul.f32 1.0, %v3813
        %v3815 = vrcp.pop %v3769
        %v3816 = vmul.f32 1.0, %v3815
        %v3817 = vrcp.pop %v3770
        %v3818 = vmul.f32 1.0, %v3817
        %v3819 = vmul.f32 %v3560, %v3772
        %v3820 = vmul.f32 %v3562, %v3774
        %v3821 = vmul.f32 %v3623, %v3776
        %v3822 = vmul.f32 %v3625, %v3778
        %v3823 = vmul.f32 %v3564, %v3780
        %v3824 = vmul.f32 %v3566, %v3782
        %v3825 = vmul.f32 %v3627, %v3784
        %v3826 = vmul.f32 %v3629, %v3786
        %v3827 = vmul.f32 %v3570, %v3788
        %v3828 = vmul.f32 %v3572, %v3790
        %v3829 = vmul.f32 %v3633, %v3792
        %v3830 = vmul.f32 %v3635, %v3794
        %v3831 = vmul.f32 %v3574, %v3796
        %v3832 = vmul.f32 %v3576, %v3798
        %v3833 = vmul.f32 %v3637, %v3800
        %v3834 = vmul.f32 %v3639, %v3802
        %v3835 = vmul.f32 %v3580, %v3804
        %v3836 = vmul.f32 %v3582, %v3806
        %v3837 = vmul.f32 %v3643, %v3808
        %v3838 = vmul.f32 %v3645, %v3810
        %v3839 = vmul.f32 %v3584, %v3812
        %v3840 = vmul.f32 %v3586, %v3814
        %v3841 = vmul.f32 %v3647, %v3816
        %v3842 = vmul.f32 %v3649, %v3818
        %v3843 = vpack.c.bf16 %v3823, %v3819
        %v3844 = vpack.c.bf16 %v3824, %v3820
        %v3845 = vpack.c.bf16 %v3825, %v3821
        %v3846 = vpack.c.bf16 %v3826, %v3822
        %v3847 = vpack.c.bf16 %v3831, %v3827
        %v3848 = vpack.c.bf16 %v3832, %v3828
        %v3849 = vpack.c.bf16 %v3833, %v3829
        %v3850 = vpack.c.bf16 %v3834, %v3830
        %v3851 = vpack.c.bf16 %v3839, %v3835
        %v3852 = vpack.c.bf16 %v3840, %v3836
        %v3853 = vpack.c.bf16 %v3841, %v3837
        %v3854 = vpack.c.bf16 %v3842, %v3838
        %v3855 = vld [vmem:[%s793] sm:$0xf]
        %v3856 = vld [vmem:[%s793 + $0x4] sm:$0xf]
        %v3857 = vld [vmem:[%s793 + $0x8] sm:$0xf]
        %v3858 = vld [vmem:[%s793 + $0xc] sm:$0xf]
        %v3859 = vld [vmem:[%s793 + $0x10] sm:$0xf]
        %v3860 = vld [vmem:[%s793 + $0x14] sm:$0xf]
        %v3861 = vld [vmem:[%s793 + $0x18] sm:$0xf]
        %v3862 = vld [vmem:[%s793 + $0x1c] sm:$0xf]
        %v3863 = vld [vmem:[%s793 + $0x20] sm:$0xf]
        %v3864 = vld [vmem:[%s793 + $0x24] sm:$0xf]
        %v3865 = vld [vmem:[%s793 + $0x28] sm:$0xf]
        %v3866 = vld [vmem:[%s793 + $0x2c] sm:$0xf]
        %v3867 = vld [vmem:[%s793 + $0x30] sm:$0xf]
        %v3868 = vld [vmem:[%s793 + $0x34] sm:$0xf]
        %v3869 = vld [vmem:[%s793 + $0x38] sm:$0xf]
        %v3870 = vld [vmem:[%s793 + $0x3c] sm:$0xf]
        %v3871 = vld [vmem:[%s793 + $0x40] sm:$0xf]
        %v3872 = vld [vmem:[%s793 + $0x44] sm:$0xf]
        %v3873 = vld [vmem:[%s793 + $0x48] sm:$0xf]
        %v3874 = vld [vmem:[%s793 + $0x4c] sm:$0xf]
        %v3875 = vld [vmem:[%s793 + $0x50] sm:$0xf]
        %v3876 = vld [vmem:[%s793 + $0x54] sm:$0xf]
        %v3877 = vld [vmem:[%s793 + $0x58] sm:$0xf]
        %v3878 = vld [vmem:[%s793 + $0x5c] sm:$0xf]
        %v3879 = vld [vmem:[%s793 + $0x60] sm:$0xf]
        %v3880 = vld [vmem:[%s793 + $0x64] sm:$0xf]
        %v3881 = vld [vmem:[%s793 + $0x68] sm:$0xf]
        %v3882 = vld [vmem:[%s793 + $0x6c] sm:$0xf]
        %v3883 = vld [vmem:[%s793 + $0x70] sm:$0xf]
        %v3884 = vld [vmem:[%s793 + $0x74] sm:$0xf]
        %v3885 = vld [vmem:[%s793 + $0x78] sm:$0xf]
        %v3886 = vld [vmem:[%s793 + $0x7c] sm:$0xf]
        %v3887 = vld [vmem:[%s793 + $0x80] sm:$0xf]
        %v3888 = vld [vmem:[%s793 + $0x84] sm:$0xf]
        %v3889 = vld [vmem:[%s793 + $0x88] sm:$0xf]
        %v3890 = vld [vmem:[%s793 + $0x8c] sm:$0xf]
        %v3891 = vld [vmem:[%s793 + $0x90] sm:$0xf]
        %v3892 = vld [vmem:[%s793 + $0x94] sm:$0xf]
        %v3893 = vld [vmem:[%s793 + $0x98] sm:$0xf]
        %v3894 = vld [vmem:[%s793 + $0x9c] sm:$0xf]
        %v3895 = vld [vmem:[%s793 + $0xa0] sm:$0xf]
        %v3896 = vld [vmem:[%s793 + $0xa4] sm:$0xf]
        %v3897 = vld [vmem:[%s793 + $0xa8] sm:$0xf]
        %v3898 = vld [vmem:[%s793 + $0xac] sm:$0xf]
        %v3899 = vld [vmem:[%s793 + $0xb0] sm:$0xf]
        %v3900 = vld [vmem:[%s793 + $0xb4] sm:$0xf]
        %v3901 = vld [vmem:[%s793 + $0xb8] sm:$0xf]
        %v3902 = vld [vmem:[%s793 + $0xbc] sm:$0xf]
        %v3903 = vld [vmem:[%s793 + $0xc0] sm:$0xf]
        %v3904 = vld [vmem:[%s793 + $0xc4] sm:$0xf]
        %v3905 = vld [vmem:[%s793 + $0xc8] sm:$0xf]
        %v3906 = vld [vmem:[%s793 + $0xcc] sm:$0xf]
        %v3907 = vld [vmem:[%s793 + $0xd0] sm:$0xf]
        %v3908 = vld [vmem:[%s793 + $0xd4] sm:$0xf]
        %v3909 = vld [vmem:[%s793 + $0xd8] sm:$0xf]
        %v3910 = vld [vmem:[%s793 + $0xdc] sm:$0xf]
        %v3911 = vld [vmem:[%s793 + $0xe0] sm:$0xf]
        %v3912 = vld [vmem:[%s793 + $0xe4] sm:$0xf]
        %v3913 = vld [vmem:[%s793 + $0xe8] sm:$0xf]
        %v3914 = vld [vmem:[%s793 + $0xec] sm:$0xf]
        %v3915 = vld [vmem:[%s793 + $0xf0] sm:$0xf]
        %v3916 = vld [vmem:[%s793 + $0xf4] sm:$0xf]
        %v3917 = vld [vmem:[%s793 + $0xf8] sm:$0xf]
        %v3918 = vld [vmem:[%s793 + $0xfc] sm:$0xf]
        %v3983 = vunpack.c.l.b16 %v3855
        %v3984 = vunpack.c.l.b16 %v3856
        %v3985 = vunpack.c.l.b16 %v3857
        %v3986 = vunpack.c.l.b16 %v3858
        %v3987 = vunpack.c.l.b16 %v3859
        %v3988 = vunpack.c.l.b16 %v3860
        %v3989 = vunpack.c.l.b16 %v3861
        %v3990 = vunpack.c.l.b16 %v3862
        %v3991 = vunpack.c.l.b16 %v3863
        %v3992 = vunpack.c.l.b16 %v3864
        %v3993 = vunpack.c.l.b16 %v3865
        %v3994 = vunpack.c.l.b16 %v3866
        %v3995 = vunpack.c.l.b16 %v3867
        %v3996 = vunpack.c.l.b16 %v3868
        %v3997 = vunpack.c.l.b16 %v3869
        %v3998 = vunpack.c.l.b16 %v3870
        %v3999 = vunpack.c.l.b16 %v3871
        %v4000 = vunpack.c.l.b16 %v3872
        %v4001 = vunpack.c.l.b16 %v3873
        %v4002 = vunpack.c.l.b16 %v3874
        %v4003 = vunpack.c.l.b16 %v3875
        %v4004 = vunpack.c.l.b16 %v3876
        %v4005 = vunpack.c.l.b16 %v3877
        %v4006 = vunpack.c.l.b16 %v3878
        %v4007 = vunpack.c.l.b16 %v3879
        %v4008 = vunpack.c.l.b16 %v3880
        %v4009 = vunpack.c.l.b16 %v3881
        %v4010 = vunpack.c.l.b16 %v3882
        %v4011 = vunpack.c.l.b16 %v3883
        %v4012 = vunpack.c.l.b16 %v3884
        %v4013 = vunpack.c.l.b16 %v3885
        %v4014 = vunpack.c.l.b16 %v3886
        %v4015 = vunpack.c.l.b16 %v3887
        %v4016 = vunpack.c.l.b16 %v3888
        %v4017 = vunpack.c.l.b16 %v3889
        %v4018 = vunpack.c.l.b16 %v3890
        %v4019 = vunpack.c.l.b16 %v3891
        %v4020 = vunpack.c.l.b16 %v3892
        %v4021 = vunpack.c.l.b16 %v3893
        %v4022 = vunpack.c.l.b16 %v3894
        %v4023 = vunpack.c.l.b16 %v3895
        %v4024 = vunpack.c.l.b16 %v3896
        %v4025 = vunpack.c.l.b16 %v3897
        %v4026 = vunpack.c.l.b16 %v3898
        %v4027 = vunpack.c.l.b16 %v3899
        %v4028 = vunpack.c.l.b16 %v3900
        %v4029 = vunpack.c.l.b16 %v3901
        %v4030 = vunpack.c.l.b16 %v3902
        %v4031 = vunpack.c.l.b16 %v3903
        %v4032 = vunpack.c.l.b16 %v3904
        %v4033 = vunpack.c.l.b16 %v3905
        %v4034 = vunpack.c.l.b16 %v3906
        %v4035 = vunpack.c.l.b16 %v3907
        %v4036 = vunpack.c.l.b16 %v3908
        %v4037 = vunpack.c.l.b16 %v3909
        %v4038 = vunpack.c.l.b16 %v3910
        %v4039 = vunpack.c.l.b16 %v3911
        %v4040 = vunpack.c.l.b16 %v3912
        %v4041 = vunpack.c.l.b16 %v3913
        %v4042 = vunpack.c.l.b16 %v3914
        %v4043 = vunpack.c.l.b16 %v3915
        %v4044 = vunpack.c.l.b16 %v3916
        %v4045 = vunpack.c.l.b16 %v3917
        %v4046 = vunpack.c.l.b16 %v3918
        %v4047 = vpack.c.b16 %v3984, %v3983
        %v4048 = vpack.c.b16 %v3986, %v3985
        %v4049 = vpack.c.b16 %v3988, %v3987
        %v4050 = vpack.c.b16 %v3990, %v3989
        %v4051 = vpack.c.b16 %v3992, %v3991
        %v4052 = vpack.c.b16 %v3994, %v3993
        %v4053 = vpack.c.b16 %v3996, %v3995
        %v4054 = vpack.c.b16 %v3998, %v3997
        %v4055 = vpack.c.b16 %v4000, %v3999
        %v4056 = vpack.c.b16 %v4002, %v4001
        %v4057 = vpack.c.b16 %v4004, %v4003
        %v4058 = vpack.c.b16 %v4006, %v4005
        %v4059 = vpack.c.b16 %v4008, %v4007
        %v4060 = vpack.c.b16 %v4010, %v4009
        %v4061 = vpack.c.b16 %v4012, %v4011
        %v4062 = vpack.c.b16 %v4014, %v4013
        %v4063 = vpack.c.b16 %v4016, %v4015
        %v4064 = vpack.c.b16 %v4018, %v4017
        %v4065 = vpack.c.b16 %v4020, %v4019
        %v4066 = vpack.c.b16 %v4022, %v4021
        %v4067 = vpack.c.b16 %v4024, %v4023
        %v4068 = vpack.c.b16 %v4026, %v4025
        %v4069 = vpack.c.b16 %v4028, %v4027
        %v4070 = vpack.c.b16 %v4030, %v4029
        %v4071 = vpack.c.b16 %v4032, %v4031
        %v4072 = vpack.c.b16 %v4034, %v4033
        %v4073 = vpack.c.b16 %v4036, %v4035
        %v4074 = vpack.c.b16 %v4038, %v4037
        %v4075 = vpack.c.b16 %v4040, %v4039
        %v4076 = vpack.c.b16 %v4042, %v4041
        %v4077 = vpack.c.b16 %v4044, %v4043
        %v4078 = vpack.c.b16 %v4046, %v4045
        %4111 = vmatprep.subr.bf16.mxu0 0
        %4112 = vmatpush1.bf16.msra.mxu0 %v4047
        %4113 = vmatprep.subr.bf16.mxu0 0
        %4114 = vmatpush1.bf16.msra.mxu0 %v4048
        %4115 = vmatprep.subr.bf16.mxu0 0
        %4116 = vmatpush1.bf16.msra.mxu0 %v4049
        %4117 = vmatprep.subr.bf16.mxu0 0
        %4118 = vmatpush1.bf16.msra.mxu0 %v4050
        %4119 = vmatprep.subr.bf16.mxu0 0
        %4120 = vmatpush1.bf16.msra.mxu0 %v4051
        %4121 = vmatprep.subr.bf16.mxu0 0
        %4122 = vmatpush1.bf16.msra.mxu0 %v4052
        %4123 = vmatprep.subr.bf16.mxu0 0
        %4124 = vmatpush1.bf16.msra.mxu0 %v4053
        %4125 = vmatprep.subr.bf16.mxu0 0
        %4126 = vmatpush1.bf16.msra.mxu0 %v4054
        %4127 = vmatprep.subr.bf16.mxu0 0
        %4128 = vmatpush1.bf16.msra.mxu0 %v4055
        %4129 = vmatprep.subr.bf16.mxu0 0
        %4130 = vmatpush1.bf16.msra.mxu0 %v4056
        %4131 = vmatprep.subr.bf16.mxu0 0
        %4132 = vmatpush1.bf16.msra.mxu0 %v4057
        %4133 = vmatprep.subr.bf16.mxu0 0
        %4134 = vmatpush1.bf16.msra.mxu0 %v4058
        %4135 = vmatprep.subr.bf16.mxu0 0
        %4136 = vmatpush1.bf16.msra.mxu0 %v4059
        %4137 = vmatprep.subr.bf16.mxu0 0
        %4138 = vmatpush1.bf16.msra.mxu0 %v4060
        %4139 = vmatprep.subr.bf16.mxu0 0
        %4140 = vmatpush1.bf16.msra.mxu0 %v4061
        %4141 = vmatprep.subr.bf16.mxu0 0
        %4142 = vmatpush1.bf16.msra.mxu0 %v4062
        %4143 = vmatprep.mubr.bf16.mxu0 %v3844
        %4144 = vmatmul.mubr.bf16.gmra.mrb[0].mxu0 %v3843
        %v4145 = vpop.f32.mrb[0].mxu0
        %v4146 = vadd.f32 0.0, %v4145
        %v4147 = vpop.f32.mrb[0].mxu0
        %v4148 = vpop.f32.mrb[0].mxu0
        %v4149 = vadd.f32 0.0, %v4148
        %v4150 = vpop.f32.mrb[0].mxu0
        %4151 = vmatprep.mubr.bf16.mxu0 %v3848
        %4152 = vmatmul.mubr.bf16.gmra.mrb[0].mxu0 %v3847
        %v4153 = vpop.f32.mrb[0].mxu0
        %v4154 = vadd.f32 0.0, %v4153
        %v4155 = vpop.f32.mrb[0].mxu0
        %v4156 = vpop.f32.mrb[0].mxu0
        %v4157 = vadd.f32 0.0, %v4156
        %v4158 = vpop.f32.mrb[0].mxu0
        %4159 = vmatprep.mubr.bf16.mxu0 %v3852
        %4160 = vmatmul.mubr.bf16.gmra.mrb[0].mxu0 %v3851
        %v4161 = vpop.f32.mrb[0].mxu0
        %v4162 = vadd.f32 0.0, %v4161
        %v4163 = vpop.f32.mrb[0].mxu0
        %v4164 = vpop.f32.mrb[0].mxu0
        %v4165 = vadd.f32 0.0, %v4164
        %v4166 = vpop.f32.mrb[0].mxu0
        %4167 = vdwg.mxu0
        %4168 = vmatprep.subr.bf16.mxu0 0
        %4169 = vmatpush1.bf16.msra.mxu0 %v4063
        %4170 = vmatprep.subr.bf16.mxu0 0
        %4171 = vmatpush1.bf16.msra.mxu0 %v4064
        %4172 = vmatprep.subr.bf16.mxu0 0
        %4173 = vmatpush1.bf16.msra.mxu0 %v4065
        %4174 = vmatprep.subr.bf16.mxu0 0
        %4175 = vmatpush1.bf16.msra.mxu0 %v4066
        %4176 = vmatprep.subr.bf16.mxu0 0
        %4177 = vmatpush1.bf16.msra.mxu0 %v4067
        %4178 = vmatprep.subr.bf16.mxu0 0
        %4179 = vmatpush1.bf16.msra.mxu0 %v4068
        %4180 = vmatprep.subr.bf16.mxu0 0
        %4181 = vmatpush1.bf16.msra.mxu0 %v4069
        %4182 = vmatprep.subr.bf16.mxu0 0
        %4183 = vmatpush1.bf16.msra.mxu0 %v4070
        %4184 = vmatprep.subr.bf16.mxu0 0
        %4185 = vmatpush1.bf16.msra.mxu0 %v4071
        %4186 = vmatprep.subr.bf16.mxu0 0
        %4187 = vmatpush1.bf16.msra.mxu0 %v4072
        %4188 = vmatprep.subr.bf16.mxu0 0
        %4189 = vmatpush1.bf16.msra.mxu0 %v4073
        %4190 = vmatprep.subr.bf16.mxu0 0
        %4191 = vmatpush1.bf16.msra.mxu0 %v4074
        %4192 = vmatprep.subr.bf16.mxu0 0
        %4193 = vmatpush1.bf16.msra.mxu0 %v4075
        %4194 = vmatprep.subr.bf16.mxu0 0
        %4195 = vmatpush1.bf16.msra.mxu0 %v4076
        %4196 = vmatprep.subr.bf16.mxu0 0
        %4197 = vmatpush1.bf16.msra.mxu0 %v4077
        %4198 = vmatprep.subr.bf16.mxu0 0
        %4199 = vmatpush1.bf16.msra.mxu0 %v4078
        %4200 = vmatprep.mubr.bf16.mxu0 %v3846
        %4201 = vmatmul.mubr.bf16.gmra.mrb[0].mxu0 %v3845
        %v4202 = vpop.f32.mrb[0].mxu0
        %v4203 = vadd.f32 %v4146, %v4202
        %v4204 = vpop.f32.mrb[0].mxu0
        %v4205 = vpop.f32.mrb[0].mxu0
        %v4206 = vadd.f32 %v4149, %v4205
        %v4207 = vpop.f32.mrb[0].mxu0
        %4208 = vmatprep.mubr.bf16.mxu0 %v3850
        %4209 = vmatmul.mubr.bf16.gmra.mrb[0].mxu0 %v3849
        %v4210 = vpop.f32.mrb[0].mxu0
        %v4211 = vadd.f32 %v4154, %v4210
        %v4212 = vpop.f32.mrb[0].mxu0
        %v4213 = vpop.f32.mrb[0].mxu0
        %v4214 = vadd.f32 %v4157, %v4213
        %v4215 = vpop.f32.mrb[0].mxu0
        %4216 = vmatprep.mubr.bf16.mxu0 %v3854
        %4217 = vmatmul.mubr.bf16.gmra.mrb[0].mxu0 %v3853
        %v4218 = vpop.f32.mrb[0].mxu0
        %v4219 = vadd.f32 %v4162, %v4218
        %v4220 = vpop.f32.mrb[0].mxu0
        %v4221 = vpop.f32.mrb[0].mxu0
        %v4222 = vadd.f32 %v4165, %v4221
        %v4223 = vpop.f32.mrb[0].mxu0
        %4224 = vdwg.mxu0
        %v4225 = vadd.f32 %v3305, %v4203
        %v4226 = vadd.f32 %v3306, %v4206
        %v4227 = vadd.f32 %v3307, %v4211
        %v4228 = vadd.f32 %v3308, %v4214
        %v4229 = vadd.f32 %v3309, %v4219
        %v4230 = vadd.f32 %v3310, %v4222
        %4231 = vst [vmem:[%s802] sm:$0xff] %v4225
        %4232 = vst [vmem:[%s802 + $0x8] sm:$0xff] %v4226
        %4233 = vst [vmem:[%s802 + $0x10] sm:$0xff] %v4227
        %4234 = vst [vmem:[%s802 + $0x18] sm:$0xff] %v4228
        %4235 = vst [vmem:[%s802 + $0x20] sm:$0xff] %v4229
        %4236 = vst [vmem:[%s802 + $0x28] sm:$0xff] %v4230
        %s4237 = smul.u32 2, %s38
        %p4238 = scmp.lt.s32.totalorder %s4237, 1
        %s4239 = scalar_select %p4238, %s4237, 1
        %s4240 = smul.addr %s4239, 3
        %s4241 = smul.addr %s4240, 8
        %s4242 = scalar_lea.vmem %s17, %s4241
        // Predicated region
        $region101: #{clip_mapper_forward.1} parent=83 // pred_check
          %p4243 = pneg %p472
        $region102: #{clip_mapper_forward.1} parent=83 // pred_check_branch
          %4245 = sbr.rel (%p4243) target = $region104
        $region103: #{clip_mapper_forward.1} parent=83 // pred_region
          %s4246 = smul.u32 2, %s38
        $region104: #{clip_mapper_forward.1} parent=83 // pred_fallthru
          _
        // Predicated region
        $region105: #{clip_mapper_forward.1} parent=83 // pred_check
          %p4247 = pneg %p472
        $region106: #{clip_mapper_forward.1} parent=83 // pred_check_branch
          %4249 = sbr.rel (%p4247) target = $region108
        $region107: #{clip_mapper_forward.1} parent=83 // pred_region
          %s4250 = smul.u32 2, %s38
          %p4251 = scmp.lt.s32.totalorder %s4250, 1
          %s4252 = scalar_select %p4251, %s4250, 1
          %s4253 = smul.addr %s4252, 3
          %s4254 = smul.addr %s4253, 8
          %s4255 = scalar_lea.vmem %s17, %s4254
        $region108: #{clip_mapper_forward.1} parent=83 // pred_fallthru
          _
      $region84: #{clip_mapper_forward.1} parent=5 // pred_fallthru
        _
      %p4256 = scmp.le.s32.totalorder 2, %s29
      // Predicated region
      $region109: #{clip_mapper_forward.1} parent=5 // pred_check
        %p4257 = pneg %p4256
      $region110: #{clip_mapper_forward.1} parent=5 // pred_check_branch
        %4259 = sbr.rel (%p4257) target = $region112
      $region111: #{clip_mapper_forward.1} parent=5 // pred_region
        %s4260 = ssub.s32 %s29, 2
      $region112: #{clip_mapper_forward.1} parent=5 // pred_fallthru
        _
    $region6: #{clip_mapper_forward.1} parent=1 // loop_footer
      %s33 = sadd.s32 1, %s29
    $region7: #{clip_mapper_forward.1} parent=1 // loop_footer_branch
      %28 = sbr.rel target = $region3
    $region8: #{clip_mapper_forward.1} parent=1 // loop_exit
      _
    %4261 = vsyncpa [#allocation5], 1
    %s4262 = scalar_lea.sflag [#allocation5], 1
    %4263 = vsyncpa %s4262, 1
    %4264 = vsyncpa [#allocation7], 1

</llo_original>
